<compile_context>
chip_gen: v5e
topology: v5e:2x2
jax: 0.10.0
libtpu: 0.0.40
codegen_flags: <defaults>
</compile_context>

<pallas_src>
import math

import numpy as np

import jax
import jax.numpy as jnp
from jax import lax
from jax.experimental import pallas as pl
from jax.experimental.pallas import tpu as pltpu

# Small, TPU-friendly synthetic hyper-parameters (lane-aligned to 128).
VOCAB_SIZE = 128
MAXLEN = 8
WORD_SIZE = 128      # Encoder.word_size  (decoder hidden size, worder input)
THOUGHT_SIZE = 128   # Encoder.thought_size
BATCH = 4


def _gru_gates(gi, gh, b_hn, h, H):
    """One GRU update (PyTorch gate order [r, z, n]).
    gi already contains b_ih and the folded r/z parts of b_hh; gh = h @ W_hh^T."""
    r = jax.nn.sigmoid(gi[:, 0:H] + gh[:, 0:H])
    z = jax.nn.sigmoid(gi[:, H:2 * H] + gh[:, H:2 * H])
    n = jnp.tanh(gi[:, 2 * H:3 * H] + r * (gh[:, 2 * H:3 * H] + b_hn))
    return (1.0 - z) * n + z * h


# ----------------------------------------------------------------------------
# Fused DuoDecoder kernel (single invocation, both branches).
#   x_ref    : (2, T, Bp, I) f32   branch GRU input sequences (I = thought + word)
#   wih_ref  : (2, I, 3H)    bf16  W_ih^T          (gate order [r, z, n])
#   whh_ref  : (2, H, 3H)    bf16  W_hh^T
#   bihf_ref : (2, 1, 3H)    f32   b_ih + [b_hr, b_hz, 0]   (folded)
#   bhn_ref  : (2, 1, H)     f32   n-gate b_hh (must stay under the r* multiply)
#   wv_ref   : (H, V)        bf16  worder.weight^T (shared)
#   bv_ref   : (1, V)        f32   worder.bias
#   out_ref  : (2, T, Bp, V) f32   logits, time-major
# Scratch: per-branch hoisted input projections (T, Bp, 3H) f32.
# ----------------------------------------------------------------------------
def duodecoder_kernel(x_ref, wih_ref, whh_ref, bihf_ref, bhn_ref, wv_ref, bv_ref,
                      out_ref, gi_p_scr, gi_n_scr):
    _, T, Bp, I = x_ref.shape
    H = whh_ref.shape[1]
    V = wv_ref.shape[-1]
    TB = T * Bp

    # ---- hoisted input projections for ALL timesteps of BOTH branches (off the
    # ---- serial path): one (T*Bp, I) x (I, 3H) bf16 matmul per branch + folded bias
    x_p = x_ref[0].reshape(TB, I).astype(jnp.bfloat16)
    x_n = x_ref[1].reshape(TB, I).astype(jnp.bfloat16)
    gi_p_scr[...] = (jnp.dot(x_p, wih_ref[0], preferred_element_type=jnp.float32)
                     + bihf_ref[0]).reshape(T, Bp, 3 * H)
    gi_n_scr[...] = (jnp.dot(x_n, wih_ref[1], preferred_element_type=jnp.float32)
                     + bihf_ref[1]).reshape(T, Bp, 3 * H)

    whh_p = whh_ref[0]       # (H, 3H) bf16, loop-invariant
    whh_n = whh_ref[1]
    bhn_p = bhn_ref[0]       # (1, H) f32
    bhn_n = bhn_ref[1]

    # ---- serial GRU recurrence: both independent chains interleaved per step so
    # ---- the two tiny (Bp, H) x (H, 3H) bf16 matmuls overlap on the MXU.
    h_p = jnp.zeros((Bp, H), jnp.float32)
    h_n = jnp.zeros((Bp, H), jnp.float32)
    hs_p = []
    hs_n = []
    for t in range(T):       # static unroll (T = 8)
        gh_p = jnp.dot(h_p.astype(jnp.bfloat16), whh_p,
                       preferred_element_type=jnp.float32)
        gh_n = jnp.dot(h_n.astype(jnp.bfloat16), whh_n,
                       preferred_element_type=jnp.float32)
        h_p = _gru_gates(gi_p_scr[t], gh_p, bhn_p, h_p, H)
        h_n = _gru_gates(gi_n_scr[t], gh_n, bhn_n, h_n, H)
        hs_p.append(h_p)     # each h_t is exactly one (8,128) f32 vreg
        hs_n.append(h_n)

    # ---- fused worder: one (2*T*Bp, H) x (H, V) matmul for both branches ----
    emb = jnp.concatenate(hs_p + hs_n, axis=0)                 # (2*T*Bp, H)
    logits = jnp.dot(emb.astype(jnp.bfloat16), wv_ref[...],
                     preferred_element_type=jnp.float32) + bv_ref[...]
    out_ref[...] = logits.reshape(2, T, Bp, V)


def duodecoder_forward(params, thoughts, word_embeddings):
    """DuoDecoder.forward: thoughts (B, TH), word_embeddings (T, B, E)
       -> (prev_pred, next_pred), each (B-1, T, V)."""
    T, B, E = word_embeddings.shape
    TH = thoughts.shape[-1]
    V = params["worder_w"].shape[0]
    H = E                               # decoder hidden size == word_size
    I = TH + E
    Bm1 = B - 1
    Bp = ((Bm1 + 7) // 8) * 8           # pad decoder batch to a full sublane tile

    # ---- input assembly (cheap XLA glue, mirrors the reference forward) ----
    th_rep = jnp.broadcast_to(thoughts[None], (T, B, TH))       # thoughts.repeat(T,1,1)
    prev_th = th_rep[:, :-1, :]
    next_th = th_rep[:, 1:, :]
    prev_we = word_embeddings[:, :-1, :]
    next_we = word_embeddings[:, 1:, :]
    delayed_prev = jnp.concatenate([jnp.zeros_like(prev_we[:1]), prev_we[:-1]], axis=0)
    delayed_next = jnp.concatenate([jnp.zeros_like(next_we[:1]), next_we[:-1]], axis=0)

    prev_in = jnp.concatenate([next_th, delayed_prev], axis=2)  # (T, B-1, I)
    next_in = jnp.concatenate([prev_th, delayed_next], axis=2)  # (T, B-1, I)
    xs = jnp.stack([prev_in, next_in], axis=0)                  # (2, T, B-1, I)
    xs = jnp.pad(xs, ((0, 0), (0, 0), (0, Bp - Bm1), (0, 0)))   # (2, T, Bp, I)

    # ---- stacked per-branch weights, pre-transposed and cast to bf16 (MXU-native,
    # ---- halves weight DMA); biases stay f32 ----
    wih = jnp.stack([params["prev_wih"].T, params["next_wih"].T],
                    axis=0).astype(jnp.bfloat16)                 # (2, I, 3H)
    whh = jnp.stack([params["prev_whh"].T, params["next_whh"].T],
                    axis=0).astype(jnp.bfloat16)                 # (2, H, 3H)

    def fold_bias(b_ih, b_hh):  # b_ih + [b_hr, b_hz, 0]
        return b_ih + jnp.concatenate(
            [b_hh[:H], b_hh[H:2 * H], jnp.zeros((H,), b_ih.dtype)])

    bihf = jnp.stack([fold_bias(params["prev_bih"], params["prev_bhh"]),
                      fold_bias(params["next_bih"], params["next_bhh"])],
                     axis=0).reshape(2, 1, 3 * H)
    bhn = jnp.stack([params["prev_bhh"][2 * H:], params["next_bhh"][2 * H:]],
                    axis=0).reshape(2, 1, H)

    wv_t = params["worder_w"].T.astype(jnp.bfloat16)             # (H, V)
    bv = params["worder_b"].reshape(1, V)

    out = pl.pallas_call(
        duodecoder_kernel,
        out_shape=jax.ShapeDtypeStruct((2, T, Bp, V), jnp.float32),
        grid_spec=pltpu.PrefetchScalarGridSpec(
            num_scalar_prefetch=0,
            grid=(1,),                                           # single fused launch
            in_specs=[
                pl.BlockSpec((2, T, Bp, I), lambda i: (0, 0, 0, 0)),
                pl.BlockSpec((2, I, 3 * H), lambda i: (0, 0, 0)),
                pl.BlockSpec((2, H, 3 * H), lambda i: (0, 0, 0)),
                pl.BlockSpec((2, 1, 3 * H), lambda i: (0, 0, 0)),
                pl.BlockSpec((2, 1, H), lambda i: (0, 0, 0)),
                pl.BlockSpec((H, V), lambda i: (0, 0)),          # shared worder weight
                pl.BlockSpec((1, V), lambda i: (0, 0)),
            ],
            out_specs=pl.BlockSpec((2, T, Bp, V), lambda i: (0, 0, 0, 0)),
            scratch_shapes=[
                pltpu.VMEM((T, Bp, 3 * H), jnp.float32),   # prev-branch input proj
                pltpu.VMEM((T, Bp, 3 * H), jnp.float32),   # next-branch input proj
            ],
        ),
        compiler_params=pltpu.CompilerParams(
            dimension_semantics=("arbitrary",)),
    )(xs, wih, whh, bihf, bhn, wv_t, bv)

    # drop batch padding; (T, B-1, V) -> (B-1, T, V) like .transpose(0, 1) in torch
    prev_pred = jnp.transpose(out[0, :, :Bm1, :], (1, 0, 2))
    next_pred = jnp.transpose(out[1, :, :Bm1, :], (1, 0, 2))
    return prev_pred, next_pred


# ----------------------------------------------------------------------------
# Pure-JAX f32 reference (mirrors nn.GRU + nn.Linear) for a correctness check.
# ----------------------------------------------------------------------------
def _gru_reference(x, w_ih, w_hh, b_ih, b_hh):
    H = w_hh.shape[1]
    hi = jax.lax.Precision.HIGHEST

    def step(h, x_t):
        gi = jnp.dot(x_t, w_ih.T, precision=hi) + b_ih
        gh = jnp.dot(h, w_hh.T, precision=hi) + b_hh
        r = jax.nn.sigmoid(gi[:, 0:H] + gh[:, 0:H])
        z = jax.nn.sigmoid(gi[:, H:2 * H] + gh[:, H:2 * H])
        n = jnp.tanh(gi[:, 2 * H:3 * H] + r * gh[:, 2 * H:3 * H])
        h_new = (1.0 - z) * n + z * h
        return h_new, h_new

    h0 = jnp.zeros((x.shape[1], H), x.dtype)
    _, hs = lax.scan(step, h0, x)
    return hs                                              # (T, B, H)


def duodecoder_reference(params, thoughts, word_embeddings):
    T, B, _ = word_embeddings.shape
    TH = thoughts.shape[-1]
    th_rep = jnp.broadcast_to(thoughts[None], (T, B, TH))
    prev_th, next_th = th_rep[:, :-1, :], th_rep[:, 1:, :]
    prev_we, next_we = word_embeddings[:, :-1, :], word_embeddings[:, 1:, :]
    delayed_prev = jnp.concatenate([jnp.zeros_like(prev_we[:1]), prev_we[:-1]], axis=0)
    delayed_next = jnp.concatenate([jnp.zeros_like(next_we[:1]), next_we[:-1]], axis=0)
    prev_in = jnp.concatenate([next_th, delayed_prev], axis=2)
    next_in = jnp.concatenate([prev_th, delayed_next], axis=2)

    prev_embds = _gru_reference(prev_in, params["prev_wih"], params["prev_whh"],
                                params["prev_bih"], params["prev_bhh"])
    next_embds = _gru_reference(next_in, params["next_wih"], params["next_whh"],
                                params["next_bih"], params["next_bhh"])

    hi = jax.lax.Precision.HIGHEST

    def worder(h):
        logits = jnp.dot(h, params["worder_w"].T, precision=hi) + params["worder_b"]
        return jnp.transpose(logits, (1, 0, 2))            # (B-1, T, V)

    return worder(prev_embds), worder(next_embds)


# ----------------------------------------------------------------------------
# Deterministic synthetic parameter init (PyTorch-style shapes / scales)
# ----------------------------------------------------------------------------
def init_params(key):
    ks = jax.random.split(key, 10)

    def u(k, shape, scale):
        return jax.random.uniform(k, shape, jnp.float32, -scale, scale)

    s = 1.0 / math.sqrt(WORD_SIZE)
    I = THOUGHT_SIZE + WORD_SIZE
    return {
        # DuoDecoder.prev_lstm (nn.GRU, bias=True)
        "prev_wih": u(ks[0], (3 * WORD_SIZE, I), s),
        "prev_whh": u(ks[1], (3 * WORD_SIZE, WORD_SIZE), s),
        "prev_bih": u(ks[2], (3 * WORD_SIZE,), s),
        "prev_bhh": u(ks[3], (3 * WORD_SIZE,), s),
        # DuoDecoder.next_lstm
        "next_wih": u(ks[4], (3 * WORD_SIZE, I), s),
        "next_whh": u(ks[5], (3 * WORD_SIZE, WORD_SIZE), s),
        "next_bih": u(ks[6], (3 * WORD_SIZE,), s),
        "next_bhh": u(ks[7], (3 * WORD_SIZE,), s),
        # DuoDecoder.worder (nn.Linear)
        "worder_w": u(ks[8], (VOCAB_SIZE, WORD_SIZE), s),
        "worder_b": u(ks[9], (VOCAB_SIZE,), s),
    }


if __name__ == "__main__":
    key = jax.random.PRNGKey(0)
    k_param, k_th, k_we = jax.random.split(key, 3)
    params = init_params(k_param)

    # DuoDecoder.forward inputs: thoughts (B, thought_size), word_embeddings
    # (T, B, word_size) (encoder output is tanh-squashed, so use tanh(normal)).
    thoughts = jax.random.normal(k_th, (BATCH, THOUGHT_SIZE), jnp.float32)
    word_embeddings = jnp.tanh(
        jax.random.normal(k_we, (MAXLEN, BATCH, WORD_SIZE), jnp.float32))

    fwd = jax.jit(duodecoder_forward)
    prev_pred, next_pred = fwd(params, thoughts, word_embeddings)
    jax.block_until_ready((prev_pred, next_pred))

    # correctness check against the pure-JAX (f32) reference (bf16 MXU operands,
    # f32 accumulation + f32 gate math -> well inside 5e-2)
    ref_prev, ref_next = duodecoder_reference(params, thoughts, word_embeddings)
    np.testing.assert_allclose(np.asarray(prev_pred), np.asarray(ref_prev),
                               rtol=5e-2, atol=5e-2)
    np.testing.assert_allclose(np.asarray(next_pred), np.asarray(ref_next),
                               rtol=5e-2, atol=5e-2)

    print("KERNEL_OK")
</pallas_src>

<mosaic_0001>
module attributes {stable_mosaic.version = 11 : i64} {
  func.func @duodecoder_kernel(%arg0: i32, %arg1: memref<2x8x8x256xf32, #tpu.memory_space<vmem>>, %arg2: memref<2x256x384xbf16, #tpu.memory_space<vmem>>, %arg3: memref<2x128x384xbf16, #tpu.memory_space<vmem>>, %arg4: memref<2x1x384xf32, #tpu.memory_space<vmem>>, %arg5: memref<2x1x128xf32, #tpu.memory_space<vmem>>, %arg6: memref<128x128xbf16, #tpu.memory_space<vmem>>, %arg7: memref<1x128xf32, #tpu.memory_space<vmem>>, %arg8: memref<2x8x8x128xf32, #tpu.memory_space<vmem>>, %arg9: memref<8x8x384xf32, #tpu.memory_space<vmem>>, %arg10: memref<8x8x384xf32, #tpu.memory_space<vmem>>) attributes {dimension_semantics = [#tpu.dimension_semantics<arbitrary>], iteration_bounds = array<i64: 1>, scalar_prefetch = 0 : i64, scratch_operands = 2 : i64, tpu.core_type = #tpu.core_type<tc>, window_params = [{pipeline_mode = #tpu.pipeline_mode<synchronous>, transform_indices = @transform_0, window_bounds = array<i64: 2, 8, 8, 256>}, {pipeline_mode = #tpu.pipeline_mode<synchronous>, transform_indices = @transform_1, window_bounds = array<i64: 2, 256, 384>}, {pipeline_mode = #tpu.pipeline_mode<synchronous>, transform_indices = @transform_2, window_bounds = array<i64: 2, 128, 384>}, {pipeline_mode = #tpu.pipeline_mode<synchronous>, transform_indices = @transform_3, window_bounds = array<i64: 2, 1, 384>}, {pipeline_mode = #tpu.pipeline_mode<synchronous>, transform_indices = @transform_4, window_bounds = array<i64: 2, 1, 128>}, {pipeline_mode = #tpu.pipeline_mode<synchronous>, transform_indices = @transform_5, window_bounds = array<i64: 128, 128>}, {pipeline_mode = #tpu.pipeline_mode<synchronous>, transform_indices = @transform_6, window_bounds = array<i64: 1, 128>}, {pipeline_mode = #tpu.pipeline_mode<synchronous>, transform_indices = @transform_7, window_bounds = array<i64: 2, 8, 8, 128>}]} {
    %c0 = arith.constant 0 : index
    %c0_0 = arith.constant 0 : index
    %c0_1 = arith.constant 0 : index
    %c0_2 = arith.constant 0 : index
    %0 = vector.load %arg1[%c0, %c0_0, %c0_1, %c0_2] : memref<2x8x8x256xf32, #tpu.memory_space<vmem>>, vector<1x8x8x256xf32>
    %1 = vector.shape_cast %0 : vector<1x8x8x256xf32> to vector<8x8x256xf32>
    %2 = vector.shape_cast %1 : vector<8x8x256xf32> to vector<64x256xf32>
    %3 = arith.truncf %2 : vector<64x256xf32> to vector<64x256xbf16>
    %c1 = arith.constant 1 : index
    %c0_3 = arith.constant 0 : index
    %c0_4 = arith.constant 0 : index
    %c0_5 = arith.constant 0 : index
    %4 = vector.load %arg1[%c1, %c0_3, %c0_4, %c0_5] : memref<2x8x8x256xf32, #tpu.memory_space<vmem>>, vector<1x8x8x256xf32>
    %5 = vector.shape_cast %4 : vector<1x8x8x256xf32> to vector<8x8x256xf32>
    %6 = vector.shape_cast %5 : vector<8x8x256xf32> to vector<64x256xf32>
    %7 = arith.truncf %6 : vector<64x256xf32> to vector<64x256xbf16>
    %c0_6 = arith.constant 0 : index
    %c0_7 = arith.constant 0 : index
    %c0_8 = arith.constant 0 : index
    %8 = vector.load %arg2[%c0_6, %c0_7, %c0_8] : memref<2x256x384xbf16, #tpu.memory_space<vmem>>, vector<1x256x384xbf16>
    %9 = vector.shape_cast %8 : vector<1x256x384xbf16> to vector<256x384xbf16>
    %cst = arith.constant dense<0.000000e+00> : vector<64x384xf32>
    %10 = tpu.matmul %3, %9, %cst {dimension_numbers = #tpu.dot_dimension_numbers<[1], [0], [0], [1], [0, 0, 1, 1], [], []>} : vector<64x256xbf16>, vector<256x384xbf16>, vector<64x384xf32> -> vector<64x384xf32>
    %c0_9 = arith.constant 0 : index
    %c0_10 = arith.constant 0 : index
    %c0_11 = arith.constant 0 : index
    %11 = vector.load %arg4[%c0_9, %c0_10, %c0_11] : memref<2x1x384xf32, #tpu.memory_space<vmem>>, vector<1x1x384xf32>
    %12 = vector.shape_cast %11 : vector<1x1x384xf32> to vector<1x384xf32>
    %13 = vector.broadcast %12 : vector<1x384xf32> to vector<64x384xf32>
    %14 = arith.addf %10, %13 : vector<64x384xf32>
    %15 = vector.shape_cast %14 : vector<64x384xf32> to vector<8x8x384xf32>
    %c0_12 = arith.constant 0 : index
    %c0_13 = arith.constant 0 : index
    %c0_14 = arith.constant 0 : index
    %16 = vector.load %arg9[%c0_12, %c0_13, %c0_14] : memref<8x8x384xf32, #tpu.memory_space<vmem>>, vector<8x8x384xf32>
    tpu.vector_store %arg9[%c0_12, %c0_13, %c0_14], %15 {strides = array<i32>} : memref<8x8x384xf32, #tpu.memory_space<vmem>>, vector<8x8x384xf32>,
    %c1_15 = arith.constant 1 : index
    %c0_16 = arith.constant 0 : index
    %c0_17 = arith.constant 0 : index
    %17 = vector.load %arg2[%c1_15, %c0_16, %c0_17] : memref<2x256x384xbf16, #tpu.memory_space<vmem>>, vector<1x256x384xbf16>
    %18 = vector.shape_cast %17 : vector<1x256x384xbf16> to vector<256x384xbf16>
    %cst_18 = arith.constant dense<0.000000e+00> : vector<64x384xf32>
    %19 = tpu.matmul %7, %18, %cst_18 {dimension_numbers = #tpu.dot_dimension_numbers<[1], [0], [0], [1], [0, 0, 1, 1], [], []>} : vector<64x256xbf16>, vector<256x384xbf16>, vector<64x384xf32> -> vector<64x384xf32>
    %c1_19 = arith.constant 1 : index
    %c0_20 = arith.constant 0 : index
    %c0_21 = arith.constant 0 : index
    %20 = vector.load %arg4[%c1_19, %c0_20, %c0_21] : memref<2x1x384xf32, #tpu.memory_space<vmem>>, vector<1x1x384xf32>
    %21 = vector.shape_cast %20 : vector<1x1x384xf32> to vector<1x384xf32>
    %22 = vector.broadcast %21 : vector<1x384xf32> to vector<64x384xf32>
    %23 = arith.addf %19, %22 : vector<64x384xf32>
    %24 = vector.shape_cast %23 : vector<64x384xf32> to vector<8x8x384xf32>
    %c0_22 = arith.constant 0 : index
    %c0_23 = arith.constant 0 : index
    %c0_24 = arith.constant 0 : index
    %25 = vector.load %arg10[%c0_22, %c0_23, %c0_24] : memref<8x8x384xf32, #tpu.memory_space<vmem>>, vector<8x8x384xf32>
    tpu.vector_store %arg10[%c0_22, %c0_23, %c0_24], %24 {strides = array<i32>} : memref<8x8x384xf32, #tpu.memory_space<vmem>>, vector<8x8x384xf32>,
    %c0_25 = arith.constant 0 : index
    %c0_26 = arith.constant 0 : index
    %c0_27 = arith.constant 0 : index
    %26 = vector.load %arg3[%c0_25, %c0_26, %c0_27] : memref<2x128x384xbf16, #tpu.memory_space<vmem>>, vector<1x128x384xbf16>
    %27 = vector.shape_cast %26 : vector<1x128x384xbf16> to vector<128x384xbf16>
    %c1_28 = arith.constant 1 : index
    %c0_29 = arith.constant 0 : index
    %c0_30 = arith.constant 0 : index
    %28 = vector.load %arg3[%c1_28, %c0_29, %c0_30] : memref<2x128x384xbf16, #tpu.memory_space<vmem>>, vector<1x128x384xbf16>
    %29 = vector.shape_cast %28 : vector<1x128x384xbf16> to vector<128x384xbf16>
    %c0_31 = arith.constant 0 : index
    %c0_32 = arith.constant 0 : index
    %c0_33 = arith.constant 0 : index
    %30 = vector.load %arg5[%c0_31, %c0_32, %c0_33] : memref<2x1x128xf32, #tpu.memory_space<vmem>>, vector<1x1x128xf32>
    %31 = vector.shape_cast %30 : vector<1x1x128xf32> to vector<1x128xf32>
    %c1_34 = arith.constant 1 : index
    %c0_35 = arith.constant 0 : index
    %c0_36 = arith.constant 0 : index
    %32 = vector.load %arg5[%c1_34, %c0_35, %c0_36] : memref<2x1x128xf32, #tpu.memory_space<vmem>>, vector<1x1x128xf32>
    %33 = vector.shape_cast %32 : vector<1x1x128xf32> to vector<1x128xf32>
    %cst_37 = arith.constant 0.000000e+00 : f32
    %34 = vector.broadcast %cst_37 : f32 to vector<8x128xf32>
    %cst_38 = arith.constant 0.000000e+00 : f32
    %35 = vector.broadcast %cst_38 : f32 to vector<8x128xf32>
    %36 = arith.truncf %34 : vector<8x128xf32> to vector<8x128xbf16>
    %cst_39 = arith.constant dense<0.000000e+00> : vector<8x384xf32>
    %37 = tpu.matmul %36, %27, %cst_39 {dimension_numbers = #tpu.dot_dimension_numbers<[1], [0], [0], [1], [0, 0, 1, 1], [], []>} : vector<8x128xbf16>, vector<128x384xbf16>, vector<8x384xf32> -> vector<8x384xf32>
    %38 = arith.truncf %35 : vector<8x128xf32> to vector<8x128xbf16>
    %cst_40 = arith.constant dense<0.000000e+00> : vector<8x384xf32>
    %39 = tpu.matmul %38, %29, %cst_40 {dimension_numbers = #tpu.dot_dimension_numbers<[1], [0], [0], [1], [0, 0, 1, 1], [], []>} : vector<8x128xbf16>, vector<128x384xbf16>, vector<8x384xf32> -> vector<8x384xf32>
    %c0_41 = arith.constant 0 : index
    %c0_42 = arith.constant 0 : index
    %c0_43 = arith.constant 0 : index
    %40 = vector.load %arg9[%c0_41, %c0_42, %c0_43] : memref<8x8x384xf32, #tpu.memory_space<vmem>>, vector<1x8x384xf32>
    %41 = vector.shape_cast %40 : vector<1x8x384xf32> to vector<8x384xf32>
    %42 = vector.extract_strided_slice %41 {offsets = [0, 0], sizes = [8, 128], strides = [1, 1]} : vector<8x384xf32> to vector<8x128xf32>
    %43 = vector.extract_strided_slice %37 {offsets = [0, 0], sizes = [8, 128], strides = [1, 1]} : vector<8x384xf32> to vector<8x128xf32>
    %44 = arith.addf %42, %43 : vector<8x128xf32>
    %45 = arith.negf %44 : vector<8x128xf32>
    %46 = math.exp %45 : vector<8x128xf32>
    %cst_44 = arith.constant 1.000000e+00 : f32
    %47 = vector.broadcast %cst_44 : f32 to vector<8x128xf32>
    %48 = arith.addf %47, %46 : vector<8x128xf32>
    %49 = arith.divf %47, %48 : vector<8x128xf32>
    %50 = vector.extract_strided_slice %41 {offsets = [0, 128], sizes = [8, 128], strides = [1, 1]} : vector<8x384xf32> to vector<8x128xf32>
    %51 = vector.extract_strided_slice %37 {offsets = [0, 128], sizes = [8, 128], strides = [1, 1]} : vector<8x384xf32> to vector<8x128xf32>
    %52 = arith.addf %50, %51 : vector<8x128xf32>
    %53 = arith.negf %52 : vector<8x128xf32>
    %54 = math.exp %53 : vector<8x128xf32>
    %cst_45 = arith.constant 1.000000e+00 : f32
    %55 = vector.broadcast %cst_45 : f32 to vector<8x128xf32>
    %56 = arith.addf %55, %54 : vector<8x128xf32>
    %57 = arith.divf %55, %56 : vector<8x128xf32>
    %58 = vector.extract_strided_slice %41 {offsets = [0, 256], sizes = [8, 128], strides = [1, 1]} : vector<8x384xf32> to vector<8x128xf32>
    %59 = vector.extract_strided_slice %37 {offsets = [0, 256], sizes = [8, 128], strides = [1, 1]} : vector<8x384xf32> to vector<8x128xf32>
    %60 = vector.broadcast %31 : vector<1x128xf32> to vector<8x128xf32>
    %61 = arith.addf %59, %60 : vector<8x128xf32>
    %62 = arith.mulf %49, %61 : vector<8x128xf32>
    %63 = arith.addf %58, %62 : vector<8x128xf32>
    %64 = math.tanh %63 : vector<8x128xf32>
    %cst_46 = arith.constant 1.000000e+00 : f32
    %65 = vector.broadcast %cst_46 : f32 to vector<8x128xf32>
    %66 = arith.subf %65, %57 : vector<8x128xf32>
    %67 = arith.mulf %66, %64 : vector<8x128xf32>
    %68 = arith.mulf %57, %34 : vector<8x128xf32>
    %69 = arith.addf %67, %68 : vector<8x128xf32>
    %c0_47 = arith.constant 0 : index
    %c0_48 = arith.constant 0 : index
    %c0_49 = arith.constant 0 : index
    %70 = vector.load %arg10[%c0_47, %c0_48, %c0_49] : memref<8x8x384xf32, #tpu.memory_space<vmem>>, vector<1x8x384xf32>
    %71 = vector.shape_cast %70 : vector<1x8x384xf32> to vector<8x384xf32>
    %72 = vector.extract_strided_slice %71 {offsets = [0, 0], sizes = [8, 128], strides = [1, 1]} : vector<8x384xf32> to vector<8x128xf32>
    %73 = vector.extract_strided_slice %39 {offsets = [0, 0], sizes = [8, 128], strides = [1, 1]} : vector<8x384xf32> to vector<8x128xf32>
    %74 = arith.addf %72, %73 : vector<8x128xf32>
    %75 = arith.negf %74 : vector<8x128xf32>
    %76 = math.exp %75 : vector<8x128xf32>
    %cst_50 = arith.constant 1.000000e+00 : f32
    %77 = vector.broadcast %cst_50 : f32 to vector<8x128xf32>
    %78 = arith.addf %77, %76 : vector<8x128xf32>
    %79 = arith.divf %77, %78 : vector<8x128xf32>
    %80 = vector.extract_strided_slice %71 {offsets = [0, 128], sizes = [8, 128], strides = [1, 1]} : vector<8x384xf32> to vector<8x128xf32>
    %81 = vector.extract_strided_slice %39 {offsets = [0, 128], sizes = [8, 128], strides = [1, 1]} : vector<8x384xf32> to vector<8x128xf32>
    %82 = arith.addf %80, %81 : vector<8x128xf32>
    %83 = arith.negf %82 : vector<8x128xf32>
    %84 = math.exp %83 : vector<8x128xf32>
    %cst_51 = arith.constant 1.000000e+00 : f32
    %85 = vector.broadcast %cst_51 : f32 to vector<8x128xf32>
    %86 = arith.addf %85, %84 : vector<8x128xf32>
    %87 = arith.divf %85, %86 : vector<8x128xf32>
    %88 = vector.extract_strided_slice %71 {offsets = [0, 256], sizes = [8, 128], strides = [1, 1]} : vector<8x384xf32> to vector<8x128xf32>
    %89 = vector.extract_strided_slice %39 {offsets = [0, 256], sizes = [8, 128], strides = [1, 1]} : vector<8x384xf32> to vector<8x128xf32>
    %90 = vector.broadcast %33 : vector<1x128xf32> to vector<8x128xf32>
    %91 = arith.addf %89, %90 : vector<8x128xf32>
    %92 = arith.mulf %79, %91 : vector<8x128xf32>
    %93 = arith.addf %88, %92 : vector<8x128xf32>
    %94 = math.tanh %93 : vector<8x128xf32>
    %cst_52 = arith.constant 1.000000e+00 : f32
    %95 = vector.broadcast %cst_52 : f32 to vector<8x128xf32>
    %96 = arith.subf %95, %87 : vector<8x128xf32>
    %97 = arith.mulf %96, %94 : vector<8x128xf32>
    %98 = arith.mulf %87, %35 : vector<8x128xf32>
    %99 = arith.addf %97, %98 : vector<8x128xf32>
    %100 = arith.truncf %69 : vector<8x128xf32> to vector<8x128xbf16>
    %cst_53 = arith.constant dense<0.000000e+00> : vector<8x384xf32>
    %101 = tpu.matmul %100, %27, %cst_53 {dimension_numbers = #tpu.dot_dimension_numbers<[1], [0], [0], [1], [0, 0, 1, 1], [], []>} : vector<8x128xbf16>, vector<128x384xbf16>, vector<8x384xf32> -> vector<8x384xf32>
    %102 = arith.truncf %99 : vector<8x128xf32> to vector<8x128xbf16>
    %cst_54 = arith.constant dense<0.000000e+00> : vector<8x384xf32>
    %103 = tpu.matmul %102, %29, %cst_54 {dimension_numbers = #tpu.dot_dimension_numbers<[1], [0], [0], [1], [0, 0, 1, 1], [], []>} : vector<8x128xbf16>, vector<128x384xbf16>, vector<8x384xf32> -> vector<8x384xf32>
    %c1_55 = arith.constant 1 : index
    %c0_56 = arith.constant 0 : index
    %c0_57 = arith.constant 0 : index
    %104 = vector.load %arg9[%c1_55, %c0_56, %c0_57] : memref<8x8x384xf32, #tpu.memory_space<vmem>>, vector<1x8x384xf32>
    %105 = vector.shape_cast %104 : vector<1x8x384xf32> to vector<8x384xf32>
    %106 = vector.extract_strided_slice %105 {offsets = [0, 0], sizes = [8, 128], strides = [1, 1]} : vector<8x384xf32> to vector<8x128xf32>
    %107 = vector.extract_strided_slice %101 {offsets = [0, 0], sizes = [8, 128], strides = [1, 1]} : vector<8x384xf32> to vector<8x128xf32>
    %108 = arith.addf %106, %107 : vector<8x128xf32>
    %109 = arith.negf %108 : vector<8x128xf32>
    %110 = math.exp %109 : vector<8x128xf32>
    %cst_58 = arith.constant 1.000000e+00 : f32
    %111 = vector.broadcast %cst_58 : f32 to vector<8x128xf32>
    %112 = arith.addf %111, %110 : vector<8x128xf32>
    %113 = arith.divf %111, %112 : vector<8x128xf32>
    %114 = vector.extract_strided_slice %105 {offsets = [0, 128], sizes = [8, 128], strides = [1, 1]} : vector<8x384xf32> to vector<8x128xf32>
    %115 = vector.extract_strided_slice %101 {offsets = [0, 128], sizes = [8, 128], strides = [1, 1]} : vector<8x384xf32> to vector<8x128xf32>
    %116 = arith.addf %114, %115 : vector<8x128xf32>
    %117 = arith.negf %116 : vector<8x128xf32>
    %118 = math.exp %117 : vector<8x128xf32>
    %cst_59 = arith.constant 1.000000e+00 : f32
    %119 = vector.broadcast %cst_59 : f32 to vector<8x128xf32>
    %120 = arith.addf %119, %118 : vector<8x128xf32>
    %121 = arith.divf %119, %120 : vector<8x128xf32>
    %122 = vector.extract_strided_slice %105 {offsets = [0, 256], sizes = [8, 128], strides = [1, 1]} : vector<8x384xf32> to vector<8x128xf32>
    %123 = vector.extract_strided_slice %101 {offsets = [0, 256], sizes = [8, 128], strides = [1, 1]} : vector<8x384xf32> to vector<8x128xf32>
    %124 = vector.broadcast %31 : vector<1x128xf32> to vector<8x128xf32>
    %125 = arith.addf %123, %124 : vector<8x128xf32>
    %126 = arith.mulf %113, %125 : vector<8x128xf32>
    %127 = arith.addf %122, %126 : vector<8x128xf32>
    %128 = math.tanh %127 : vector<8x128xf32>
    %cst_60 = arith.constant 1.000000e+00 : f32
    %129 = vector.broadcast %cst_60 : f32 to vector<8x128xf32>
    %130 = arith.subf %129, %121 : vector<8x128xf32>
    %131 = arith.mulf %130, %128 : vector<8x128xf32>
    %132 = arith.mulf %121, %69 : vector<8x128xf32>
    %133 = arith.addf %131, %132 : vector<8x128xf32>
    %c1_61 = arith.constant 1 : index
    %c0_62 = arith.constant 0 : index
    %c0_63 = arith.constant 0 : index
    %134 = vector.load %arg10[%c1_61, %c0_62, %c0_63] : memref<8x8x384xf32, #tpu.memory_space<vmem>>, vector<1x8x384xf32>
    %135 = vector.shape_cast %134 : vector<1x8x384xf32> to vector<8x384xf32>
    %136 = vector.extract_strided_slice %135 {offsets = [0, 0], sizes = [8, 128], strides = [1, 1]} : vector<8x384xf32> to vector<8x128xf32>
    %137 = vector.extract_strided_slice %103 {offsets = [0, 0], sizes = [8, 128], strides = [1, 1]} : vector<8x384xf32> to vector<8x128xf32>
    %138 = arith.addf %136, %137 : vector<8x128xf32>
    %139 = arith.negf %138 : vector<8x128xf32>
    %140 = math.exp %139 : vector<8x128xf32>
    %cst_64 = arith.constant 1.000000e+00 : f32
    %141 = vector.broadcast %cst_64 : f32 to vector<8x128xf32>
    %142 = arith.addf %141, %140 : vector<8x128xf32>
    %143 = arith.divf %141, %142 : vector<8x128xf32>
    %144 = vector.extract_strided_slice %135 {offsets = [0, 128], sizes = [8, 128], strides = [1, 1]} : vector<8x384xf32> to vector<8x128xf32>
    %145 = vector.extract_strided_slice %103 {offsets = [0, 128], sizes = [8, 128], strides = [1, 1]} : vector<8x384xf32> to vector<8x128xf32>
    %146 = arith.addf %144, %145 : vector<8x128xf32>
    %147 = arith.negf %146 : vector<8x128xf32>
    %148 = math.exp %147 : vector<8x128xf32>
    %cst_65 = arith.constant 1.000000e+00 : f32
    %149 = vector.broadcast %cst_65 : f32 to vector<8x128xf32>
    %150 = arith.addf %149, %148 : vector<8x128xf32>
    %151 = arith.divf %149, %150 : vector<8x128xf32>
    %152 = vector.extract_strided_slice %135 {offsets = [0, 256], sizes = [8, 128], strides = [1, 1]} : vector<8x384xf32> to vector<8x128xf32>
    %153 = vector.extract_strided_slice %103 {offsets = [0, 256], sizes = [8, 128], strides = [1, 1]} : vector<8x384xf32> to vector<8x128xf32>
    %154 = vector.broadcast %33 : vector<1x128xf32> to vector<8x128xf32>
    %155 = arith.addf %153, %154 : vector<8x128xf32>
    %156 = arith.mulf %143, %155 : vector<8x128xf32>
    %157 = arith.addf %152, %156 : vector<8x128xf32>
    %158 = math.tanh %157 : vector<8x128xf32>
    %cst_66 = arith.constant 1.000000e+00 : f32
    %159 = vector.broadcast %cst_66 : f32 to vector<8x128xf32>
    %160 = arith.subf %159, %151 : vector<8x128xf32>
    %161 = arith.mulf %160, %158 : vector<8x128xf32>
    %162 = arith.mulf %151, %99 : vector<8x128xf32>
    %163 = arith.addf %161, %162 : vector<8x128xf32>
    %164 = arith.truncf %133 : vector<8x128xf32> to vector<8x128xbf16>
    %cst_67 = arith.constant dense<0.000000e+00> : vector<8x384xf32>
    %165 = tpu.matmul %164, %27, %cst_67 {dimension_numbers = #tpu.dot_dimension_numbers<[1], [0], [0], [1], [0, 0, 1, 1], [], []>} : vector<8x128xbf16>, vector<128x384xbf16>, vector<8x384xf32> -> vector<8x384xf32>
    %166 = arith.truncf %163 : vector<8x128xf32> to vector<8x128xbf16>
    %cst_68 = arith.constant dense<0.000000e+00> : vector<8x384xf32>
    %167 = tpu.matmul %166, %29, %cst_68 {dimension_numbers = #tpu.dot_dimension_numbers<[1], [0], [0], [1], [0, 0, 1, 1], [], []>} : vector<8x128xbf16>, vector<128x384xbf16>, vector<8x384xf32> -> vector<8x384xf32>
    %c2 = arith.constant 2 : index
    %c0_69 = arith.constant 0 : index
    %c0_70 = arith.constant 0 : index
    %168 = vector.load %arg9[%c2, %c0_69, %c0_70] : memref<8x8x384xf32, #tpu.memory_space<vmem>>, vector<1x8x384xf32>
    %169 = vector.shape_cast %168 : vector<1x8x384xf32> to vector<8x384xf32>
    %170 = vector.extract_strided_slice %169 {offsets = [0, 0], sizes = [8, 128], strides = [1, 1]} : vector<8x384xf32> to vector<8x128xf32>
    %171 = vector.extract_strided_slice %165 {offsets = [0, 0], sizes = [8, 128], strides = [1, 1]} : vector<8x384xf32> to vector<8x128xf32>
    %172 = arith.addf %170, %171 : vector<8x128xf32>
    %173 = arith.negf %172 : vector<8x128xf32>
    %174 = math.exp %173 : vector<8x128xf32>
    %cst_71 = arith.constant 1.000000e+00 : f32
    %175 = vector.broadcast %cst_71 : f32 to vector<8x128xf32>
    %176 = arith.addf %175, %174 : vector<8x128xf32>
    %177 = arith.divf %175, %176 : vector<8x128xf32>
    %178 = vector.extract_strided_slice %169 {offsets = [0, 128], sizes = [8, 128], strides = [1, 1]} : vector<8x384xf32> to vector<8x128xf32>
    %179 = vector.extract_strided_slice %165 {offsets = [0, 128], sizes = [8, 128], strides = [1, 1]} : vector<8x384xf32> to vector<8x128xf32>
    %180 = arith.addf %178, %179 : vector<8x128xf32>
    %181 = arith.negf %180 : vector<8x128xf32>
    %182 = math.exp %181 : vector<8x128xf32>
    %cst_72 = arith.constant 1.000000e+00 : f32
    %183 = vector.broadcast %cst_72 : f32 to vector<8x128xf32>
    %184 = arith.addf %183, %182 : vector<8x128xf32>
    %185 = arith.divf %183, %184 : vector<8x128xf32>
    %186 = vector.extract_strided_slice %169 {offsets = [0, 256], sizes = [8, 128], strides = [1, 1]} : vector<8x384xf32> to vector<8x128xf32>
    %187 = vector.extract_strided_slice %165 {offsets = [0, 256], sizes = [8, 128], strides = [1, 1]} : vector<8x384xf32> to vector<8x128xf32>
    %188 = vector.broadcast %31 : vector<1x128xf32> to vector<8x128xf32>
    %189 = arith.addf %187, %188 : vector<8x128xf32>
    %190 = arith.mulf %177, %189 : vector<8x128xf32>
    %191 = arith.addf %186, %190 : vector<8x128xf32>
    %192 = math.tanh %191 : vector<8x128xf32>
    %cst_73 = arith.constant 1.000000e+00 : f32
    %193 = vector.broadcast %cst_73 : f32 to vector<8x128xf32>
    %194 = arith.subf %193, %185 : vector<8x128xf32>
    %195 = arith.mulf %194, %192 : vector<8x128xf32>
    %196 = arith.mulf %185, %133 : vector<8x128xf32>
    %197 = arith.addf %195, %196 : vector<8x128xf32>
    %c2_74 = arith.constant 2 : index
    %c0_75 = arith.constant 0 : index
    %c0_76 = arith.constant 0 : index
    %198 = vector.load %arg10[%c2_74, %c0_75, %c0_76] : memref<8x8x384xf32, #tpu.memory_space<vmem>>, vector<1x8x384xf32>
    %199 = vector.shape_cast %198 : vector<1x8x384xf32> to vector<8x384xf32>
    %200 = vector.extract_strided_slice %199 {offsets = [0, 0], sizes = [8, 128], strides = [1, 1]} : vector<8x384xf32> to vector<8x128xf32>
    %201 = vector.extract_strided_slice %167 {offsets = [0, 0], sizes = [8, 128], strides = [1, 1]} : vector<8x384xf32> to vector<8x128xf32>
    %202 = arith.addf %200, %201 : vector<8x128xf32>
    %203 = arith.negf %202 : vector<8x128xf32>
    %204 = math.exp %203 : vector<8x128xf32>
    %cst_77 = arith.constant 1.000000e+00 : f32
    %205 = vector.broadcast %cst_77 : f32 to vector<8x128xf32>
    %206 = arith.addf %205, %204 : vector<8x128xf32>
    %207 = arith.divf %205, %206 : vector<8x128xf32>
    %208 = vector.extract_strided_slice %199 {offsets = [0, 128], sizes = [8, 128], strides = [1, 1]} : vector<8x384xf32> to vector<8x128xf32>
    %209 = vector.extract_strided_slice %167 {offsets = [0, 128], sizes = [8, 128], strides = [1, 1]} : vector<8x384xf32> to vector<8x128xf32>
    %210 = arith.addf %208, %209 : vector<8x128xf32>
    %211 = arith.negf %210 : vector<8x128xf32>
    %212 = math.exp %211 : vector<8x128xf32>
    %cst_78 = arith.constant 1.000000e+00 : f32
    %213 = vector.broadcast %cst_78 : f32 to vector<8x128xf32>
    %214 = arith.addf %213, %212 : vector<8x128xf32>
    %215 = arith.divf %213, %214 : vector<8x128xf32>
    %216 = vector.extract_strided_slice %199 {offsets = [0, 256], sizes = [8, 128], strides = [1, 1]} : vector<8x384xf32> to vector<8x128xf32>
    %217 = vector.extract_strided_slice %167 {offsets = [0, 256], sizes = [8, 128], strides = [1, 1]} : vector<8x384xf32> to vector<8x128xf32>
    %218 = vector.broadcast %33 : vector<1x128xf32> to vector<8x128xf32>
    %219 = arith.addf %217, %218 : vector<8x128xf32>
    %220 = arith.mulf %207, %219 : vector<8x128xf32>
    %221 = arith.addf %216, %220 : vector<8x128xf32>
    %222 = math.tanh %221 : vector<8x128xf32>
    %cst_79 = arith.constant 1.000000e+00 : f32
    %223 = vector.broadcast %cst_79 : f32 to vector<8x128xf32>
    %224 = arith.subf %223, %215 : vector<8x128xf32>
    %225 = arith.mulf %224, %222 : vector<8x128xf32>
    %226 = arith.mulf %215, %163 : vector<8x128xf32>
    %227 = arith.addf %225, %226 : vector<8x128xf32>
    %228 = arith.truncf %197 : vector<8x128xf32> to vector<8x128xbf16>
    %cst_80 = arith.constant dense<0.000000e+00> : vector<8x384xf32>
    %229 = tpu.matmul %228, %27, %cst_80 {dimension_numbers = #tpu.dot_dimension_numbers<[1], [0], [0], [1], [0, 0, 1, 1], [], []>} : vector<8x128xbf16>, vector<128x384xbf16>, vector<8x384xf32> -> vector<8x384xf32>
    %230 = arith.truncf %227 : vector<8x128xf32> to vector<8x128xbf16>
    %cst_81 = arith.constant dense<0.000000e+00> : vector<8x384xf32>
    %231 = tpu.matmul %230, %29, %cst_81 {dimension_numbers = #tpu.dot_dimension_numbers<[1], [0], [0], [1], [0, 0, 1, 1], [], []>} : vector<8x128xbf16>, vector<128x384xbf16>, vector<8x384xf32> -> vector<8x384xf32>
    %c3 = arith.constant 3 : index
    %c0_82 = arith.constant 0 : index
    %c0_83 = arith.constant 0 : index
    %232 = vector.load %arg9[%c3, %c0_82, %c0_83] : memref<8x8x384xf32, #tpu.memory_space<vmem>>, vector<1x8x384xf32>
    %233 = vector.shape_cast %232 : vector<1x8x384xf32> to vector<8x384xf32>
    %234 = vector.extract_strided_slice %233 {offsets = [0, 0], sizes = [8, 128], strides = [1, 1]} : vector<8x384xf32> to vector<8x128xf32>
    %235 = vector.extract_strided_slice %229 {offsets = [0, 0], sizes = [8, 128], strides = [1, 1]} : vector<8x384xf32> to vector<8x128xf32>
    %236 = arith.addf %234, %235 : vector<8x128xf32>
    %237 = arith.negf %236 : vector<8x128xf32>
    %238 = math.exp %237 : vector<8x128xf32>
    %cst_84 = arith.constant 1.000000e+00 : f32
    %239 = vector.broadcast %cst_84 : f32 to vector<8x128xf32>
    %240 = arith.addf %239, %238 : vector<8x128xf32>
    %241 = arith.divf %239, %240 : vector<8x128xf32>
    %242 = vector.extract_strided_slice %233 {offsets = [0, 128], sizes = [8, 128], strides = [1, 1]} : vector<8x384xf32> to vector<8x128xf32>
    %243 = vector.extract_strided_slice %229 {offsets = [0, 128], sizes = [8, 128], strides = [1, 1]} : vector<8x384xf32> to vector<8x128xf32>
    %244 = arith.addf %242, %243 : vector<8x128xf32>
    %245 = arith.negf %244 : vector<8x128xf32>
    %246 = math.exp %245 : vector<8x128xf32>
    %cst_85 = arith.constant 1.000000e+00 : f32
    %247 = vector.broadcast %cst_85 : f32 to vector<8x128xf32>
    %248 = arith.addf %247, %246 : vector<8x128xf32>
    %249 = arith.divf %247, %248 : vector<8x128xf32>
    %250 = vector.extract_strided_slice %233 {offsets = [0, 256], sizes = [8, 128], strides = [1, 1]} : vector<8x384xf32> to vector<8x128xf32>
    %251 = vector.extract_strided_slice %229 {offsets = [0, 256], sizes = [8, 128], strides = [1, 1]} : vector<8x384xf32> to vector<8x128xf32>
    %252 = vector.broadcast %31 : vector<1x128xf32> to vector<8x128xf32>
    %253 = arith.addf %251, %252 : vector<8x128xf32>
    %254 = arith.mulf %241, %253 : vector<8x128xf32>
    %255 = arith.addf %250, %254 : vector<8x128xf32>
    %256 = math.tanh %255 : vector<8x128xf32>
    %cst_86 = arith.constant 1.000000e+00 : f32
    %257 = vector.broadcast %cst_86 : f32 to vector<8x128xf32>
    %258 = arith.subf %257, %249 : vector<8x128xf32>
    %259 = arith.mulf %258, %256 : vector<8x128xf32>
    %260 = arith.mulf %249, %197 : vector<8x128xf32>
    %261 = arith.addf %259, %260 : vector<8x128xf32>
    %c3_87 = arith.constant 3 : index
    %c0_88 = arith.constant 0 : index
    %c0_89 = arith.constant 0 : index
    %262 = vector.load %arg10[%c3_87, %c0_88, %c0_89] : memref<8x8x384xf32, #tpu.memory_space<vmem>>, vector<1x8x384xf32>
    %263 = vector.shape_cast %262 : vector<1x8x384xf32> to vector<8x384xf32>
    %264 = vector.extract_strided_slice %263 {offsets = [0, 0], sizes = [8, 128], strides = [1, 1]} : vector<8x384xf32> to vector<8x128xf32>
    %265 = vector.extract_strided_slice %231 {offsets = [0, 0], sizes = [8, 128], strides = [1, 1]} : vector<8x384xf32> to vector<8x128xf32>
    %266 = arith.addf %264, %265 : vector<8x128xf32>
    %267 = arith.negf %266 : vector<8x128xf32>
    %268 = math.exp %267 : vector<8x128xf32>
    %cst_90 = arith.constant 1.000000e+00 : f32
    %269 = vector.broadcast %cst_90 : f32 to vector<8x128xf32>
    %270 = arith.addf %269, %268 : vector<8x128xf32>
    %271 = arith.divf %269, %270 : vector<8x128xf32>
    %272 = vector.extract_strided_slice %263 {offsets = [0, 128], sizes = [8, 128], strides = [1, 1]} : vector<8x384xf32> to vector<8x128xf32>
    %273 = vector.extract_strided_slice %231 {offsets = [0, 128], sizes = [8, 128], strides = [1, 1]} : vector<8x384xf32> to vector<8x128xf32>
    %274 = arith.addf %272, %273 : vector<8x128xf32>
    %275 = arith.negf %274 : vector<8x128xf32>
    %276 = math.exp %275 : vector<8x128xf32>
    %cst_91 = arith.constant 1.000000e+00 : f32
    %277 = vector.broadcast %cst_91 : f32 to vector<8x128xf32>
    %278 = arith.addf %277, %276 : vector<8x128xf32>
    %279 = arith.divf %277, %278 : vector<8x128xf32>
    %280 = vector.extract_strided_slice %263 {offsets = [0, 256], sizes = [8, 128], strides = [1, 1]} : vector<8x384xf32> to vector<8x128xf32>
    %281 = vector.extract_strided_slice %231 {offsets = [0, 256], sizes = [8, 128], strides = [1, 1]} : vector<8x384xf32> to vector<8x128xf32>
    %282 = vector.broadcast %33 : vector<1x128xf32> to vector<8x128xf32>
    %283 = arith.addf %281, %282 : vector<8x128xf32>
    %284 = arith.mulf %271, %283 : vector<8x128xf32>
    %285 = arith.addf %280, %284 : vector<8x128xf32>
    %286 = math.tanh %285 : vector<8x128xf32>
    %cst_92 = arith.constant 1.000000e+00 : f32
    %287 = vector.broadcast %cst_92 : f32 to vector<8x128xf32>
    %288 = arith.subf %287, %279 : vector<8x128xf32>
    %289 = arith.mulf %288, %286 : vector<8x128xf32>
    %290 = arith.mulf %279, %227 : vector<8x128xf32>
    %291 = arith.addf %289, %290 : vector<8x128xf32>
    %292 = arith.truncf %261 : vector<8x128xf32> to vector<8x128xbf16>
    %cst_93 = arith.constant dense<0.000000e+00> : vector<8x384xf32>
    %293 = tpu.matmul %292, %27, %cst_93 {dimension_numbers = #tpu.dot_dimension_numbers<[1], [0], [0], [1], [0, 0, 1, 1], [], []>} : vector<8x128xbf16>, vector<128x384xbf16>, vector<8x384xf32> -> vector<8x384xf32>
    %294 = arith.truncf %291 : vector<8x128xf32> to vector<8x128xbf16>
    %cst_94 = arith.constant dense<0.000000e+00> : vector<8x384xf32>
    %295 = tpu.matmul %294, %29, %cst_94 {dimension_numbers = #tpu.dot_dimension_numbers<[1], [0], [0], [1], [0, 0, 1, 1], [], []>} : vector<8x128xbf16>, vector<128x384xbf16>, vector<8x384xf32> -> vector<8x384xf32>
    %c4 = arith.constant 4 : index
    %c0_95 = arith.constant 0 : index
    %c0_96 = arith.constant 0 : index
    %296 = vector.load %arg9[%c4, %c0_95, %c0_96] : memref<8x8x384xf32, #tpu.memory_space<vmem>>, vector<1x8x384xf32>
    %297 = vector.shape_cast %296 : vector<1x8x384xf32> to vector<8x384xf32>
    %298 = vector.extract_strided_slice %297 {offsets = [0, 0], sizes = [8, 128], strides = [1, 1]} : vector<8x384xf32> to vector<8x128xf32>
    %299 = vector.extract_strided_slice %293 {offsets = [0, 0], sizes = [8, 128], strides = [1, 1]} : vector<8x384xf32> to vector<8x128xf32>
    %300 = arith.addf %298, %299 : vector<8x128xf32>
    %301 = arith.negf %300 : vector<8x128xf32>
    %302 = math.exp %301 : vector<8x128xf32>
    %cst_97 = arith.constant 1.000000e+00 : f32
    %303 = vector.broadcast %cst_97 : f32 to vector<8x128xf32>
    %304 = arith.addf %303, %302 : vector<8x128xf32>
    %305 = arith.divf %303, %304 : vector<8x128xf32>
    %306 = vector.extract_strided_slice %297 {offsets = [0, 128], sizes = [8, 128], strides = [1, 1]} : vector<8x384xf32> to vector<8x128xf32>
    %307 = vector.extract_strided_slice %293 {offsets = [0, 128], sizes = [8, 128], strides = [1, 1]} : vector<8x384xf32> to vector<8x128xf32>
    %308 = arith.addf %306, %307 : vector<8x128xf32>
    %309 = arith.negf %308 : vector<8x128xf32>
    %310 = math.exp %309 : vector<8x128xf32>
    %cst_98 = arith.constant 1.000000e+00 : f32
    %311 = vector.broadcast %cst_98 : f32 to vector<8x128xf32>
    %312 = arith.addf %311, %310 : vector<8x128xf32>
    %313 = arith.divf %311, %312 : vector<8x128xf32>
    %314 = vector.extract_strided_slice %297 {offsets = [0, 256], sizes = [8, 128], strides = [1, 1]} : vector<8x384xf32> to vector<8x128xf32>
    %315 = vector.extract_strided_slice %293 {offsets = [0, 256], sizes = [8, 128], strides = [1, 1]} : vector<8x384xf32> to vector<8x128xf32>
    %316 = vector.broadcast %31 : vector<1x128xf32> to vector<8x128xf32>
    %317 = arith.addf %315, %316 : vector<8x128xf32>
    %318 = arith.mulf %305, %317 : vector<8x128xf32>
    %319 = arith.addf %314, %318 : vector<8x128xf32>
    %320 = math.tanh %319 : vector<8x128xf32>
    %cst_99 = arith.constant 1.000000e+00 : f32
    %321 = vector.broadcast %cst_99 : f32 to vector<8x128xf32>
    %322 = arith.subf %321, %313 : vector<8x128xf32>
    %323 = arith.mulf %322, %320 : vector<8x128xf32>
    %324 = arith.mulf %313, %261 : vector<8x128xf32>
    %325 = arith.addf %323, %324 : vector<8x128xf32>
    %c4_100 = arith.constant 4 : index
    %c0_101 = arith.constant 0 : index
    %c0_102 = arith.constant 0 : index
    %326 = vector.load %arg10[%c4_100, %c0_101, %c0_102] : memref<8x8x384xf32, #tpu.memory_space<vmem>>, vector<1x8x384xf32>
    %327 = vector.shape_cast %326 : vector<1x8x384xf32> to vector<8x384xf32>
    %328 = vector.extract_strided_slice %327 {offsets = [0, 0], sizes = [8, 128], strides = [1, 1]} : vector<8x384xf32> to vector<8x128xf32>
    %329 = vector.extract_strided_slice %295 {offsets = [0, 0], sizes = [8, 128], strides = [1, 1]} : vector<8x384xf32> to vector<8x128xf32>
    %330 = arith.addf %328, %329 : vector<8x128xf32>
    %331 = arith.negf %330 : vector<8x128xf32>
    %332 = math.exp %331 : vector<8x128xf32>
    %cst_103 = arith.constant 1.000000e+00 : f32
    %333 = vector.broadcast %cst_103 : f32 to vector<8x128xf32>
    %334 = arith.addf %333, %332 : vector<8x128xf32>
    %335 = arith.divf %333, %334 : vector<8x128xf32>
    %336 = vector.extract_strided_slice %327 {offsets = [0, 128], sizes = [8, 128], strides = [1, 1]} : vector<8x384xf32> to vector<8x128xf32>
    %337 = vector.extract_strided_slice %295 {offsets = [0, 128], sizes = [8, 128], strides = [1, 1]} : vector<8x384xf32> to vector<8x128xf32>
    %338 = arith.addf %336, %337 : vector<8x128xf32>
    %339 = arith.negf %338 : vector<8x128xf32>
    %340 = math.exp %339 : vector<8x128xf32>
    %cst_104 = arith.constant 1.000000e+00 : f32
    %341 = vector.broadcast %cst_104 : f32 to vector<8x128xf32>
    %342 = arith.addf %341, %340 : vector<8x128xf32>
    %343 = arith.divf %341, %342 : vector<8x128xf32>
    %344 = vector.extract_strided_slice %327 {offsets = [0, 256], sizes = [8, 128], strides = [1, 1]} : vector<8x384xf32> to vector<8x128xf32>
    %345 = vector.extract_strided_slice %295 {offsets = [0, 256], sizes = [8, 128], strides = [1, 1]} : vector<8x384xf32> to vector<8x128xf32>
    %346 = vector.broadcast %33 : vector<1x128xf32> to vector<8x128xf32>
    %347 = arith.addf %345, %346 : vector<8x128xf32>
    %348 = arith.mulf %335, %347 : vector<8x128xf32>
    %349 = arith.addf %344, %348 : vector<8x128xf32>
    %350 = math.tanh %349 : vector<8x128xf32>
    %cst_105 = arith.constant 1.000000e+00 : f32
    %351 = vector.broadcast %cst_105 : f32 to vector<8x128xf32>
    %352 = arith.subf %351, %343 : vector<8x128xf32>
    %353 = arith.mulf %352, %350 : vector<8x128xf32>
    %354 = arith.mulf %343, %291 : vector<8x128xf32>
    %355 = arith.addf %353, %354 : vector<8x128xf32>
    %356 = arith.truncf %325 : vector<8x128xf32> to vector<8x128xbf16>
    %cst_106 = arith.constant dense<0.000000e+00> : vector<8x384xf32>
    %357 = tpu.matmul %356, %27, %cst_106 {dimension_numbers = #tpu.dot_dimension_numbers<[1], [0], [0], [1], [0, 0, 1, 1], [], []>} : vector<8x128xbf16>, vector<128x384xbf16>, vector<8x384xf32> -> vector<8x384xf32>
    %358 = arith.truncf %355 : vector<8x128xf32> to vector<8x128xbf16>
    %cst_107 = arith.constant dense<0.000000e+00> : vector<8x384xf32>
    %359 = tpu.matmul %358, %29, %cst_107 {dimension_numbers = #tpu.dot_dimension_numbers<[1], [0], [0], [1], [0, 0, 1, 1], [], []>} : vector<8x128xbf16>, vector<128x384xbf16>, vector<8x384xf32> -> vector<8x384xf32>
    %c5 = arith.constant 5 : index
    %c0_108 = arith.constant 0 : index
    %c0_109 = arith.constant 0 : index
    %360 = vector.load %arg9[%c5, %c0_108, %c0_109] : memref<8x8x384xf32, #tpu.memory_space<vmem>>, vector<1x8x384xf32>
    %361 = vector.shape_cast %360 : vector<1x8x384xf32> to vector<8x384xf32>
    %362 = vector.extract_strided_slice %361 {offsets = [0, 0], sizes = [8, 128], strides = [1, 1]} : vector<8x384xf32> to vector<8x128xf32>
    %363 = vector.extract_strided_slice %357 {offsets = [0, 0], sizes = [8, 128], strides = [1, 1]} : vector<8x384xf32> to vector<8x128xf32>
    %364 = arith.addf %362, %363 : vector<8x128xf32>
    %365 = arith.negf %364 : vector<8x128xf32>
    %366 = math.exp %365 : vector<8x128xf32>
    %cst_110 = arith.constant 1.000000e+00 : f32
    %367 = vector.broadcast %cst_110 : f32 to vector<8x128xf32>
    %368 = arith.addf %367, %366 : vector<8x128xf32>
    %369 = arith.divf %367, %368 : vector<8x128xf32>
    %370 = vector.extract_strided_slice %361 {offsets = [0, 128], sizes = [8, 128], strides = [1, 1]} : vector<8x384xf32> to vector<8x128xf32>
    %371 = vector.extract_strided_slice %357 {offsets = [0, 128], sizes = [8, 128], strides = [1, 1]} : vector<8x384xf32> to vector<8x128xf32>
    %372 = arith.addf %370, %371 : vector<8x128xf32>
    %373 = arith.negf %372 : vector<8x128xf32>
    %374 = math.exp %373 : vector<8x128xf32>
    %cst_111 = arith.constant 1.000000e+00 : f32
    %375 = vector.broadcast %cst_111 : f32 to vector<8x128xf32>
    %376 = arith.addf %375, %374 : vector<8x128xf32>
    %377 = arith.divf %375, %376 : vector<8x128xf32>
    %378 = vector.extract_strided_slice %361 {offsets = [0, 256], sizes = [8, 128], strides = [1, 1]} : vector<8x384xf32> to vector<8x128xf32>
    %379 = vector.extract_strided_slice %357 {offsets = [0, 256], sizes = [8, 128], strides = [1, 1]} : vector<8x384xf32> to vector<8x128xf32>
    %380 = vector.broadcast %31 : vector<1x128xf32> to vector<8x128xf32>
    %381 = arith.addf %379, %380 : vector<8x128xf32>
    %382 = arith.mulf %369, %381 : vector<8x128xf32>
    %383 = arith.addf %378, %382 : vector<8x128xf32>
    %384 = math.tanh %383 : vector<8x128xf32>
    %cst_112 = arith.constant 1.000000e+00 : f32
    %385 = vector.broadcast %cst_112 : f32 to vector<8x128xf32>
    %386 = arith.subf %385, %377 : vector<8x128xf32>
    %387 = arith.mulf %386, %384 : vector<8x128xf32>
    %388 = arith.mulf %377, %325 : vector<8x128xf32>
    %389 = arith.addf %387, %388 : vector<8x128xf32>
    %c5_113 = arith.constant 5 : index
    %c0_114 = arith.constant 0 : index
    %c0_115 = arith.constant 0 : index
    %390 = vector.load %arg10[%c5_113, %c0_114, %c0_115] : memref<8x8x384xf32, #tpu.memory_space<vmem>>, vector<1x8x384xf32>
    %391 = vector.shape_cast %390 : vector<1x8x384xf32> to vector<8x384xf32>
    %392 = vector.extract_strided_slice %391 {offsets = [0, 0], sizes = [8, 128], strides = [1, 1]} : vector<8x384xf32> to vector<8x128xf32>
    %393 = vector.extract_strided_slice %359 {offsets = [0, 0], sizes = [8, 128], strides = [1, 1]} : vector<8x384xf32> to vector<8x128xf32>
    %394 = arith.addf %392, %393 : vector<8x128xf32>
    %395 = arith.negf %394 : vector<8x128xf32>
    %396 = math.exp %395 : vector<8x128xf32>
    %cst_116 = arith.constant 1.000000e+00 : f32
    %397 = vector.broadcast %cst_116 : f32 to vector<8x128xf32>
    %398 = arith.addf %397, %396 : vector<8x128xf32>
    %399 = arith.divf %397, %398 : vector<8x128xf32>
    %400 = vector.extract_strided_slice %391 {offsets = [0, 128], sizes = [8, 128], strides = [1, 1]} : vector<8x384xf32> to vector<8x128xf32>
    %401 = vector.extract_strided_slice %359 {offsets = [0, 128], sizes = [8, 128], strides = [1, 1]} : vector<8x384xf32> to vector<8x128xf32>
    %402 = arith.addf %400, %401 : vector<8x128xf32>
    %403 = arith.negf %402 : vector<8x128xf32>
    %404 = math.exp %403 : vector<8x128xf32>
    %cst_117 = arith.constant 1.000000e+00 : f32
    %405 = vector.broadcast %cst_117 : f32 to vector<8x128xf32>
    %406 = arith.addf %405, %404 : vector<8x128xf32>
    %407 = arith.divf %405, %406 : vector<8x128xf32>
    %408 = vector.extract_strided_slice %391 {offsets = [0, 256], sizes = [8, 128], strides = [1, 1]} : vector<8x384xf32> to vector<8x128xf32>
    %409 = vector.extract_strided_slice %359 {offsets = [0, 256], sizes = [8, 128], strides = [1, 1]} : vector<8x384xf32> to vector<8x128xf32>
    %410 = vector.broadcast %33 : vector<1x128xf32> to vector<8x128xf32>
    %411 = arith.addf %409, %410 : vector<8x128xf32>
    %412 = arith.mulf %399, %411 : vector<8x128xf32>
    %413 = arith.addf %408, %412 : vector<8x128xf32>
    %414 = math.tanh %413 : vector<8x128xf32>
    %cst_118 = arith.constant 1.000000e+00 : f32
    %415 = vector.broadcast %cst_118 : f32 to vector<8x128xf32>
    %416 = arith.subf %415, %407 : vector<8x128xf32>
    %417 = arith.mulf %416, %414 : vector<8x128xf32>
    %418 = arith.mulf %407, %355 : vector<8x128xf32>
    %419 = arith.addf %417, %418 : vector<8x128xf32>
    %420 = arith.truncf %389 : vector<8x128xf32> to vector<8x128xbf16>
    %cst_119 = arith.constant dense<0.000000e+00> : vector<8x384xf32>
    %421 = tpu.matmul %420, %27, %cst_119 {dimension_numbers = #tpu.dot_dimension_numbers<[1], [0], [0], [1], [0, 0, 1, 1], [], []>} : vector<8x128xbf16>, vector<128x384xbf16>, vector<8x384xf32> -> vector<8x384xf32>
    %422 = arith.truncf %419 : vector<8x128xf32> to vector<8x128xbf16>
    %cst_120 = arith.constant dense<0.000000e+00> : vector<8x384xf32>
    %423 = tpu.matmul %422, %29, %cst_120 {dimension_numbers = #tpu.dot_dimension_numbers<[1], [0], [0], [1], [0, 0, 1, 1], [], []>} : vector<8x128xbf16>, vector<128x384xbf16>, vector<8x384xf32> -> vector<8x384xf32>
    %c6 = arith.constant 6 : index
    %c0_121 = arith.constant 0 : index
    %c0_122 = arith.constant 0 : index
    %424 = vector.load %arg9[%c6, %c0_121, %c0_122] : memref<8x8x384xf32, #tpu.memory_space<vmem>>, vector<1x8x384xf32>
    %425 = vector.shape_cast %424 : vector<1x8x384xf32> to vector<8x384xf32>
    %426 = vector.extract_strided_slice %425 {offsets = [0, 0], sizes = [8, 128], strides = [1, 1]} : vector<8x384xf32> to vector<8x128xf32>
    %427 = vector.extract_strided_slice %421 {offsets = [0, 0], sizes = [8, 128], strides = [1, 1]} : vector<8x384xf32> to vector<8x128xf32>
    %428 = arith.addf %426, %427 : vector<8x128xf32>
    %429 = arith.negf %428 : vector<8x128xf32>
    %430 = math.exp %429 : vector<8x128xf32>
    %cst_123 = arith.constant 1.000000e+00 : f32
    %431 = vector.broadcast %cst_123 : f32 to vector<8x128xf32>
    %432 = arith.addf %431, %430 : vector<8x128xf32>
    %433 = arith.divf %431, %432 : vector<8x128xf32>
    %434 = vector.extract_strided_slice %425 {offsets = [0, 128], sizes = [8, 128], strides = [1, 1]} : vector<8x384xf32> to vector<8x128xf32>
    %435 = vector.extract_strided_slice %421 {offsets = [0, 128], sizes = [8, 128], strides = [1, 1]} : vector<8x384xf32> to vector<8x128xf32>
    %436 = arith.addf %434, %435 : vector<8x128xf32>
    %437 = arith.negf %436 : vector<8x128xf32>
    %438 = math.exp %437 : vector<8x128xf32>
    %cst_124 = arith.constant 1.000000e+00 : f32
    %439 = vector.broadcast %cst_124 : f32 to vector<8x128xf32>
    %440 = arith.addf %439, %438 : vector<8x128xf32>
    %441 = arith.divf %439, %440 : vector<8x128xf32>
    %442 = vector.extract_strided_slice %425 {offsets = [0, 256], sizes = [8, 128], strides = [1, 1]} : vector<8x384xf32> to vector<8x128xf32>
    %443 = vector.extract_strided_slice %421 {offsets = [0, 256], sizes = [8, 128], strides = [1, 1]} : vector<8x384xf32> to vector<8x128xf32>
    %444 = vector.broadcast %31 : vector<1x128xf32> to vector<8x128xf32>
    %445 = arith.addf %443, %444 : vector<8x128xf32>
    %446 = arith.mulf %433, %445 : vector<8x128xf32>
    %447 = arith.addf %442, %446 : vector<8x128xf32>
    %448 = math.tanh %447 : vector<8x128xf32>
    %cst_125 = arith.constant 1.000000e+00 : f32
    %449 = vector.broadcast %cst_125 : f32 to vector<8x128xf32>
    %450 = arith.subf %449, %441 : vector<8x128xf32>
    %451 = arith.mulf %450, %448 : vector<8x128xf32>
    %452 = arith.mulf %441, %389 : vector<8x128xf32>
    %453 = arith.addf %451, %452 : vector<8x128xf32>
    %c6_126 = arith.constant 6 : index
    %c0_127 = arith.constant 0 : index
    %c0_128 = arith.constant 0 : index
    %454 = vector.load %arg10[%c6_126, %c0_127, %c0_128] : memref<8x8x384xf32, #tpu.memory_space<vmem>>, vector<1x8x384xf32>
    %455 = vector.shape_cast %454 : vector<1x8x384xf32> to vector<8x384xf32>
    %456 = vector.extract_strided_slice %455 {offsets = [0, 0], sizes = [8, 128], strides = [1, 1]} : vector<8x384xf32> to vector<8x128xf32>
    %457 = vector.extract_strided_slice %423 {offsets = [0, 0], sizes = [8, 128], strides = [1, 1]} : vector<8x384xf32> to vector<8x128xf32>
    %458 = arith.addf %456, %457 : vector<8x128xf32>
    %459 = arith.negf %458 : vector<8x128xf32>
    %460 = math.exp %459 : vector<8x128xf32>
    %cst_129 = arith.constant 1.000000e+00 : f32
    %461 = vector.broadcast %cst_129 : f32 to vector<8x128xf32>
    %462 = arith.addf %461, %460 : vector<8x128xf32>
    %463 = arith.divf %461, %462 : vector<8x128xf32>
    %464 = vector.extract_strided_slice %455 {offsets = [0, 128], sizes = [8, 128], strides = [1, 1]} : vector<8x384xf32> to vector<8x128xf32>
    %465 = vector.extract_strided_slice %423 {offsets = [0, 128], sizes = [8, 128], strides = [1, 1]} : vector<8x384xf32> to vector<8x128xf32>
    %466 = arith.addf %464, %465 : vector<8x128xf32>
    %467 = arith.negf %466 : vector<8x128xf32>
    %468 = math.exp %467 : vector<8x128xf32>
    %cst_130 = arith.constant 1.000000e+00 : f32
    %469 = vector.broadcast %cst_130 : f32 to vector<8x128xf32>
    %470 = arith.addf %469, %468 : vector<8x128xf32>
    %471 = arith.divf %469, %470 : vector<8x128xf32>
    %472 = vector.extract_strided_slice %455 {offsets = [0, 256], sizes = [8, 128], strides = [1, 1]} : vector<8x384xf32> to vector<8x128xf32>
    %473 = vector.extract_strided_slice %423 {offsets = [0, 256], sizes = [8, 128], strides = [1, 1]} : vector<8x384xf32> to vector<8x128xf32>
    %474 = vector.broadcast %33 : vector<1x128xf32> to vector<8x128xf32>
    %475 = arith.addf %473, %474 : vector<8x128xf32>
    %476 = arith.mulf %463, %475 : vector<8x128xf32>
    %477 = arith.addf %472, %476 : vector<8x128xf32>
    %478 = math.tanh %477 : vector<8x128xf32>
    %cst_131 = arith.constant 1.000000e+00 : f32
    %479 = vector.broadcast %cst_131 : f32 to vector<8x128xf32>
    %480 = arith.subf %479, %471 : vector<8x128xf32>
    %481 = arith.mulf %480, %478 : vector<8x128xf32>
    %482 = arith.mulf %471, %419 : vector<8x128xf32>
    %483 = arith.addf %481, %482 : vector<8x128xf32>
    %484 = arith.truncf %453 : vector<8x128xf32> to vector<8x128xbf16>
    %cst_132 = arith.constant dense<0.000000e+00> : vector<8x384xf32>
    %485 = tpu.matmul %484, %27, %cst_132 {dimension_numbers = #tpu.dot_dimension_numbers<[1], [0], [0], [1], [0, 0, 1, 1], [], []>} : vector<8x128xbf16>, vector<128x384xbf16>, vector<8x384xf32> -> vector<8x384xf32>
    %486 = arith.truncf %483 : vector<8x128xf32> to vector<8x128xbf16>
    %cst_133 = arith.constant dense<0.000000e+00> : vector<8x384xf32>
    %487 = tpu.matmul %486, %29, %cst_133 {dimension_numbers = #tpu.dot_dimension_numbers<[1], [0], [0], [1], [0, 0, 1, 1], [], []>} : vector<8x128xbf16>, vector<128x384xbf16>, vector<8x384xf32> -> vector<8x384xf32>
    %c7 = arith.constant 7 : index
    %c0_134 = arith.constant 0 : index
    %c0_135 = arith.constant 0 : index
    %488 = vector.load %arg9[%c7, %c0_134, %c0_135] : memref<8x8x384xf32, #tpu.memory_space<vmem>>, vector<1x8x384xf32>
    %489 = vector.shape_cast %488 : vector<1x8x384xf32> to vector<8x384xf32>
    %490 = vector.extract_strided_slice %489 {offsets = [0, 0], sizes = [8, 128], strides = [1, 1]} : vector<8x384xf32> to vector<8x128xf32>
    %491 = vector.extract_strided_slice %485 {offsets = [0, 0], sizes = [8, 128], strides = [1, 1]} : vector<8x384xf32> to vector<8x128xf32>
    %492 = arith.addf %490, %491 : vector<8x128xf32>
    %493 = arith.negf %492 : vector<8x128xf32>
    %494 = math.exp %493 : vector<8x128xf32>
    %cst_136 = arith.constant 1.000000e+00 : f32
    %495 = vector.broadcast %cst_136 : f32 to vector<8x128xf32>
    %496 = arith.addf %495, %494 : vector<8x128xf32>
    %497 = arith.divf %495, %496 : vector<8x128xf32>
    %498 = vector.extract_strided_slice %489 {offsets = [0, 128], sizes = [8, 128], strides = [1, 1]} : vector<8x384xf32> to vector<8x128xf32>
    %499 = vector.extract_strided_slice %485 {offsets = [0, 128], sizes = [8, 128], strides = [1, 1]} : vector<8x384xf32> to vector<8x128xf32>
    %500 = arith.addf %498, %499 : vector<8x128xf32>
    %501 = arith.negf %500 : vector<8x128xf32>
    %502 = math.exp %501 : vector<8x128xf32>
    %cst_137 = arith.constant 1.000000e+00 : f32
    %503 = vector.broadcast %cst_137 : f32 to vector<8x128xf32>
    %504 = arith.addf %503, %502 : vector<8x128xf32>
    %505 = arith.divf %503, %504 : vector<8x128xf32>
    %506 = vector.extract_strided_slice %489 {offsets = [0, 256], sizes = [8, 128], strides = [1, 1]} : vector<8x384xf32> to vector<8x128xf32>
    %507 = vector.extract_strided_slice %485 {offsets = [0, 256], sizes = [8, 128], strides = [1, 1]} : vector<8x384xf32> to vector<8x128xf32>
    %508 = vector.broadcast %31 : vector<1x128xf32> to vector<8x128xf32>
    %509 = arith.addf %507, %508 : vector<8x128xf32>
    %510 = arith.mulf %497, %509 : vector<8x128xf32>
    %511 = arith.addf %506, %510 : vector<8x128xf32>
    %512 = math.tanh %511 : vector<8x128xf32>
    %cst_138 = arith.constant 1.000000e+00 : f32
    %513 = vector.broadcast %cst_138 : f32 to vector<8x128xf32>
    %514 = arith.subf %513, %505 : vector<8x128xf32>
    %515 = arith.mulf %514, %512 : vector<8x128xf32>
    %516 = arith.mulf %505, %453 : vector<8x128xf32>
    %517 = arith.addf %515, %516 : vector<8x128xf32>
    %c7_139 = arith.constant 7 : index
    %c0_140 = arith.constant 0 : index
    %c0_141 = arith.constant 0 : index
    %518 = vector.load %arg10[%c7_139, %c0_140, %c0_141] : memref<8x8x384xf32, #tpu.memory_space<vmem>>, vector<1x8x384xf32>
    %519 = vector.shape_cast %518 : vector<1x8x384xf32> to vector<8x384xf32>
    %520 = vector.extract_strided_slice %519 {offsets = [0, 0], sizes = [8, 128], strides = [1, 1]} : vector<8x384xf32> to vector<8x128xf32>
    %521 = vector.extract_strided_slice %487 {offsets = [0, 0], sizes = [8, 128], strides = [1, 1]} : vector<8x384xf32> to vector<8x128xf32>
    %522 = arith.addf %520, %521 : vector<8x128xf32>
    %523 = arith.negf %522 : vector<8x128xf32>
    %524 = math.exp %523 : vector<8x128xf32>
    %cst_142 = arith.constant 1.000000e+00 : f32
    %525 = vector.broadcast %cst_142 : f32 to vector<8x128xf32>
    %526 = arith.addf %525, %524 : vector<8x128xf32>
    %527 = arith.divf %525, %526 : vector<8x128xf32>
    %528 = vector.extract_strided_slice %519 {offsets = [0, 128], sizes = [8, 128], strides = [1, 1]} : vector<8x384xf32> to vector<8x128xf32>
    %529 = vector.extract_strided_slice %487 {offsets = [0, 128], sizes = [8, 128], strides = [1, 1]} : vector<8x384xf32> to vector<8x128xf32>
    %530 = arith.addf %528, %529 : vector<8x128xf32>
    %531 = arith.negf %530 : vector<8x128xf32>
    %532 = math.exp %531 : vector<8x128xf32>
    %cst_143 = arith.constant 1.000000e+00 : f32
    %533 = vector.broadcast %cst_143 : f32 to vector<8x128xf32>
    %534 = arith.addf %533, %532 : vector<8x128xf32>
    %535 = arith.divf %533, %534 : vector<8x128xf32>
    %536 = vector.extract_strided_slice %519 {offsets = [0, 256], sizes = [8, 128], strides = [1, 1]} : vector<8x384xf32> to vector<8x128xf32>
    %537 = vector.extract_strided_slice %487 {offsets = [0, 256], sizes = [8, 128], strides = [1, 1]} : vector<8x384xf32> to vector<8x128xf32>
    %538 = vector.broadcast %33 : vector<1x128xf32> to vector<8x128xf32>
    %539 = arith.addf %537, %538 : vector<8x128xf32>
    %540 = arith.mulf %527, %539 : vector<8x128xf32>
    %541 = arith.addf %536, %540 : vector<8x128xf32>
    %542 = math.tanh %541 : vector<8x128xf32>
    %cst_144 = arith.constant 1.000000e+00 : f32
    %543 = vector.broadcast %cst_144 : f32 to vector<8x128xf32>
    %544 = arith.subf %543, %535 : vector<8x128xf32>
    %545 = arith.mulf %544, %542 : vector<8x128xf32>
    %546 = arith.mulf %535, %483 : vector<8x128xf32>
    %547 = arith.addf %545, %546 : vector<8x128xf32>
    %548 = tpu.concatenate %69, %133, %197, %261, %325, %389, %453, %517, %99, %163, %227, %291, %355, %419, %483, %547 in 0 : vector<8x128xf32>, vector<8x128xf32>, vector<8x128xf32>, vector<8x128xf32>, vector<8x128xf32>, vector<8x128xf32>, vector<8x128xf32>, vector<8x128xf32>, vector<8x128xf32>, vector<8x128xf32>, vector<8x128xf32>, vector<8x128xf32>, vector<8x128xf32>, vector<8x128xf32>, vector<8x128xf32>, vector<8x128xf32> -> vector<128x128xf32>
    %549 = arith.truncf %548 : vector<128x128xf32> to vector<128x128xbf16>
    %c0_145 = arith.constant 0 : index
    %c0_146 = arith.constant 0 : index
    %550 = vector.load %arg6[%c0_145, %c0_146] : memref<128x128xbf16, #tpu.memory_space<vmem>>, vector<128x128xbf16>
    %cst_147 = arith.constant dense<0.000000e+00> : vector<128x128xf32>
    %551 = tpu.matmul %549, %550, %cst_147 {dimension_numbers = #tpu.dot_dimension_numbers<[1], [0], [0], [1], [0, 0, 1, 1], [], []>} : vector<128x128xbf16>, vector<128x128xbf16>, vector<128x128xf32> -> vector<128x128xf32>
    %c0_148 = arith.constant 0 : index
    %c0_149 = arith.constant 0 : index
    %552 = vector.load %arg7[%c0_148, %c0_149] : memref<1x128xf32, #tpu.memory_space<vmem>>, vector<1x128xf32>
    %553 = vector.broadcast %552 : vector<1x128xf32> to vector<128x128xf32>
    %554 = arith.addf %551, %553 : vector<128x128xf32>
    %555 = vector.shape_cast %554 : vector<128x128xf32> to vector<2x8x8x128xf32>
    %c0_150 = arith.constant 0 : index
    %c0_151 = arith.constant 0 : index
    %c0_152 = arith.constant 0 : index
    %c0_153 = arith.constant 0 : index
    %556 = vector.load %arg8[%c0_150, %c0_151, %c0_152, %c0_153] : memref<2x8x8x128xf32, #tpu.memory_space<vmem>>, vector<2x8x8x128xf32>
    tpu.vector_store %arg8[%c0_150, %c0_151, %c0_152, %c0_153], %555 {strides = array<i32>} : memref<2x8x8x128xf32, #tpu.memory_space<vmem>>, vector<2x8x8x128xf32>,
    return
  }
  func.func @transform_0(%arg0: i32) -> (i32, i32, i32, i32) {
    %c0_i32 = arith.constant 0 : i32
    %c0_i32_0 = arith.constant 0 : i32
    %c0_i32_1 = arith.constant 0 : i32
    %c0_i32_2 = arith.constant 0 : i32
    %c0_i32_3 = arith.constant 0 : i32
    return %c0_i32, %c0_i32_0, %c0_i32_1, %c0_i32_2 : i32, i32, i32, i32
  }
  func.func @transform_1(%arg0: i32) -> (i32, i32, i32) {
    %c0_i32 = arith.constant 0 : i32
    %c0_i32_0 = arith.constant 0 : i32
    %c0_i32_1 = arith.constant 0 : i32
    %c0_i32_2 = arith.constant 0 : i32
    return %c0_i32, %c0_i32_0, %c0_i32_1 : i32, i32, i32
  }
  func.func @transform_2(%arg0: i32) -> (i32, i32, i32) {
    %c0_i32 = arith.constant 0 : i32
    %c0_i32_0 = arith.constant 0 : i32
    %c0_i32_1 = arith.constant 0 : i32
    %c0_i32_2 = arith.constant 0 : i32
    return %c0_i32, %c0_i32_0, %c0_i32_1 : i32, i32, i32
  }
  func.func @transform_3(%arg0: i32) -> (i32, i32, i32) {
    %c0_i32 = arith.constant 0 : i32
    %c0_i32_0 = arith.constant 0 : i32
    %c0_i32_1 = arith.constant 0 : i32
    %c0_i32_2 = arith.constant 0 : i32
    return %c0_i32, %c0_i32_0, %c0_i32_1 : i32, i32, i32
  }
  func.func @transform_4(%arg0: i32) -> (i32, i32, i32) {
    %c0_i32 = arith.constant 0 : i32
    %c0_i32_0 = arith.constant 0 : i32
    %c0_i32_1 = arith.constant 0 : i32
    %c0_i32_2 = arith.constant 0 : i32
    return %c0_i32, %c0_i32_0, %c0_i32_1 : i32, i32, i32
  }
  func.func @transform_5(%arg0: i32) -> (i32, i32) {
    %c0_i32 = arith.constant 0 : i32
    %c0_i32_0 = arith.constant 0 : i32
    %c0_i32_1 = arith.constant 0 : i32
    return %c0_i32, %c0_i32_0 : i32, i32
  }
  func.func @transform_6(%arg0: i32) -> (i32, i32) {
    %c0_i32 = arith.constant 0 : i32
    %c0_i32_0 = arith.constant 0 : i32
    %c0_i32_1 = arith.constant 0 : i32
    return %c0_i32, %c0_i32_0 : i32, i32
  }
  func.func @transform_7(%arg0: i32) -> (i32, i32, i32, i32) {
    %c0_i32 = arith.constant 0 : i32
    %c0_i32_0 = arith.constant 0 : i32
    %c0_i32_1 = arith.constant 0 : i32
    %c0_i32_2 = arith.constant 0 : i32
    %c0_i32_3 = arith.constant 0 : i32
    return %c0_i32, %c0_i32_0, %c0_i32_1, %c0_i32_2 : i32, i32, i32, i32
  }
}

</mosaic_0001>

<llo_original>
// kernel: duodecoder_forward.1
$region0: #{duodecoder_forward.1}
  #allocation0 [shape = 'u32[]', space=smem, size = 0x4, offset = 0x4, fixed_abs, tag = 'smem constant byte address 0x4 - core index']
  #allocation1 [shape = 'u32[72,128]{1,0:T(1,128)}', space=vmem, size = 0x9000, scoped, tag = 'internal scratch']
  #allocation2 [shape = 'f32[8,8,384]{2,1,0:T(8,128)}', space=vmem, size = 0x18000, scoped, tag = 'scratch operand']
  #allocation3 [shape = 'f32[8,8,384]{2,1,0:T(8,128)}', space=vmem, size = 0x18000, scoped, tag = 'scratch operand']
  %s0 = inlined_call_operand.vmem [shape: f32[2,8,8,256], index: 0, kind: input, shape index: {}]
  %s1 = inlined_call_operand.vmem [shape: bf16[2,256,384], index: 1, kind: input, shape index: {}]
  %s2 = inlined_call_operand.vmem [shape: bf16[2,128,384], index: 2, kind: input, shape index: {}]
  %s3 = inlined_call_operand.vmem [shape: f32[2,1,384], index: 3, kind: input, shape index: {}]
  %s4 = inlined_call_operand.vmem [shape: f32[2,1,128], index: 4, kind: input, shape index: {}]
  %s5 = inlined_call_operand.vmem [shape: bf16[128,128], index: 5, kind: input, shape index: {}]
  %s6 = inlined_call_operand.vmem [shape: f32[1,128], index: 6, kind: input, shape index: {}]
  %s7 = inlined_call_operand.vmem [shape: f32[2,8,8,128], index: 7, kind: output, shape index: {}]
  %s8 = sld [smem:[#allocation0]]
  $region38: #{duodecoder_forward.1} parent=0
    _
  %s10 = ssub.s32 1, %s8
  %s11 = scalar_select 0, %s10, %s8
  // Predicated region
  $region2: #{duodecoder_forward.1} parent=0 // pred_check
    _
  $region3: #{duodecoder_forward.1} parent=0 // pred_check_branch
    %13 = sbr.rel (0) target = $region5
  $region4: #{duodecoder_forward.1} parent=0 // pred_region
    _
  $region5: #{duodecoder_forward.1} parent=0 // pred_fallthru
    _
  // Predicated region
  $region6: #{duodecoder_forward.1} parent=0 // pred_check
    _
  $region7: #{duodecoder_forward.1} parent=0 // pred_check_branch
    %15 = sbr.rel (0) target = $region9
  $region8: #{duodecoder_forward.1} parent=0 // pred_region
    _
  $region9: #{duodecoder_forward.1} parent=0 // pred_fallthru
    _
  // Predicated region
  $region10: #{duodecoder_forward.1} parent=0 // pred_check
    _
  $region11: #{duodecoder_forward.1} parent=0 // pred_check_branch
    %17 = sbr.rel (0) target = $region13
  $region12: #{duodecoder_forward.1} parent=0 // pred_region
    _
  $region13: #{duodecoder_forward.1} parent=0 // pred_fallthru
    _
  // Predicated region
  $region14: #{duodecoder_forward.1} parent=0 // pred_check
    _
  $region15: #{duodecoder_forward.1} parent=0 // pred_check_branch
    %19 = sbr.rel (0) target = $region17
  $region16: #{duodecoder_forward.1} parent=0 // pred_region
    _
  $region17: #{duodecoder_forward.1} parent=0 // pred_fallthru
    _
  // Predicated region
  $region18: #{duodecoder_forward.1} parent=0 // pred_check
    _
  $region19: #{duodecoder_forward.1} parent=0 // pred_check_branch
    %21 = sbr.rel (0) target = $region21
  $region20: #{duodecoder_forward.1} parent=0 // pred_region
    _
  $region21: #{duodecoder_forward.1} parent=0 // pred_fallthru
    _
  // Predicated region
  $region22: #{duodecoder_forward.1} parent=0 // pred_check
    _
  $region23: #{duodecoder_forward.1} parent=0 // pred_check_branch
    %23 = sbr.rel (0) target = $region25
  $region24: #{duodecoder_forward.1} parent=0 // pred_region
    _
  $region25: #{duodecoder_forward.1} parent=0 // pred_fallthru
    _
  // Predicated region
  $region26: #{duodecoder_forward.1} parent=0 // pred_check
    _
  $region27: #{duodecoder_forward.1} parent=0 // pred_check_branch
    %25 = sbr.rel (0) target = $region29
  $region28: #{duodecoder_forward.1} parent=0 // pred_region
    _
  $region29: #{duodecoder_forward.1} parent=0 // pred_fallthru
    _
  %v27 = vld [vmem:[%s0] sm:$0xff]
  %v28 = vld [vmem:[%s0 + $0x8] sm:$0xff]
  %v29 = vld [vmem:[%s0 + $0x10] sm:$0xff]
  %v30 = vld [vmem:[%s0 + $0x18] sm:$0xff]
  %v31 = vld [vmem:[%s0 + $0x20] sm:$0xff]
  %v32 = vld [vmem:[%s0 + $0x28] sm:$0xff]
  %v33 = vld [vmem:[%s0 + $0x30] sm:$0xff]
  %v34 = vld [vmem:[%s0 + $0x38] sm:$0xff]
  %v35 = vld [vmem:[%s0 + $0x40] sm:$0xff]
  %v36 = vld [vmem:[%s0 + $0x48] sm:$0xff]
  %v37 = vld [vmem:[%s0 + $0x50] sm:$0xff]
  %v38 = vld [vmem:[%s0 + $0x58] sm:$0xff]
  %v39 = vld [vmem:[%s0 + $0x60] sm:$0xff]
  %v40 = vld [vmem:[%s0 + $0x68] sm:$0xff]
  %v41 = vld [vmem:[%s0 + $0x70] sm:$0xff]
  %v42 = vld [vmem:[%s0 + $0x78] sm:$0xff]
  %v43 = vpack.c.bf16 %v29, %v27
  %v44 = vpack.c.bf16 %v30, %v28
  %v45 = vpack.c.bf16 %v33, %v31
  %v46 = vpack.c.bf16 %v34, %v32
  %v47 = vpack.c.bf16 %v37, %v35
  %v48 = vpack.c.bf16 %v38, %v36
  %v49 = vpack.c.bf16 %v41, %v39
  %v50 = vpack.c.bf16 %v42, %v40
  %s51 = scalar_lea.vmem %s0, 128
  %v52 = vld [vmem:[%s51] sm:$0xff]
  %v53 = vld [vmem:[%s51 + $0x8] sm:$0xff]
  %v54 = vld [vmem:[%s51 + $0x10] sm:$0xff]
  %v55 = vld [vmem:[%s51 + $0x18] sm:$0xff]
  %v56 = vld [vmem:[%s51 + $0x20] sm:$0xff]
  %v57 = vld [vmem:[%s51 + $0x28] sm:$0xff]
  %v58 = vld [vmem:[%s51 + $0x30] sm:$0xff]
  %v59 = vld [vmem:[%s51 + $0x38] sm:$0xff]
  %v60 = vld [vmem:[%s51 + $0x40] sm:$0xff]
  %v61 = vld [vmem:[%s51 + $0x48] sm:$0xff]
  %v62 = vld [vmem:[%s51 + $0x50] sm:$0xff]
  %v63 = vld [vmem:[%s51 + $0x58] sm:$0xff]
  %v64 = vld [vmem:[%s51 + $0x60] sm:$0xff]
  %v65 = vld [vmem:[%s51 + $0x68] sm:$0xff]
  %v66 = vld [vmem:[%s51 + $0x70] sm:$0xff]
  %v67 = vld [vmem:[%s51 + $0x78] sm:$0xff]
  %v68 = vpack.c.bf16 %v54, %v52
  %v69 = vpack.c.bf16 %v55, %v53
  %v70 = vpack.c.bf16 %v58, %v56
  %v71 = vpack.c.bf16 %v59, %v57
  %v72 = vpack.c.bf16 %v62, %v60
  %v73 = vpack.c.bf16 %v63, %v61
  %v74 = vpack.c.bf16 %v66, %v64
  %v75 = vpack.c.bf16 %v67, %v65
  %v76 = vld [vmem:[%s1] sm:$0xff]
  %v77 = vld [vmem:[%s1 + $0x8] sm:$0xf]
  %v78 = vld [vmem:[%s1 + $0xc] sm:$0xff]
  %v79 = vld [vmem:[%s1 + $0x14] sm:$0xf]
  %v80 = vld [vmem:[%s1 + $0x18] sm:$0xff]
  %v81 = vld [vmem:[%s1 + $0x20] sm:$0xf]
  %v82 = vld [vmem:[%s1 + $0x24] sm:$0xff]
  %v83 = vld [vmem:[%s1 + $0x2c] sm:$0xf]
  %v84 = vld [vmem:[%s1 + $0x30] sm:$0xff]
  %v85 = vld [vmem:[%s1 + $0x38] sm:$0xf]
  %v86 = vld [vmem:[%s1 + $0x3c] sm:$0xff]
  %v87 = vld [vmem:[%s1 + $0x44] sm:$0xf]
  %v88 = vld [vmem:[%s1 + $0x48] sm:$0xff]
  %v89 = vld [vmem:[%s1 + $0x50] sm:$0xf]
  %v90 = vld [vmem:[%s1 + $0x54] sm:$0xff]
  %v91 = vld [vmem:[%s1 + $0x5c] sm:$0xf]
  %v92 = vld [vmem:[%s1 + $0x60] sm:$0xff]
  %v93 = vld [vmem:[%s1 + $0x68] sm:$0xf]
  %v94 = vld [vmem:[%s1 + $0x6c] sm:$0xff]
  %v95 = vld [vmem:[%s1 + $0x74] sm:$0xf]
  %v96 = vld [vmem:[%s1 + $0x78] sm:$0xff]
  %v97 = vld [vmem:[%s1 + $0x80] sm:$0xf]
  %v98 = vld [vmem:[%s1 + $0x84] sm:$0xff]
  %v99 = vld [vmem:[%s1 + $0x8c] sm:$0xf]
  %v100 = vld [vmem:[%s1 + $0x90] sm:$0xff]
  %v101 = vld [vmem:[%s1 + $0x98] sm:$0xf]
  %v102 = vld [vmem:[%s1 + $0x9c] sm:$0xff]
  %v103 = vld [vmem:[%s1 + $0xa4] sm:$0xf]
  %v104 = vld [vmem:[%s1 + $0xa8] sm:$0xff]
  %v105 = vld [vmem:[%s1 + $0xb0] sm:$0xf]
  %v106 = vld [vmem:[%s1 + $0xb4] sm:$0xff]
  %v107 = vld [vmem:[%s1 + $0xbc] sm:$0xf]
  %v108 = vld [vmem:[%s1 + $0xc0] sm:$0xff]
  %v109 = vld [vmem:[%s1 + $0xc8] sm:$0xf]
  %v110 = vld [vmem:[%s1 + $0xcc] sm:$0xff]
  %v111 = vld [vmem:[%s1 + $0xd4] sm:$0xf]
  %v112 = vld [vmem:[%s1 + $0xd8] sm:$0xff]
  %v113 = vld [vmem:[%s1 + $0xe0] sm:$0xf]
  %v114 = vld [vmem:[%s1 + $0xe4] sm:$0xff]
  %v115 = vld [vmem:[%s1 + $0xec] sm:$0xf]
  %v116 = vld [vmem:[%s1 + $0xf0] sm:$0xff]
  %v117 = vld [vmem:[%s1 + $0xf8] sm:$0xf]
  %v118 = vld [vmem:[%s1 + $0xfc] sm:$0xff]
  %v119 = vld [vmem:[%s1 + $0x104] sm:$0xf]
  %v120 = vld [vmem:[%s1 + $0x108] sm:$0xff]
  %v121 = vld [vmem:[%s1 + $0x110] sm:$0xf]
  %v122 = vld [vmem:[%s1 + $0x114] sm:$0xff]
  %v123 = vld [vmem:[%s1 + $0x11c] sm:$0xf]
  %v124 = vld [vmem:[%s1 + $0x120] sm:$0xff]
  %v125 = vld [vmem:[%s1 + $0x128] sm:$0xf]
  %v126 = vld [vmem:[%s1 + $0x12c] sm:$0xff]
  %v127 = vld [vmem:[%s1 + $0x134] sm:$0xf]
  %v128 = vld [vmem:[%s1 + $0x138] sm:$0xff]
  %v129 = vld [vmem:[%s1 + $0x140] sm:$0xf]
  %v130 = vld [vmem:[%s1 + $0x144] sm:$0xff]
  %v131 = vld [vmem:[%s1 + $0x14c] sm:$0xf]
  %v132 = vld [vmem:[%s1 + $0x150] sm:$0xff]
  %v133 = vld [vmem:[%s1 + $0x158] sm:$0xf]
  %v134 = vld [vmem:[%s1 + $0x15c] sm:$0xff]
  %v135 = vld [vmem:[%s1 + $0x164] sm:$0xf]
  %v136 = vld [vmem:[%s1 + $0x168] sm:$0xff]
  %v137 = vld [vmem:[%s1 + $0x170] sm:$0xf]
  %v138 = vld [vmem:[%s1 + $0x174] sm:$0xff]
  %v139 = vld [vmem:[%s1 + $0x17c] sm:$0xf]
  %v140 = vld [vmem:[%s3] sm:$0x7]
  %v142 = vperm.slane %v140, 0
  %v143 = vperm.slane %v140, 1
  %v144 = vperm.slane %v140, 2
  %v212 = vunpack.c.l.b16 %v76
  %v213 = vunpack.c.h.b16 %v76
  %v214 = vunpack.c.l.b16 %v77
  %v215 = vunpack.c.l.b16 %v78
  %v216 = vunpack.c.h.b16 %v78
  %v217 = vunpack.c.l.b16 %v79
  %v218 = vunpack.c.l.b16 %v80
  %v219 = vunpack.c.h.b16 %v80
  %v220 = vunpack.c.l.b16 %v81
  %v221 = vunpack.c.l.b16 %v82
  %v222 = vunpack.c.h.b16 %v82
  %v223 = vunpack.c.l.b16 %v83
  %v224 = vunpack.c.l.b16 %v84
  %v225 = vunpack.c.h.b16 %v84
  %v226 = vunpack.c.l.b16 %v85
  %v227 = vunpack.c.l.b16 %v86
  %v228 = vunpack.c.h.b16 %v86
  %v229 = vunpack.c.l.b16 %v87
  %v230 = vunpack.c.l.b16 %v88
  %v231 = vunpack.c.h.b16 %v88
  %v232 = vunpack.c.l.b16 %v89
  %v233 = vunpack.c.l.b16 %v90
  %v234 = vunpack.c.h.b16 %v90
  %v235 = vunpack.c.l.b16 %v91
  %v236 = vunpack.c.l.b16 %v92
  %v237 = vunpack.c.h.b16 %v92
  %v238 = vunpack.c.l.b16 %v93
  %v239 = vunpack.c.l.b16 %v94
  %v240 = vunpack.c.h.b16 %v94
  %v241 = vunpack.c.l.b16 %v95
  %v242 = vunpack.c.l.b16 %v96
  %v243 = vunpack.c.h.b16 %v96
  %v244 = vunpack.c.l.b16 %v97
  %v245 = vunpack.c.l.b16 %v98
  %v246 = vunpack.c.h.b16 %v98
  %v247 = vunpack.c.l.b16 %v99
  %v248 = vunpack.c.l.b16 %v100
  %v249 = vunpack.c.h.b16 %v100
  %v250 = vunpack.c.l.b16 %v101
  %v251 = vunpack.c.l.b16 %v102
  %v252 = vunpack.c.h.b16 %v102
  %v253 = vunpack.c.l.b16 %v103
  %v254 = vunpack.c.l.b16 %v104
  %v255 = vunpack.c.h.b16 %v104
  %v256 = vunpack.c.l.b16 %v105
  %v257 = vunpack.c.l.b16 %v106
  %v258 = vunpack.c.h.b16 %v106
  %v259 = vunpack.c.l.b16 %v107
  %v260 = vunpack.c.l.b16 %v108
  %v261 = vunpack.c.h.b16 %v108
  %v262 = vunpack.c.l.b16 %v109
  %v263 = vunpack.c.l.b16 %v110
  %v264 = vunpack.c.h.b16 %v110
  %v265 = vunpack.c.l.b16 %v111
  %v266 = vunpack.c.l.b16 %v112
  %v267 = vunpack.c.h.b16 %v112
  %v268 = vunpack.c.l.b16 %v113
  %v269 = vunpack.c.l.b16 %v114
  %v270 = vunpack.c.h.b16 %v114
  %v271 = vunpack.c.l.b16 %v115
  %v272 = vunpack.c.l.b16 %v116
  %v273 = vunpack.c.h.b16 %v116
  %v274 = vunpack.c.l.b16 %v117
  %v275 = vunpack.c.l.b16 %v118
  %v276 = vunpack.c.h.b16 %v118
  %v277 = vunpack.c.l.b16 %v119
  %v278 = vunpack.c.l.b16 %v120
  %v279 = vunpack.c.h.b16 %v120
  %v280 = vunpack.c.l.b16 %v121
  %v281 = vunpack.c.l.b16 %v122
  %v282 = vunpack.c.h.b16 %v122
  %v283 = vunpack.c.l.b16 %v123
  %v284 = vunpack.c.l.b16 %v124
  %v285 = vunpack.c.h.b16 %v124
  %v286 = vunpack.c.l.b16 %v125
  %v287 = vunpack.c.l.b16 %v126
  %v288 = vunpack.c.h.b16 %v126
  %v289 = vunpack.c.l.b16 %v127
  %v290 = vunpack.c.l.b16 %v128
  %v291 = vunpack.c.h.b16 %v128
  %v292 = vunpack.c.l.b16 %v129
  %v293 = vunpack.c.l.b16 %v130
  %v294 = vunpack.c.h.b16 %v130
  %v295 = vunpack.c.l.b16 %v131
  %v296 = vunpack.c.l.b16 %v132
  %v297 = vunpack.c.h.b16 %v132
  %v298 = vunpack.c.l.b16 %v133
  %v299 = vunpack.c.l.b16 %v134
  %v300 = vunpack.c.h.b16 %v134
  %v301 = vunpack.c.l.b16 %v135
  %v302 = vunpack.c.l.b16 %v136
  %v303 = vunpack.c.h.b16 %v136
  %v304 = vunpack.c.l.b16 %v137
  %v305 = vunpack.c.l.b16 %v138
  %v306 = vunpack.c.h.b16 %v138
  %v307 = vunpack.c.l.b16 %v139
  %v308 = vpack.c.b16 %v215, %v212
  %v309 = vpack.c.b16 %v216, %v213
  %v310 = vpack.c.b16 %v217, %v214
  %v311 = vpack.c.b16 %v221, %v218
  %v312 = vpack.c.b16 %v222, %v219
  %v313 = vpack.c.b16 %v223, %v220
  %v314 = vpack.c.b16 %v227, %v224
  %v315 = vpack.c.b16 %v228, %v225
  %v316 = vpack.c.b16 %v229, %v226
  %v317 = vpack.c.b16 %v233, %v230
  %v318 = vpack.c.b16 %v234, %v231
  %v319 = vpack.c.b16 %v235, %v232
  %v320 = vpack.c.b16 %v239, %v236
  %v321 = vpack.c.b16 %v240, %v237
  %v322 = vpack.c.b16 %v241, %v238
  %v323 = vpack.c.b16 %v245, %v242
  %v324 = vpack.c.b16 %v246, %v243
  %v325 = vpack.c.b16 %v247, %v244
  %v326 = vpack.c.b16 %v251, %v248
  %v327 = vpack.c.b16 %v252, %v249
  %v328 = vpack.c.b16 %v253, %v250
  %v329 = vpack.c.b16 %v257, %v254
  %v330 = vpack.c.b16 %v258, %v255
  %v331 = vpack.c.b16 %v259, %v256
  %v332 = vpack.c.b16 %v263, %v260
  %v333 = vpack.c.b16 %v264, %v261
  %v334 = vpack.c.b16 %v265, %v262
  %v335 = vpack.c.b16 %v269, %v266
  %v336 = vpack.c.b16 %v270, %v267
  %v337 = vpack.c.b16 %v271, %v268
  %v338 = vpack.c.b16 %v275, %v272
  %v339 = vpack.c.b16 %v276, %v273
  %v340 = vpack.c.b16 %v277, %v274
  %v341 = vpack.c.b16 %v281, %v278
  %v342 = vpack.c.b16 %v282, %v279
  %v343 = vpack.c.b16 %v283, %v280
  %v344 = vpack.c.b16 %v287, %v284
  %v345 = vpack.c.b16 %v288, %v285
  %v346 = vpack.c.b16 %v289, %v286
  %v347 = vpack.c.b16 %v293, %v290
  %v348 = vpack.c.b16 %v294, %v291
  %v349 = vpack.c.b16 %v295, %v292
  %v350 = vpack.c.b16 %v299, %v296
  %v351 = vpack.c.b16 %v300, %v297
  %v352 = vpack.c.b16 %v301, %v298
  %v353 = vpack.c.b16 %v305, %v302
  %v354 = vpack.c.b16 %v306, %v303
  %v355 = vpack.c.b16 %v307, %v304
  %404 = vmatpush.bf16.msra.mxu0 %v329
  %405 = vmatpush.bf16.msra.mxu0 %v326
  %406 = vmatpush.bf16.msra.mxu0 %v323
  %407 = vmatpush.bf16.msra.mxu0 %v320
  %408 = vmatpush.bf16.msra.mxu0 %v317
  %409 = vmatpush.bf16.msra.mxu0 %v314
  %410 = vmatpush.bf16.msra.mxu0 %v311
  %411 = vmatpush.bf16.msra.mxu0 %v308
  %412 = vmatmul.bf16.gmra.mxu0 %v43
  %v413 = vpop.f32.mrf.mxu0
  %v414 = vadd.f32 %v142, %v413
  %v415 = vpop.f32.mrf.mxu0
  %v416 = vadd.f32 %v142, %v415
  %417 = vmatmul.bf16.gmra.mxu0 %v45
  %v418 = vpop.f32.mrf.mxu0
  %v419 = vadd.f32 %v142, %v418
  %v420 = vpop.f32.mrf.mxu0
  %v421 = vadd.f32 %v142, %v420
  %422 = vmatmul.bf16.gmra.mxu0 %v47
  %v423 = vpop.f32.mrf.mxu0
  %v424 = vadd.f32 %v142, %v423
  %v425 = vpop.f32.mrf.mxu0
  %v426 = vadd.f32 %v142, %v425
  %427 = vmatmul.bf16.gmra.mxu0 %v49
  %v428 = vpop.f32.mrf.mxu0
  %v429 = vadd.f32 %v142, %v428
  %v430 = vpop.f32.mrf.mxu0
  %v431 = vadd.f32 %v142, %v430
  %432 = vdwg.mxu0
  %433 = vmatpush.bf16.msra.mxu0 %v353
  %434 = vmatpush.bf16.msra.mxu0 %v350
  %435 = vmatpush.bf16.msra.mxu0 %v347
  %436 = vmatpush.bf16.msra.mxu0 %v344
  %437 = vmatpush.bf16.msra.mxu0 %v341
  %438 = vmatpush.bf16.msra.mxu0 %v338
  %439 = vmatpush.bf16.msra.mxu0 %v335
  %440 = vmatpush.bf16.msra.mxu0 %v332
  %441 = vmatmul.bf16.gmra.mxu0 %v44
  %v442 = vpop.f32.mrf.mxu0
  %v443 = vadd.f32 %v414, %v442
  %v444 = vpop.f32.mrf.mxu0
  %v445 = vadd.f32 %v416, %v444
  %446 = vmatmul.bf16.gmra.mxu0 %v46
  %v447 = vpop.f32.mrf.mxu0
  %v448 = vadd.f32 %v419, %v447
  %v449 = vpop.f32.mrf.mxu0
  %v450 = vadd.f32 %v421, %v449
  %451 = vmatmul.bf16.gmra.mxu0 %v48
  %v452 = vpop.f32.mrf.mxu0
  %v453 = vadd.f32 %v424, %v452
  %v454 = vpop.f32.mrf.mxu0
  %v455 = vadd.f32 %v426, %v454
  %456 = vmatmul.bf16.gmra.mxu0 %v50
  %v457 = vpop.f32.mrf.mxu0
  %v458 = vadd.f32 %v429, %v457
  %v459 = vpop.f32.mrf.mxu0
  %v460 = vadd.f32 %v431, %v459
  %461 = vdwg.mxu0
  %462 = vmatpush.bf16.msra.mxu0 %v330
  %463 = vmatpush.bf16.msra.mxu0 %v327
  %464 = vmatpush.bf16.msra.mxu0 %v324
  %465 = vmatpush.bf16.msra.mxu0 %v321
  %466 = vmatpush.bf16.msra.mxu0 %v318
  %467 = vmatpush.bf16.msra.mxu0 %v315
  %468 = vmatpush.bf16.msra.mxu0 %v312
  %469 = vmatpush.bf16.msra.mxu0 %v309
  %470 = vmatmul.bf16.gmra.mxu0 %v43
  %v471 = vpop.f32.mrf.mxu0
  %v472 = vadd.f32 %v143, %v471
  %v473 = vpop.f32.mrf.mxu0
  %v474 = vadd.f32 %v143, %v473
  %475 = vmatmul.bf16.gmra.mxu0 %v45
  %v476 = vpop.f32.mrf.mxu0
  %v477 = vadd.f32 %v143, %v476
  %v478 = vpop.f32.mrf.mxu0
  %v479 = vadd.f32 %v143, %v478
  %480 = vmatmul.bf16.gmra.mxu0 %v47
  %v481 = vpop.f32.mrf.mxu0
  %v482 = vadd.f32 %v143, %v481
  %v483 = vpop.f32.mrf.mxu0
  %v484 = vadd.f32 %v143, %v483
  %485 = vmatmul.bf16.gmra.mxu0 %v49
  %v486 = vpop.f32.mrf.mxu0
  %v487 = vadd.f32 %v143, %v486
  %v488 = vpop.f32.mrf.mxu0
  %v489 = vadd.f32 %v143, %v488
  %490 = vdwg.mxu0
  %491 = vmatpush.bf16.msra.mxu0 %v354
  %492 = vmatpush.bf16.msra.mxu0 %v351
  %493 = vmatpush.bf16.msra.mxu0 %v348
  %494 = vmatpush.bf16.msra.mxu0 %v345
  %495 = vmatpush.bf16.msra.mxu0 %v342
  %496 = vmatpush.bf16.msra.mxu0 %v339
  %497 = vmatpush.bf16.msra.mxu0 %v336
  %498 = vmatpush.bf16.msra.mxu0 %v333
  %499 = vmatmul.bf16.gmra.mxu0 %v44
  %v500 = vpop.f32.mrf.mxu0
  %v501 = vadd.f32 %v472, %v500
  %v502 = vpop.f32.mrf.mxu0
  %v503 = vadd.f32 %v474, %v502
  %504 = vmatmul.bf16.gmra.mxu0 %v46
  %v505 = vpop.f32.mrf.mxu0
  %v506 = vadd.f32 %v477, %v505
  %v507 = vpop.f32.mrf.mxu0
  %v508 = vadd.f32 %v479, %v507
  %509 = vmatmul.bf16.gmra.mxu0 %v48
  %v510 = vpop.f32.mrf.mxu0
  %v511 = vadd.f32 %v482, %v510
  %v512 = vpop.f32.mrf.mxu0
  %v513 = vadd.f32 %v484, %v512
  %514 = vmatmul.bf16.gmra.mxu0 %v50
  %v515 = vpop.f32.mrf.mxu0
  %v516 = vadd.f32 %v487, %v515
  %v517 = vpop.f32.mrf.mxu0
  %v518 = vadd.f32 %v489, %v517
  %519 = vdwg.mxu0
  %520 = vmatpush.bf16.msra.mxu0 %v331
  %521 = vmatpush.bf16.msra.mxu0 %v328
  %522 = vmatpush.bf16.msra.mxu0 %v325
  %523 = vmatpush.bf16.msra.mxu0 %v322
  %524 = vmatpush.bf16.msra.mxu0 %v319
  %525 = vmatpush.bf16.msra.mxu0 %v316
  %526 = vmatpush.bf16.msra.mxu0 %v313
  %527 = vmatpush.bf16.msra.mxu0 %v310
  %528 = vmatmul.bf16.gmra.mxu0 %v43
  %v529 = vpop.f32.mrf.mxu0
  %v530 = vadd.f32 %v144, %v529
  %v531 = vpop.f32.mrf.mxu0
  %v532 = vadd.f32 %v144, %v531
  %533 = vmatmul.bf16.gmra.mxu0 %v45
  %v534 = vpop.f32.mrf.mxu0
  %v535 = vadd.f32 %v144, %v534
  %v536 = vpop.f32.mrf.mxu0
  %v537 = vadd.f32 %v144, %v536
  %538 = vmatmul.bf16.gmra.mxu0 %v47
  %v539 = vpop.f32.mrf.mxu0
  %v540 = vadd.f32 %v144, %v539
  %v541 = vpop.f32.mrf.mxu0
  %v542 = vadd.f32 %v144, %v541
  %543 = vmatmul.bf16.gmra.mxu0 %v49
  %v544 = vpop.f32.mrf.mxu0
  %v545 = vadd.f32 %v144, %v544
  %v546 = vpop.f32.mrf.mxu0
  %v547 = vadd.f32 %v144, %v546
  %548 = vdwg.mxu0
  %549 = vmatpush.bf16.msra.mxu0 %v355
  %550 = vmatpush.bf16.msra.mxu0 %v352
  %551 = vmatpush.bf16.msra.mxu0 %v349
  %552 = vmatpush.bf16.msra.mxu0 %v346
  %553 = vmatpush.bf16.msra.mxu0 %v343
  %554 = vmatpush.bf16.msra.mxu0 %v340
  %555 = vmatpush.bf16.msra.mxu0 %v337
  %556 = vmatpush.bf16.msra.mxu0 %v334
  %557 = vmatmul.bf16.gmra.mxu0 %v44
  %v558 = vpop.f32.mrf.mxu0
  %v559 = vadd.f32 %v530, %v558
  %v560 = vpop.f32.mrf.mxu0
  %v561 = vadd.f32 %v532, %v560
  %562 = vmatmul.bf16.gmra.mxu0 %v46
  %v563 = vpop.f32.mrf.mxu0
  %v564 = vadd.f32 %v535, %v563
  %v565 = vpop.f32.mrf.mxu0
  %v566 = vadd.f32 %v537, %v565
  %567 = vmatmul.bf16.gmra.mxu0 %v48
  %v568 = vpop.f32.mrf.mxu0
  %v569 = vadd.f32 %v540, %v568
  %v570 = vpop.f32.mrf.mxu0
  %v571 = vadd.f32 %v542, %v570
  %572 = vmatmul.bf16.gmra.mxu0 %v50
  %v573 = vpop.f32.mrf.mxu0
  %v574 = vadd.f32 %v545, %v573
  %v575 = vpop.f32.mrf.mxu0
  %v576 = vadd.f32 %v547, %v575
  %577 = vdwg.mxu0
  %578 = vst [vmem:[#allocation2] sm:$0xff] %v443
  %579 = vst [vmem:[#allocation2 + $0x8] sm:$0xff] %v501
  %580 = vst [vmem:[#allocation2 + $0x10] sm:$0xff] %v559
  %581 = vst [vmem:[#allocation2 + $0x18] sm:$0xff] %v445
  %582 = vst [vmem:[#allocation2 + $0x20] sm:$0xff] %v503
  %583 = vst [vmem:[#allocation2 + $0x28] sm:$0xff] %v561
  %584 = vst [vmem:[#allocation2 + $0x30] sm:$0xff] %v448
  %585 = vst [vmem:[#allocation2 + $0x38] sm:$0xff] %v506
  %586 = vst [vmem:[#allocation2 + $0x40] sm:$0xff] %v564
  %587 = vst [vmem:[#allocation2 + $0x48] sm:$0xff] %v450
  %588 = vst [vmem:[#allocation2 + $0x50] sm:$0xff] %v508
  %589 = vst [vmem:[#allocation2 + $0x58] sm:$0xff] %v566
  %590 = vst [vmem:[#allocation2 + $0x60] sm:$0xff] %v453
  %591 = vst [vmem:[#allocation2 + $0x68] sm:$0xff] %v511
  %592 = vst [vmem:[#allocation2 + $0x70] sm:$0xff] %v569
  %593 = vst [vmem:[#allocation2 + $0x78] sm:$0xff] %v455
  %594 = vst [vmem:[#allocation2 + $0x80] sm:$0xff] %v513
  %595 = vst [vmem:[#allocation2 + $0x88] sm:$0xff] %v571
  %596 = vst [vmem:[#allocation2 + $0x90] sm:$0xff] %v458
  %597 = vst [vmem:[#allocation2 + $0x98] sm:$0xff] %v516
  %598 = vst [vmem:[#allocation2 + $0xa0] sm:$0xff] %v574
  %599 = vst [vmem:[#allocation2 + $0xa8] sm:$0xff] %v460
  %600 = vst [vmem:[#allocation2 + $0xb0] sm:$0xff] %v518
  %601 = vst [vmem:[#allocation2 + $0xb8] sm:$0xff] %v576
  %s602 = scalar_lea.vmem %s1, 384
  %v603 = vld [vmem:[%s602] sm:$0xff]
  %v604 = vld [vmem:[%s602 + $0x8] sm:$0xf]
  %v605 = vld [vmem:[%s602 + $0xc] sm:$0xff]
  %v606 = vld [vmem:[%s602 + $0x14] sm:$0xf]
  %v607 = vld [vmem:[%s602 + $0x18] sm:$0xff]
  %v608 = vld [vmem:[%s602 + $0x20] sm:$0xf]
  %v609 = vld [vmem:[%s602 + $0x24] sm:$0xff]
  %v610 = vld [vmem:[%s602 + $0x2c] sm:$0xf]
  %v611 = vld [vmem:[%s602 + $0x30] sm:$0xff]
  %v612 = vld [vmem:[%s602 + $0x38] sm:$0xf]
  %v613 = vld [vmem:[%s602 + $0x3c] sm:$0xff]
  %v614 = vld [vmem:[%s602 + $0x44] sm:$0xf]
  %v615 = vld [vmem:[%s602 + $0x48] sm:$0xff]
  %v616 = vld [vmem:[%s602 + $0x50] sm:$0xf]
  %v617 = vld [vmem:[%s602 + $0x54] sm:$0xff]
  %v618 = vld [vmem:[%s602 + $0x5c] sm:$0xf]
  %v619 = vld [vmem:[%s602 + $0x60] sm:$0xff]
  %v620 = vld [vmem:[%s602 + $0x68] sm:$0xf]
  %v621 = vld [vmem:[%s602 + $0x6c] sm:$0xff]
  %v622 = vld [vmem:[%s602 + $0x74] sm:$0xf]
  %v623 = vld [vmem:[%s602 + $0x78] sm:$0xff]
  %v624 = vld [vmem:[%s602 + $0x80] sm:$0xf]
  %v625 = vld [vmem:[%s602 + $0x84] sm:$0xff]
  %v626 = vld [vmem:[%s602 + $0x8c] sm:$0xf]
  %v627 = vld [vmem:[%s602 + $0x90] sm:$0xff]
  %v628 = vld [vmem:[%s602 + $0x98] sm:$0xf]
  %v629 = vld [vmem:[%s602 + $0x9c] sm:$0xff]
  %v630 = vld [vmem:[%s602 + $0xa4] sm:$0xf]
  %v631 = vld [vmem:[%s602 + $0xa8] sm:$0xff]
  %v632 = vld [vmem:[%s602 + $0xb0] sm:$0xf]
  %v633 = vld [vmem:[%s602 + $0xb4] sm:$0xff]
  %v634 = vld [vmem:[%s602 + $0xbc] sm:$0xf]
  %v635 = vld [vmem:[%s602 + $0xc0] sm:$0xff]
  %v636 = vld [vmem:[%s602 + $0xc8] sm:$0xf]
  %v637 = vld [vmem:[%s602 + $0xcc] sm:$0xff]
  %v638 = vld [vmem:[%s602 + $0xd4] sm:$0xf]
  %v639 = vld [vmem:[%s602 + $0xd8] sm:$0xff]
  %v640 = vld [vmem:[%s602 + $0xe0] sm:$0xf]
  %v641 = vld [vmem:[%s602 + $0xe4] sm:$0xff]
  %v642 = vld [vmem:[%s602 + $0xec] sm:$0xf]
  %v643 = vld [vmem:[%s602 + $0xf0] sm:$0xff]
  %v644 = vld [vmem:[%s602 + $0xf8] sm:$0xf]
  %v645 = vld [vmem:[%s602 + $0xfc] sm:$0xff]
  %v646 = vld [vmem:[%s602 + $0x104] sm:$0xf]
  %v647 = vld [vmem:[%s602 + $0x108] sm:$0xff]
  %v648 = vld [vmem:[%s602 + $0x110] sm:$0xf]
  %v649 = vld [vmem:[%s602 + $0x114] sm:$0xff]
  %v650 = vld [vmem:[%s602 + $0x11c] sm:$0xf]
  %v651 = vld [vmem:[%s602 + $0x120] sm:$0xff]
  %v652 = vld [vmem:[%s602 + $0x128] sm:$0xf]
  %v653 = vld [vmem:[%s602 + $0x12c] sm:$0xff]
  %v654 = vld [vmem:[%s602 + $0x134] sm:$0xf]
  %v655 = vld [vmem:[%s602 + $0x138] sm:$0xff]
  %v656 = vld [vmem:[%s602 + $0x140] sm:$0xf]
  %v657 = vld [vmem:[%s602 + $0x144] sm:$0xff]
  %v658 = vld [vmem:[%s602 + $0x14c] sm:$0xf]
  %v659 = vld [vmem:[%s602 + $0x150] sm:$0xff]
  %v660 = vld [vmem:[%s602 + $0x158] sm:$0xf]
  %v661 = vld [vmem:[%s602 + $0x15c] sm:$0xff]
  %v662 = vld [vmem:[%s602 + $0x164] sm:$0xf]
  %v663 = vld [vmem:[%s602 + $0x168] sm:$0xff]
  %v664 = vld [vmem:[%s602 + $0x170] sm:$0xf]
  %v665 = vld [vmem:[%s602 + $0x174] sm:$0xff]
  %v666 = vld [vmem:[%s602 + $0x17c] sm:$0xf]
  %s667 = scalar_lea.vmem %s3, 3
  %v668 = vld [vmem:[%s667] sm:$0x7]
  %v670 = vperm.slane %v668, 0
  %v671 = vperm.slane %v668, 1
  %v672 = vperm.slane %v668, 2
  %v740 = vunpack.c.l.b16 %v603
  %v741 = vunpack.c.h.b16 %v603
  %v742 = vunpack.c.l.b16 %v604
  %v743 = vunpack.c.l.b16 %v605
  %v744 = vunpack.c.h.b16 %v605
  %v745 = vunpack.c.l.b16 %v606
  %v746 = vunpack.c.l.b16 %v607
  %v747 = vunpack.c.h.b16 %v607
  %v748 = vunpack.c.l.b16 %v608
  %v749 = vunpack.c.l.b16 %v609
  %v750 = vunpack.c.h.b16 %v609
  %v751 = vunpack.c.l.b16 %v610
  %v752 = vunpack.c.l.b16 %v611
  %v753 = vunpack.c.h.b16 %v611
  %v754 = vunpack.c.l.b16 %v612
  %v755 = vunpack.c.l.b16 %v613
  %v756 = vunpack.c.h.b16 %v613
  %v757 = vunpack.c.l.b16 %v614
  %v758 = vunpack.c.l.b16 %v615
  %v759 = vunpack.c.h.b16 %v615
  %v760 = vunpack.c.l.b16 %v616
  %v761 = vunpack.c.l.b16 %v617
  %v762 = vunpack.c.h.b16 %v617
  %v763 = vunpack.c.l.b16 %v618
  %v764 = vunpack.c.l.b16 %v619
  %v765 = vunpack.c.h.b16 %v619
  %v766 = vunpack.c.l.b16 %v620
  %v767 = vunpack.c.l.b16 %v621
  %v768 = vunpack.c.h.b16 %v621
  %v769 = vunpack.c.l.b16 %v622
  %v770 = vunpack.c.l.b16 %v623
  %v771 = vunpack.c.h.b16 %v623
  %v772 = vunpack.c.l.b16 %v624
  %v773 = vunpack.c.l.b16 %v625
  %v774 = vunpack.c.h.b16 %v625
  %v775 = vunpack.c.l.b16 %v626
  %v776 = vunpack.c.l.b16 %v627
  %v777 = vunpack.c.h.b16 %v627
  %v778 = vunpack.c.l.b16 %v628
  %v779 = vunpack.c.l.b16 %v629
  %v780 = vunpack.c.h.b16 %v629
  %v781 = vunpack.c.l.b16 %v630
  %v782 = vunpack.c.l.b16 %v631
  %v783 = vunpack.c.h.b16 %v631
  %v784 = vunpack.c.l.b16 %v632
  %v785 = vunpack.c.l.b16 %v633
  %v786 = vunpack.c.h.b16 %v633
  %v787 = vunpack.c.l.b16 %v634
  %v788 = vunpack.c.l.b16 %v635
  %v789 = vunpack.c.h.b16 %v635
  %v790 = vunpack.c.l.b16 %v636
  %v791 = vunpack.c.l.b16 %v637
  %v792 = vunpack.c.h.b16 %v637
  %v793 = vunpack.c.l.b16 %v638
  %v794 = vunpack.c.l.b16 %v639
  %v795 = vunpack.c.h.b16 %v639
  %v796 = vunpack.c.l.b16 %v640
  %v797 = vunpack.c.l.b16 %v641
  %v798 = vunpack.c.h.b16 %v641
  %v799 = vunpack.c.l.b16 %v642
  %v800 = vunpack.c.l.b16 %v643
  %v801 = vunpack.c.h.b16 %v643
  %v802 = vunpack.c.l.b16 %v644
  %v803 = vunpack.c.l.b16 %v645
  %v804 = vunpack.c.h.b16 %v645
  %v805 = vunpack.c.l.b16 %v646
  %v806 = vunpack.c.l.b16 %v647
  %v807 = vunpack.c.h.b16 %v647
  %v808 = vunpack.c.l.b16 %v648
  %v809 = vunpack.c.l.b16 %v649
  %v810 = vunpack.c.h.b16 %v649
  %v811 = vunpack.c.l.b16 %v650
  %v812 = vunpack.c.l.b16 %v651
  %v813 = vunpack.c.h.b16 %v651
  %v814 = vunpack.c.l.b16 %v652
  %v815 = vunpack.c.l.b16 %v653
  %v816 = vunpack.c.h.b16 %v653
  %v817 = vunpack.c.l.b16 %v654
  %v818 = vunpack.c.l.b16 %v655
  %v819 = vunpack.c.h.b16 %v655
  %v820 = vunpack.c.l.b16 %v656
  %v821 = vunpack.c.l.b16 %v657
  %v822 = vunpack.c.h.b16 %v657
  %v823 = vunpack.c.l.b16 %v658
  %v824 = vunpack.c.l.b16 %v659
  %v825 = vunpack.c.h.b16 %v659
  %v826 = vunpack.c.l.b16 %v660
  %v827 = vunpack.c.l.b16 %v661
  %v828 = vunpack.c.h.b16 %v661
  %v829 = vunpack.c.l.b16 %v662
  %v830 = vunpack.c.l.b16 %v663
  %v831 = vunpack.c.h.b16 %v663
  %v832 = vunpack.c.l.b16 %v664
  %v833 = vunpack.c.l.b16 %v665
  %v834 = vunpack.c.h.b16 %v665
  %v835 = vunpack.c.l.b16 %v666
  %v836 = vpack.c.b16 %v743, %v740
  %v837 = vpack.c.b16 %v744, %v741
  %v838 = vpack.c.b16 %v745, %v742
  %v839 = vpack.c.b16 %v749, %v746
  %v840 = vpack.c.b16 %v750, %v747
  %v841 = vpack.c.b16 %v751, %v748
  %v842 = vpack.c.b16 %v755, %v752
  %v843 = vpack.c.b16 %v756, %v753
  %v844 = vpack.c.b16 %v757, %v754
  %v845 = vpack.c.b16 %v761, %v758
  %v846 = vpack.c.b16 %v762, %v759
  %v847 = vpack.c.b16 %v763, %v760
  %v848 = vpack.c.b16 %v767, %v764
  %v849 = vpack.c.b16 %v768, %v765
  %v850 = vpack.c.b16 %v769, %v766
  %v851 = vpack.c.b16 %v773, %v770
  %v852 = vpack.c.b16 %v774, %v771
  %v853 = vpack.c.b16 %v775, %v772
  %v854 = vpack.c.b16 %v779, %v776
  %v855 = vpack.c.b16 %v780, %v777
  %v856 = vpack.c.b16 %v781, %v778
  %v857 = vpack.c.b16 %v785, %v782
  %v858 = vpack.c.b16 %v786, %v783
  %v859 = vpack.c.b16 %v787, %v784
  %v860 = vpack.c.b16 %v791, %v788
  %v861 = vpack.c.b16 %v792, %v789
  %v862 = vpack.c.b16 %v793, %v790
  %v863 = vpack.c.b16 %v797, %v794
  %v864 = vpack.c.b16 %v798, %v795
  %v865 = vpack.c.b16 %v799, %v796
  %v866 = vpack.c.b16 %v803, %v800
  %v867 = vpack.c.b16 %v804, %v801
  %v868 = vpack.c.b16 %v805, %v802
  %v869 = vpack.c.b16 %v809, %v806
  %v870 = vpack.c.b16 %v810, %v807
  %v871 = vpack.c.b16 %v811, %v808
  %v872 = vpack.c.b16 %v815, %v812
  %v873 = vpack.c.b16 %v816, %v813
  %v874 = vpack.c.b16 %v817, %v814
  %v875 = vpack.c.b16 %v821, %v818
  %v876 = vpack.c.b16 %v822, %v819
  %v877 = vpack.c.b16 %v823, %v820
  %v878 = vpack.c.b16 %v827, %v824
  %v879 = vpack.c.b16 %v828, %v825
  %v880 = vpack.c.b16 %v829, %v826
  %v881 = vpack.c.b16 %v833, %v830
  %v882 = vpack.c.b16 %v834, %v831
  %v883 = vpack.c.b16 %v835, %v832
  %932 = vmatpush.bf16.msra.mxu0 %v857
  %933 = vmatpush.bf16.msra.mxu0 %v854
  %934 = vmatpush.bf16.msra.mxu0 %v851
  %935 = vmatpush.bf16.msra.mxu0 %v848
  %936 = vmatpush.bf16.msra.mxu0 %v845
  %937 = vmatpush.bf16.msra.mxu0 %v842
  %938 = vmatpush.bf16.msra.mxu0 %v839
  %939 = vmatpush.bf16.msra.mxu0 %v836
  %940 = vmatmul.bf16.gmra.mxu0 %v68
  %v941 = vpop.f32.mrf.mxu0
  %v942 = vadd.f32 %v670, %v941
  %v943 = vpop.f32.mrf.mxu0
  %v944 = vadd.f32 %v670, %v943
  %945 = vmatmul.bf16.gmra.mxu0 %v70
  %v946 = vpop.f32.mrf.mxu0
  %v947 = vadd.f32 %v670, %v946
  %v948 = vpop.f32.mrf.mxu0
  %v949 = vadd.f32 %v670, %v948
  %950 = vmatmul.bf16.gmra.mxu0 %v72
  %v951 = vpop.f32.mrf.mxu0
  %v952 = vadd.f32 %v670, %v951
  %v953 = vpop.f32.mrf.mxu0
  %v954 = vadd.f32 %v670, %v953
  %955 = vmatmul.bf16.gmra.mxu0 %v74
  %v956 = vpop.f32.mrf.mxu0
  %v957 = vadd.f32 %v670, %v956
  %v958 = vpop.f32.mrf.mxu0
  %v959 = vadd.f32 %v670, %v958
  %960 = vdwg.mxu0
  %961 = vmatpush.bf16.msra.mxu0 %v881
  %962 = vmatpush.bf16.msra.mxu0 %v878
  %963 = vmatpush.bf16.msra.mxu0 %v875
  %964 = vmatpush.bf16.msra.mxu0 %v872
  %965 = vmatpush.bf16.msra.mxu0 %v869
  %966 = vmatpush.bf16.msra.mxu0 %v866
  %967 = vmatpush.bf16.msra.mxu0 %v863
  %968 = vmatpush.bf16.msra.mxu0 %v860
  %969 = vmatmul.bf16.gmra.mxu0 %v69
  %v970 = vpop.f32.mrf.mxu0
  %v971 = vadd.f32 %v942, %v970
  %v972 = vpop.f32.mrf.mxu0
  %v973 = vadd.f32 %v944, %v972
  %974 = vmatmul.bf16.gmra.mxu0 %v71
  %v975 = vpop.f32.mrf.mxu0
  %v976 = vadd.f32 %v947, %v975
  %v977 = vpop.f32.mrf.mxu0
  %v978 = vadd.f32 %v949, %v977
  %979 = vmatmul.bf16.gmra.mxu0 %v73
  %v980 = vpop.f32.mrf.mxu0
  %v981 = vadd.f32 %v952, %v980
  %v982 = vpop.f32.mrf.mxu0
  %v983 = vadd.f32 %v954, %v982
  %984 = vmatmul.bf16.gmra.mxu0 %v75
  %v985 = vpop.f32.mrf.mxu0
  %v986 = vadd.f32 %v957, %v985
  %v987 = vpop.f32.mrf.mxu0
  %v988 = vadd.f32 %v959, %v987
  %989 = vdwg.mxu0
  %990 = vmatpush.bf16.msra.mxu0 %v858
  %991 = vmatpush.bf16.msra.mxu0 %v855
  %992 = vmatpush.bf16.msra.mxu0 %v852
  %993 = vmatpush.bf16.msra.mxu0 %v849
  %994 = vmatpush.bf16.msra.mxu0 %v846
  %995 = vmatpush.bf16.msra.mxu0 %v843
  %996 = vmatpush.bf16.msra.mxu0 %v840
  %997 = vmatpush.bf16.msra.mxu0 %v837
  %998 = vmatmul.bf16.gmra.mxu0 %v68
  %v999 = vpop.f32.mrf.mxu0
  %v1000 = vadd.f32 %v671, %v999
  %v1001 = vpop.f32.mrf.mxu0
  %v1002 = vadd.f32 %v671, %v1001
  %1003 = vmatmul.bf16.gmra.mxu0 %v70
  %v1004 = vpop.f32.mrf.mxu0
  %v1005 = vadd.f32 %v671, %v1004
  %v1006 = vpop.f32.mrf.mxu0
  %v1007 = vadd.f32 %v671, %v1006
  %1008 = vmatmul.bf16.gmra.mxu0 %v72
  %v1009 = vpop.f32.mrf.mxu0
  %v1010 = vadd.f32 %v671, %v1009
  %v1011 = vpop.f32.mrf.mxu0
  %v1012 = vadd.f32 %v671, %v1011
  %1013 = vmatmul.bf16.gmra.mxu0 %v74
  %v1014 = vpop.f32.mrf.mxu0
  %v1015 = vadd.f32 %v671, %v1014
  %v1016 = vpop.f32.mrf.mxu0
  %v1017 = vadd.f32 %v671, %v1016
  %1018 = vdwg.mxu0
  %1019 = vmatpush.bf16.msra.mxu0 %v882
  %1020 = vmatpush.bf16.msra.mxu0 %v879
  %1021 = vmatpush.bf16.msra.mxu0 %v876
  %1022 = vmatpush.bf16.msra.mxu0 %v873
  %1023 = vmatpush.bf16.msra.mxu0 %v870
  %1024 = vmatpush.bf16.msra.mxu0 %v867
  %1025 = vmatpush.bf16.msra.mxu0 %v864
  %1026 = vmatpush.bf16.msra.mxu0 %v861
  %1027 = vmatmul.bf16.gmra.mxu0 %v69
  %v1028 = vpop.f32.mrf.mxu0
  %v1029 = vadd.f32 %v1000, %v1028
  %v1030 = vpop.f32.mrf.mxu0
  %v1031 = vadd.f32 %v1002, %v1030
  %1032 = vmatmul.bf16.gmra.mxu0 %v71
  %v1033 = vpop.f32.mrf.mxu0
  %v1034 = vadd.f32 %v1005, %v1033
  %v1035 = vpop.f32.mrf.mxu0
  %v1036 = vadd.f32 %v1007, %v1035
  %1037 = vmatmul.bf16.gmra.mxu0 %v73
  %v1038 = vpop.f32.mrf.mxu0
  %v1039 = vadd.f32 %v1010, %v1038
  %v1040 = vpop.f32.mrf.mxu0
  %v1041 = vadd.f32 %v1012, %v1040
  %1042 = vmatmul.bf16.gmra.mxu0 %v75
  %v1043 = vpop.f32.mrf.mxu0
  %v1044 = vadd.f32 %v1015, %v1043
  %v1045 = vpop.f32.mrf.mxu0
  %v1046 = vadd.f32 %v1017, %v1045
  %1047 = vdwg.mxu0
  %1048 = vmatpush.bf16.msra.mxu0 %v859
  %1049 = vmatpush.bf16.msra.mxu0 %v856
  %1050 = vmatpush.bf16.msra.mxu0 %v853
  %1051 = vmatpush.bf16.msra.mxu0 %v850
  %1052 = vmatpush.bf16.msra.mxu0 %v847
  %1053 = vmatpush.bf16.msra.mxu0 %v844
  %1054 = vmatpush.bf16.msra.mxu0 %v841
  %1055 = vmatpush.bf16.msra.mxu0 %v838
  %1056 = vmatmul.bf16.gmra.mxu0 %v68
  %v1057 = vpop.f32.mrf.mxu0
  %v1058 = vadd.f32 %v672, %v1057
  %v1059 = vpop.f32.mrf.mxu0
  %v1060 = vadd.f32 %v672, %v1059
  %1061 = vmatmul.bf16.gmra.mxu0 %v70
  %v1062 = vpop.f32.mrf.mxu0
  %v1063 = vadd.f32 %v672, %v1062
  %v1064 = vpop.f32.mrf.mxu0
  %v1065 = vadd.f32 %v672, %v1064
  %1066 = vmatmul.bf16.gmra.mxu0 %v72
  %v1067 = vpop.f32.mrf.mxu0
  %v1068 = vadd.f32 %v672, %v1067
  %v1069 = vpop.f32.mrf.mxu0
  %v1070 = vadd.f32 %v672, %v1069
  %1071 = vmatmul.bf16.gmra.mxu0 %v74
  %v1072 = vpop.f32.mrf.mxu0
  %v1073 = vadd.f32 %v672, %v1072
  %v1074 = vpop.f32.mrf.mxu0
  %v1075 = vadd.f32 %v672, %v1074
  %1076 = vdwg.mxu0
  %1077 = vmatpush.bf16.msra.mxu0 %v883
  %1078 = vmatpush.bf16.msra.mxu0 %v880
  %1079 = vmatpush.bf16.msra.mxu0 %v877
  %1080 = vmatpush.bf16.msra.mxu0 %v874
  %1081 = vmatpush.bf16.msra.mxu0 %v871
  %1082 = vmatpush.bf16.msra.mxu0 %v868
  %1083 = vmatpush.bf16.msra.mxu0 %v865
  %1084 = vmatpush.bf16.msra.mxu0 %v862
  %1085 = vmatmul.bf16.gmra.mxu0 %v69
  %v1086 = vpop.f32.mrf.mxu0
  %v1087 = vadd.f32 %v1058, %v1086
  %v1088 = vpop.f32.mrf.mxu0
  %v1089 = vadd.f32 %v1060, %v1088
  %1090 = vmatmul.bf16.gmra.mxu0 %v71
  %v1091 = vpop.f32.mrf.mxu0
  %v1092 = vadd.f32 %v1063, %v1091
  %v1093 = vpop.f32.mrf.mxu0
  %v1094 = vadd.f32 %v1065, %v1093
  %1095 = vmatmul.bf16.gmra.mxu0 %v73
  %v1096 = vpop.f32.mrf.mxu0
  %v1097 = vadd.f32 %v1068, %v1096
  %v1098 = vpop.f32.mrf.mxu0
  %v1099 = vadd.f32 %v1070, %v1098
  %1100 = vmatmul.bf16.gmra.mxu0 %v75
  %v1101 = vpop.f32.mrf.mxu0
  %v1102 = vadd.f32 %v1073, %v1101
  %v1103 = vpop.f32.mrf.mxu0
  %v1104 = vadd.f32 %v1075, %v1103
  %1105 = vdwg.mxu0
  %1106 = vst [vmem:[#allocation3] sm:$0xff] %v971
  %1107 = vst [vmem:[#allocation3 + $0x8] sm:$0xff] %v1029
  %1108 = vst [vmem:[#allocation3 + $0x10] sm:$0xff] %v1087
  %1109 = vst [vmem:[#allocation3 + $0x18] sm:$0xff] %v973
  %1110 = vst [vmem:[#allocation3 + $0x20] sm:$0xff] %v1031
  %1111 = vst [vmem:[#allocation3 + $0x28] sm:$0xff] %v1089
  %1112 = vst [vmem:[#allocation3 + $0x30] sm:$0xff] %v976
  %1113 = vst [vmem:[#allocation3 + $0x38] sm:$0xff] %v1034
  %1114 = vst [vmem:[#allocation3 + $0x40] sm:$0xff] %v1092
  %1115 = vst [vmem:[#allocation3 + $0x48] sm:$0xff] %v978
  %1116 = vst [vmem:[#allocation3 + $0x50] sm:$0xff] %v1036
  %1117 = vst [vmem:[#allocation3 + $0x58] sm:$0xff] %v1094
  %1118 = vst [vmem:[#allocation3 + $0x60] sm:$0xff] %v981
  %1119 = vst [vmem:[#allocation3 + $0x68] sm:$0xff] %v1039
  %1120 = vst [vmem:[#allocation3 + $0x70] sm:$0xff] %v1097
  %1121 = vst [vmem:[#allocation3 + $0x78] sm:$0xff] %v983
  %1122 = vst [vmem:[#allocation3 + $0x80] sm:$0xff] %v1041
  %1123 = vst [vmem:[#allocation3 + $0x88] sm:$0xff] %v1099
  %1124 = vst [vmem:[#allocation3 + $0x90] sm:$0xff] %v986
  %1125 = vst [vmem:[#allocation3 + $0x98] sm:$0xff] %v1044
  %1126 = vst [vmem:[#allocation3 + $0xa0] sm:$0xff] %v1102
  %1127 = vst [vmem:[#allocation3 + $0xa8] sm:$0xff] %v988
  %1128 = vst [vmem:[#allocation3 + $0xb0] sm:$0xff] %v1046
  %1129 = vst [vmem:[#allocation3 + $0xb8] sm:$0xff] %v1104
  %v1130 = vld [vmem:[%s2] sm:$0xff]
  %v1131 = vld [vmem:[%s2 + $0x8] sm:$0xf]
  %v1132 = vld [vmem:[%s2 + $0xc] sm:$0xff]
  %v1133 = vld [vmem:[%s2 + $0x14] sm:$0xf]
  %v1134 = vld [vmem:[%s2 + $0x18] sm:$0xff]
  %v1135 = vld [vmem:[%s2 + $0x20] sm:$0xf]
  %v1136 = vld [vmem:[%s2 + $0x24] sm:$0xff]
  %v1137 = vld [vmem:[%s2 + $0x2c] sm:$0xf]
  %v1138 = vld [vmem:[%s2 + $0x30] sm:$0xff]
  %v1139 = vld [vmem:[%s2 + $0x38] sm:$0xf]
  %v1140 = vld [vmem:[%s2 + $0x3c] sm:$0xff]
  %v1141 = vld [vmem:[%s2 + $0x44] sm:$0xf]
  %v1142 = vld [vmem:[%s2 + $0x48] sm:$0xff]
  %v1143 = vld [vmem:[%s2 + $0x50] sm:$0xf]
  %v1144 = vld [vmem:[%s2 + $0x54] sm:$0xff]
  %v1145 = vld [vmem:[%s2 + $0x5c] sm:$0xf]
  %v1146 = vld [vmem:[%s2 + $0x60] sm:$0xff]
  %v1147 = vld [vmem:[%s2 + $0x68] sm:$0xf]
  %v1148 = vld [vmem:[%s2 + $0x6c] sm:$0xff]
  %v1149 = vld [vmem:[%s2 + $0x74] sm:$0xf]
  %v1150 = vld [vmem:[%s2 + $0x78] sm:$0xff]
  %v1151 = vld [vmem:[%s2 + $0x80] sm:$0xf]
  %v1152 = vld [vmem:[%s2 + $0x84] sm:$0xff]
  %v1153 = vld [vmem:[%s2 + $0x8c] sm:$0xf]
  %v1154 = vld [vmem:[%s2 + $0x90] sm:$0xff]
  %v1155 = vld [vmem:[%s2 + $0x98] sm:$0xf]
  %v1156 = vld [vmem:[%s2 + $0x9c] sm:$0xff]
  %v1157 = vld [vmem:[%s2 + $0xa4] sm:$0xf]
  %v1158 = vld [vmem:[%s2 + $0xa8] sm:$0xff]
  %v1159 = vld [vmem:[%s2 + $0xb0] sm:$0xf]
  %v1160 = vld [vmem:[%s2 + $0xb4] sm:$0xff]
  %v1161 = vld [vmem:[%s2 + $0xbc] sm:$0xf]
  %s1162 = scalar_lea.vmem %s2, 192
  %v1163 = vld [vmem:[%s1162] sm:$0xff]
  %v1164 = vld [vmem:[%s1162 + $0x8] sm:$0xf]
  %v1165 = vld [vmem:[%s1162 + $0xc] sm:$0xff]
  %v1166 = vld [vmem:[%s1162 + $0x14] sm:$0xf]
  %v1167 = vld [vmem:[%s1162 + $0x18] sm:$0xff]
  %v1168 = vld [vmem:[%s1162 + $0x20] sm:$0xf]
  %v1169 = vld [vmem:[%s1162 + $0x24] sm:$0xff]
  %v1170 = vld [vmem:[%s1162 + $0x2c] sm:$0xf]
  %v1171 = vld [vmem:[%s1162 + $0x30] sm:$0xff]
  %v1172 = vld [vmem:[%s1162 + $0x38] sm:$0xf]
  %v1173 = vld [vmem:[%s1162 + $0x3c] sm:$0xff]
  %v1174 = vld [vmem:[%s1162 + $0x44] sm:$0xf]
  %v1175 = vld [vmem:[%s1162 + $0x48] sm:$0xff]
  %v1176 = vld [vmem:[%s1162 + $0x50] sm:$0xf]
  %v1177 = vld [vmem:[%s1162 + $0x54] sm:$0xff]
  %v1178 = vld [vmem:[%s1162 + $0x5c] sm:$0xf]
  %v1179 = vld [vmem:[%s1162 + $0x60] sm:$0xff]
  %v1180 = vld [vmem:[%s1162 + $0x68] sm:$0xf]
  %v1181 = vld [vmem:[%s1162 + $0x6c] sm:$0xff]
  %v1182 = vld [vmem:[%s1162 + $0x74] sm:$0xf]
  %v1183 = vld [vmem:[%s1162 + $0x78] sm:$0xff]
  %v1184 = vld [vmem:[%s1162 + $0x80] sm:$0xf]
  %v1185 = vld [vmem:[%s1162 + $0x84] sm:$0xff]
  %v1186 = vld [vmem:[%s1162 + $0x8c] sm:$0xf]
  %v1187 = vld [vmem:[%s1162 + $0x90] sm:$0xff]
  %v1188 = vld [vmem:[%s1162 + $0x98] sm:$0xf]
  %v1189 = vld [vmem:[%s1162 + $0x9c] sm:$0xff]
  %v1190 = vld [vmem:[%s1162 + $0xa4] sm:$0xf]
  %v1191 = vld [vmem:[%s1162 + $0xa8] sm:$0xff]
  %v1192 = vld [vmem:[%s1162 + $0xb0] sm:$0xf]
  %v1193 = vld [vmem:[%s1162 + $0xb4] sm:$0xff]
  %v1194 = vld [vmem:[%s1162 + $0xbc] sm:$0xf]
  %v1195 = vld [vmem:[%s4] sm:$0x1]
  %s1196 = scalar_lea.vmem %s4, 1
  %v1197 = vld [vmem:[%s1196] sm:$0x1]
  %v1230 = vunpack.c.l.b16 %v1130
  %v1231 = vunpack.c.h.b16 %v1130
  %v1232 = vunpack.c.l.b16 %v1131
  %v1233 = vunpack.c.l.b16 %v1132
  %v1234 = vunpack.c.h.b16 %v1132
  %v1235 = vunpack.c.l.b16 %v1133
  %v1236 = vunpack.c.l.b16 %v1134
  %v1237 = vunpack.c.h.b16 %v1134
  %v1238 = vunpack.c.l.b16 %v1135
  %v1239 = vunpack.c.l.b16 %v1136
  %v1240 = vunpack.c.h.b16 %v1136
  %v1241 = vunpack.c.l.b16 %v1137
  %v1242 = vunpack.c.l.b16 %v1138
  %v1243 = vunpack.c.h.b16 %v1138
  %v1244 = vunpack.c.l.b16 %v1139
  %v1245 = vunpack.c.l.b16 %v1140
  %v1246 = vunpack.c.h.b16 %v1140
  %v1247 = vunpack.c.l.b16 %v1141
  %v1248 = vunpack.c.l.b16 %v1142
  %v1249 = vunpack.c.h.b16 %v1142
  %v1250 = vunpack.c.l.b16 %v1143
  %v1251 = vunpack.c.l.b16 %v1144
  %v1252 = vunpack.c.h.b16 %v1144
  %v1253 = vunpack.c.l.b16 %v1145
  %v1254 = vunpack.c.l.b16 %v1146
  %v1255 = vunpack.c.h.b16 %v1146
  %v1256 = vunpack.c.l.b16 %v1147
  %v1257 = vunpack.c.l.b16 %v1148
  %v1258 = vunpack.c.h.b16 %v1148
  %v1259 = vunpack.c.l.b16 %v1149
  %v1260 = vunpack.c.l.b16 %v1150
  %v1261 = vunpack.c.h.b16 %v1150
  %v1262 = vunpack.c.l.b16 %v1151
  %v1263 = vunpack.c.l.b16 %v1152
  %v1264 = vunpack.c.h.b16 %v1152
  %v1265 = vunpack.c.l.b16 %v1153
  %v1266 = vunpack.c.l.b16 %v1154
  %v1267 = vunpack.c.h.b16 %v1154
  %v1268 = vunpack.c.l.b16 %v1155
  %v1269 = vunpack.c.l.b16 %v1156
  %v1270 = vunpack.c.h.b16 %v1156
  %v1271 = vunpack.c.l.b16 %v1157
  %v1272 = vunpack.c.l.b16 %v1158
  %v1273 = vunpack.c.h.b16 %v1158
  %v1274 = vunpack.c.l.b16 %v1159
  %v1275 = vunpack.c.l.b16 %v1160
  %v1276 = vunpack.c.h.b16 %v1160
  %v1277 = vunpack.c.l.b16 %v1161
  %v1278 = vpack.c.b16 %v1233, %v1230
  %v1279 = vpack.c.b16 %v1234, %v1231
  %v1280 = vpack.c.b16 %v1235, %v1232
  %v1281 = vpack.c.b16 %v1239, %v1236
  %v1282 = vpack.c.b16 %v1240, %v1237
  %v1283 = vpack.c.b16 %v1241, %v1238
  %v1284 = vpack.c.b16 %v1245, %v1242
  %v1285 = vpack.c.b16 %v1246, %v1243
  %v1286 = vpack.c.b16 %v1247, %v1244
  %v1287 = vpack.c.b16 %v1251, %v1248
  %v1288 = vpack.c.b16 %v1252, %v1249
  %v1289 = vpack.c.b16 %v1253, %v1250
  %v1290 = vpack.c.b16 %v1257, %v1254
  %v1291 = vpack.c.b16 %v1258, %v1255
  %v1292 = vpack.c.b16 %v1259, %v1256
  %v1293 = vpack.c.b16 %v1263, %v1260
  %v1294 = vpack.c.b16 %v1264, %v1261
  %v1295 = vpack.c.b16 %v1265, %v1262
  %v1296 = vpack.c.b16 %v1269, %v1266
  %v1297 = vpack.c.b16 %v1270, %v1267
  %v1298 = vpack.c.b16 %v1271, %v1268
  %v1299 = vpack.c.b16 %v1275, %v1272
  %v1300 = vpack.c.b16 %v1276, %v1273
  %v1301 = vpack.c.b16 %v1277, %v1274
  %1326 = vmatpush.bf16.msra.mxu0 %v1299
  %1327 = vmatpush.bf16.msra.mxu0 %v1296
  %1328 = vmatpush.bf16.msra.mxu0 %v1293
  %1329 = vmatpush.bf16.msra.mxu0 %v1290
  %1330 = vmatpush.bf16.msra.mxu0 %v1287
  %1331 = vmatpush.bf16.msra.mxu0 %v1284
  %1332 = vmatpush.bf16.msra.mxu0 %v1281
  %1333 = vmatpush.bf16.msra.mxu0 %v1278
  %1334 = vmatmul.bf16.gmra.mxu0 0
  %v1335 = vpop.f32.mrf.mxu0
  %v1336 = vadd.f32 0.0, %v1335
  %v1337 = vpop.f32.mrf.mxu0
  %1338 = vdwg.mxu0
  %1339 = vmatpush.bf16.msra.mxu0 %v1300
  %1340 = vmatpush.bf16.msra.mxu0 %v1297
  %1341 = vmatpush.bf16.msra.mxu0 %v1294
  %1342 = vmatpush.bf16.msra.mxu0 %v1291
  %1343 = vmatpush.bf16.msra.mxu0 %v1288
  %1344 = vmatpush.bf16.msra.mxu0 %v1285
  %1345 = vmatpush.bf16.msra.mxu0 %v1282
  %1346 = vmatpush.bf16.msra.mxu0 %v1279
  %1347 = vmatmul.bf16.gmra.mxu0 0
  %v1348 = vpop.f32.mrf.mxu0
  %v1349 = vadd.f32 0.0, %v1348
  %v1350 = vpop.f32.mrf.mxu0
  %1351 = vdwg.mxu0
  %1352 = vmatpush.bf16.msra.mxu0 %v1301
  %1353 = vmatpush.bf16.msra.mxu0 %v1298
  %1354 = vmatpush.bf16.msra.mxu0 %v1295
  %1355 = vmatpush.bf16.msra.mxu0 %v1292
  %1356 = vmatpush.bf16.msra.mxu0 %v1289
  %1357 = vmatpush.bf16.msra.mxu0 %v1286
  %1358 = vmatpush.bf16.msra.mxu0 %v1283
  %1359 = vmatpush.bf16.msra.mxu0 %v1280
  %1360 = vmatmul.bf16.gmra.mxu0 0
  %v1361 = vpop.f32.mrf.mxu0
  %v1362 = vadd.f32 0.0, %v1361
  %v1363 = vpop.f32.mrf.mxu0
  %1364 = vdwg.mxu0
  %v1397 = vunpack.c.l.b16 %v1163
  %v1398 = vunpack.c.h.b16 %v1163
  %v1399 = vunpack.c.l.b16 %v1164
  %v1400 = vunpack.c.l.b16 %v1165
  %v1401 = vunpack.c.h.b16 %v1165
  %v1402 = vunpack.c.l.b16 %v1166
  %v1403 = vunpack.c.l.b16 %v1167
  %v1404 = vunpack.c.h.b16 %v1167
  %v1405 = vunpack.c.l.b16 %v1168
  %v1406 = vunpack.c.l.b16 %v1169
  %v1407 = vunpack.c.h.b16 %v1169
  %v1408 = vunpack.c.l.b16 %v1170
  %v1409 = vunpack.c.l.b16 %v1171
  %v1410 = vunpack.c.h.b16 %v1171
  %v1411 = vunpack.c.l.b16 %v1172
  %v1412 = vunpack.c.l.b16 %v1173
  %v1413 = vunpack.c.h.b16 %v1173
  %v1414 = vunpack.c.l.b16 %v1174
  %v1415 = vunpack.c.l.b16 %v1175
  %v1416 = vunpack.c.h.b16 %v1175
  %v1417 = vunpack.c.l.b16 %v1176
  %v1418 = vunpack.c.l.b16 %v1177
  %v1419 = vunpack.c.h.b16 %v1177
  %v1420 = vunpack.c.l.b16 %v1178
  %v1421 = vunpack.c.l.b16 %v1179
  %v1422 = vunpack.c.h.b16 %v1179
  %v1423 = vunpack.c.l.b16 %v1180
  %v1424 = vunpack.c.l.b16 %v1181
  %v1425 = vunpack.c.h.b16 %v1181
  %v1426 = vunpack.c.l.b16 %v1182
  %v1427 = vunpack.c.l.b16 %v1183
  %v1428 = vunpack.c.h.b16 %v1183
  %v1429 = vunpack.c.l.b16 %v1184
  %v1430 = vunpack.c.l.b16 %v1185
  %v1431 = vunpack.c.h.b16 %v1185
  %v1432 = vunpack.c.l.b16 %v1186
  %v1433 = vunpack.c.l.b16 %v1187
  %v1434 = vunpack.c.h.b16 %v1187
  %v1435 = vunpack.c.l.b16 %v1188
  %v1436 = vunpack.c.l.b16 %v1189
  %v1437 = vunpack.c.h.b16 %v1189
  %v1438 = vunpack.c.l.b16 %v1190
  %v1439 = vunpack.c.l.b16 %v1191
  %v1440 = vunpack.c.h.b16 %v1191
  %v1441 = vunpack.c.l.b16 %v1192
  %v1442 = vunpack.c.l.b16 %v1193
  %v1443 = vunpack.c.h.b16 %v1193
  %v1444 = vunpack.c.l.b16 %v1194
  %v1445 = vpack.c.b16 %v1400, %v1397
  %v1446 = vpack.c.b16 %v1401, %v1398
  %v1447 = vpack.c.b16 %v1402, %v1399
  %v1448 = vpack.c.b16 %v1406, %v1403
  %v1449 = vpack.c.b16 %v1407, %v1404
  %v1450 = vpack.c.b16 %v1408, %v1405
  %v1451 = vpack.c.b16 %v1412, %v1409
  %v1452 = vpack.c.b16 %v1413, %v1410
  %v1453 = vpack.c.b16 %v1414, %v1411
  %v1454 = vpack.c.b16 %v1418, %v1415
  %v1455 = vpack.c.b16 %v1419, %v1416
  %v1456 = vpack.c.b16 %v1420, %v1417
  %v1457 = vpack.c.b16 %v1424, %v1421
  %v1458 = vpack.c.b16 %v1425, %v1422
  %v1459 = vpack.c.b16 %v1426, %v1423
  %v1460 = vpack.c.b16 %v1430, %v1427
  %v1461 = vpack.c.b16 %v1431, %v1428
  %v1462 = vpack.c.b16 %v1432, %v1429
  %v1463 = vpack.c.b16 %v1436, %v1433
  %v1464 = vpack.c.b16 %v1437, %v1434
  %v1465 = vpack.c.b16 %v1438, %v1435
  %v1466 = vpack.c.b16 %v1442, %v1439
  %v1467 = vpack.c.b16 %v1443, %v1440
  %v1468 = vpack.c.b16 %v1444, %v1441
  %1493 = vmatpush.bf16.msra.mxu0 %v1466
  %1494 = vmatpush.bf16.msra.mxu0 %v1463
  %1495 = vmatpush.bf16.msra.mxu0 %v1460
  %1496 = vmatpush.bf16.msra.mxu0 %v1457
  %1497 = vmatpush.bf16.msra.mxu0 %v1454
  %1498 = vmatpush.bf16.msra.mxu0 %v1451
  %1499 = vmatpush.bf16.msra.mxu0 %v1448
  %1500 = vmatpush.bf16.msra.mxu0 %v1445
  %1501 = vmatmul.bf16.gmra.mxu0 0
  %v1502 = vpop.f32.mrf.mxu0
  %v1503 = vadd.f32 0.0, %v1502
  %v1504 = vpop.f32.mrf.mxu0
  %1505 = vdwg.mxu0
  %1506 = vmatpush.bf16.msra.mxu0 %v1467
  %1507 = vmatpush.bf16.msra.mxu0 %v1464
  %1508 = vmatpush.bf16.msra.mxu0 %v1461
  %1509 = vmatpush.bf16.msra.mxu0 %v1458
  %1510 = vmatpush.bf16.msra.mxu0 %v1455
  %1511 = vmatpush.bf16.msra.mxu0 %v1452
  %1512 = vmatpush.bf16.msra.mxu0 %v1449
  %1513 = vmatpush.bf16.msra.mxu0 %v1446
  %1514 = vmatmul.bf16.gmra.mxu0 0
  %v1515 = vpop.f32.mrf.mxu0
  %v1516 = vadd.f32 0.0, %v1515
  %v1517 = vpop.f32.mrf.mxu0
  %1518 = vdwg.mxu0
  %1519 = vmatpush.bf16.msra.mxu0 %v1468
  %1520 = vmatpush.bf16.msra.mxu0 %v1465
  %1521 = vmatpush.bf16.msra.mxu0 %v1462
  %1522 = vmatpush.bf16.msra.mxu0 %v1459
  %1523 = vmatpush.bf16.msra.mxu0 %v1456
  %1524 = vmatpush.bf16.msra.mxu0 %v1453
  %1525 = vmatpush.bf16.msra.mxu0 %v1450
  %1526 = vmatpush.bf16.msra.mxu0 %v1447
  %1527 = vmatmul.bf16.gmra.mxu0 0
  %v1528 = vpop.f32.mrf.mxu0
  %v1529 = vadd.f32 0.0, %v1528
  %v1530 = vpop.f32.mrf.mxu0
  %1531 = vdwg.mxu0
  %v1532 = vld [vmem:[#allocation2] sm:$0xff]
  %v1533 = vld [vmem:[#allocation2 + $0x8] sm:$0xff]
  %v1534 = vld [vmem:[#allocation2 + $0x10] sm:$0xff]
  %v1535 = vadd.f32 %v1532, %v1336
  %v1536 = vxor.u32 %v1535, 2147483648
  %v1537 = vmul.f32 %v1536, 1.442695
  %v1538 = vpow.pop %v1537
  %v1539 = vadd.f32 %v1538, 1.0
  %v1540 = vrcp.pop %v1539
  %v1541 = vmul.f32 %v1539, %v1540
  %v1542 = vsub.f32 1.0, %v1541
  %v1543 = vmul.f32 %v1540, %v1542
  %v1544 = vadd.f32 %v1540, %v1543
  %vm1545 = vweird.f32 %v1539
  %vm1546 = vweird.f32 %v1540
  %vm1547 = vmor %vm1545, %vm1546
  %v1548 = vsel %vm1547, %v1540, %v1544
  %v1549 = vand.u32 2147483647, %v1539
  %vm1550 = vcmp.eq.f32.partialorder %v1549, 8.507059e+37
  %v1551 = vand.u32 %v1539, 2147483648
  %v1552 = vor.u32 1.1754944e-38, %v1551
  %v1553 = vsel %vm1550, %v1552, %v1548
  %v1554 = vmul.f32 1.0, %v1553
  %v1555 = vadd.f32 %v1533, %v1349
  %v1556 = vxor.u32 %v1555, 2147483648
  %v1557 = vmul.f32 %v1556, 1.442695
  %v1558 = vpow.pop %v1557
  %v1559 = vadd.f32 %v1558, 1.0
  %v1560 = vrcp.pop %v1559
  %v1561 = vmul.f32 %v1559, %v1560
  %v1562 = vsub.f32 1.0, %v1561
  %v1563 = vmul.f32 %v1560, %v1562
  %v1564 = vadd.f32 %v1560, %v1563
  %vm1565 = vweird.f32 %v1559
  %vm1566 = vweird.f32 %v1560
  %vm1567 = vmor %vm1565, %vm1566
  %v1568 = vsel %vm1567, %v1560, %v1564
  %v1569 = vand.u32 2147483647, %v1559
  %vm1570 = vcmp.eq.f32.partialorder %v1569, 8.507059e+37
  %v1571 = vand.u32 %v1559, 2147483648
  %v1572 = vor.u32 1.1754944e-38, %v1571
  %v1573 = vsel %vm1570, %v1572, %v1568
  %v1574 = vmul.f32 1.0, %v1573
  %v1576 = vperm.slane %v1195, 0
  %v1578 = vadd.f32 %v1362, %v1576
  %v1579 = vmul.f32 %v1554, %v1578
  %v1580 = vadd.f32 %v1534, %v1579
  %v1581 = vtanh.pop %v1580
  %v1582 = vsub.f32 1.0, %v1574
  %v1583 = vmul.f32 %v1582, %v1581
  %v1584 = vmul.f32 %v1574, 0.0
  %v1585 = vadd.f32 %v1583, %v1584
  %v1586 = vld [vmem:[#allocation3] sm:$0xff]
  %v1587 = vld [vmem:[#allocation3 + $0x8] sm:$0xff]
  %v1588 = vld [vmem:[#allocation3 + $0x10] sm:$0xff]
  %v1589 = vadd.f32 %v1586, %v1503
  %v1590 = vxor.u32 %v1589, 2147483648
  %v1591 = vmul.f32 %v1590, 1.442695
  %v1592 = vpow.pop %v1591
  %v1593 = vadd.f32 %v1592, 1.0
  %v1594 = vrcp.pop %v1593
  %v1595 = vmul.f32 %v1593, %v1594
  %v1596 = vsub.f32 1.0, %v1595
  %v1597 = vmul.f32 %v1594, %v1596
  %v1598 = vadd.f32 %v1594, %v1597
  %vm1599 = vweird.f32 %v1593
  %vm1600 = vweird.f32 %v1594
  %vm1601 = vmor %vm1599, %vm1600
  %v1602 = vsel %vm1601, %v1594, %v1598
  %v1603 = vand.u32 2147483647, %v1593
  %vm1604 = vcmp.eq.f32.partialorder %v1603, 8.507059e+37
  %v1605 = vand.u32 %v1593, 2147483648
  %v1606 = vor.u32 1.1754944e-38, %v1605
  %v1607 = vsel %vm1604, %v1606, %v1602
  %v1608 = vmul.f32 1.0, %v1607
  %v1609 = vadd.f32 %v1587, %v1516
  %v1610 = vxor.u32 %v1609, 2147483648
  %v1611 = vmul.f32 %v1610, 1.442695
  %v1612 = vpow.pop %v1611
  %v1613 = vadd.f32 %v1612, 1.0
  %v1614 = vrcp.pop %v1613
  %v1615 = vmul.f32 %v1613, %v1614
  %v1616 = vsub.f32 1.0, %v1615
  %v1617 = vmul.f32 %v1614, %v1616
  %v1618 = vadd.f32 %v1614, %v1617
  %vm1619 = vweird.f32 %v1613
  %vm1620 = vweird.f32 %v1614
  %vm1621 = vmor %vm1619, %vm1620
  %v1622 = vsel %vm1621, %v1614, %v1618
  %v1623 = vand.u32 2147483647, %v1613
  %vm1624 = vcmp.eq.f32.partialorder %v1623, 8.507059e+37
  %v1625 = vand.u32 %v1613, 2147483648
  %v1626 = vor.u32 1.1754944e-38, %v1625
  %v1627 = vsel %vm1624, %v1626, %v1622
  %v1628 = vmul.f32 1.0, %v1627
  %v1630 = vperm.slane %v1197, 0
  %v1632 = vadd.f32 %v1529, %v1630
  %v1633 = vmul.f32 %v1608, %v1632
  %v1634 = vadd.f32 %v1588, %v1633
  %v1635 = vtanh.pop %v1634
  %v1636 = vsub.f32 1.0, %v1628
  %v1637 = vmul.f32 %v1636, %v1635
  %v1638 = vmul.f32 %v1628, 0.0
  %v1639 = vadd.f32 %v1637, %v1638
  %v1640 = vpack.c.bf16 %v1585, %v1585
  %1641 = vmatpush.bf16.msra.mxu0 %v1299
  %1642 = vmatpush.bf16.msra.mxu0 %v1296
  %1643 = vmatpush.bf16.msra.mxu0 %v1293
  %1644 = vmatpush.bf16.msra.mxu0 %v1290
  %1645 = vmatpush.bf16.msra.mxu0 %v1287
  %1646 = vmatpush.bf16.msra.mxu0 %v1284
  %1647 = vmatpush.bf16.msra.mxu0 %v1281
  %1648 = vmatpush.bf16.msra.mxu0 %v1278
  %1649 = vmatmul.bf16.gmra.mxu0 %v1640
  %v1650 = vpop.f32.mrf.mxu0
  %v1651 = vadd.f32 0.0, %v1650
  %v1652 = vpop.f32.mrf.mxu0
  %1653 = vdwg.mxu0
  %1654 = vmatpush.bf16.msra.mxu0 %v1300
  %1655 = vmatpush.bf16.msra.mxu0 %v1297
  %1656 = vmatpush.bf16.msra.mxu0 %v1294
  %1657 = vmatpush.bf16.msra.mxu0 %v1291
  %1658 = vmatpush.bf16.msra.mxu0 %v1288
  %1659 = vmatpush.bf16.msra.mxu0 %v1285
  %1660 = vmatpush.bf16.msra.mxu0 %v1282
  %1661 = vmatpush.bf16.msra.mxu0 %v1279
  %1662 = vmatmul.bf16.gmra.mxu0 %v1640
  %v1663 = vpop.f32.mrf.mxu0
  %v1664 = vadd.f32 0.0, %v1663
  %v1665 = vpop.f32.mrf.mxu0
  %1666 = vdwg.mxu0
  %1667 = vmatpush.bf16.msra.mxu0 %v1301
  %1668 = vmatpush.bf16.msra.mxu0 %v1298
  %1669 = vmatpush.bf16.msra.mxu0 %v1295
  %1670 = vmatpush.bf16.msra.mxu0 %v1292
  %1671 = vmatpush.bf16.msra.mxu0 %v1289
  %1672 = vmatpush.bf16.msra.mxu0 %v1286
  %1673 = vmatpush.bf16.msra.mxu0 %v1283
  %1674 = vmatpush.bf16.msra.mxu0 %v1280
  %1675 = vmatmul.bf16.gmra.mxu0 %v1640
  %v1676 = vpop.f32.mrf.mxu0
  %v1677 = vadd.f32 0.0, %v1676
  %v1678 = vpop.f32.mrf.mxu0
  %1679 = vdwg.mxu0
  %v1680 = vpack.c.bf16 %v1639, %v1639
  %1681 = vmatpush.bf16.msra.mxu0 %v1466
  %1682 = vmatpush.bf16.msra.mxu0 %v1463
  %1683 = vmatpush.bf16.msra.mxu0 %v1460
  %1684 = vmatpush.bf16.msra.mxu0 %v1457
  %1685 = vmatpush.bf16.msra.mxu0 %v1454
  %1686 = vmatpush.bf16.msra.mxu0 %v1451
  %1687 = vmatpush.bf16.msra.mxu0 %v1448
  %1688 = vmatpush.bf16.msra.mxu0 %v1445
  %1689 = vmatmul.bf16.gmra.mxu0 %v1680
  %v1690 = vpop.f32.mrf.mxu0
  %v1691 = vadd.f32 0.0, %v1690
  %v1692 = vpop.f32.mrf.mxu0
  %1693 = vdwg.mxu0
  %1694 = vmatpush.bf16.msra.mxu0 %v1467
  %1695 = vmatpush.bf16.msra.mxu0 %v1464
  %1696 = vmatpush.bf16.msra.mxu0 %v1461
  %1697 = vmatpush.bf16.msra.mxu0 %v1458
  %1698 = vmatpush.bf16.msra.mxu0 %v1455
  %1699 = vmatpush.bf16.msra.mxu0 %v1452
  %1700 = vmatpush.bf16.msra.mxu0 %v1449
  %1701 = vmatpush.bf16.msra.mxu0 %v1446
  %1702 = vmatmul.bf16.gmra.mxu0 %v1680
  %v1703 = vpop.f32.mrf.mxu0
  %v1704 = vadd.f32 0.0, %v1703
  %v1705 = vpop.f32.mrf.mxu0
  %1706 = vdwg.mxu0
  %1707 = vmatpush.bf16.msra.mxu0 %v1468
  %1708 = vmatpush.bf16.msra.mxu0 %v1465
  %1709 = vmatpush.bf16.msra.mxu0 %v1462
  %1710 = vmatpush.bf16.msra.mxu0 %v1459
  %1711 = vmatpush.bf16.msra.mxu0 %v1456
  %1712 = vmatpush.bf16.msra.mxu0 %v1453
  %1713 = vmatpush.bf16.msra.mxu0 %v1450
  %1714 = vmatpush.bf16.msra.mxu0 %v1447
  %1715 = vmatmul.bf16.gmra.mxu0 %v1680
  %v1716 = vpop.f32.mrf.mxu0
  %v1717 = vadd.f32 0.0, %v1716
  %v1718 = vpop.f32.mrf.mxu0
  %1719 = vdwg.mxu0
  %s1720 = scalar_lea.vmem [#allocation2], 24
  %v1721 = vld [vmem:[%s1720] sm:$0xff]
  %v1722 = vld [vmem:[%s1720 + $0x8] sm:$0xff]
  %v1723 = vld [vmem:[%s1720 + $0x10] sm:$0xff]
  %v1724 = vadd.f32 %v1721, %v1651
  %v1725 = vxor.u32 %v1724, 2147483648
  %v1726 = vmul.f32 %v1725, 1.442695
  %v1727 = vpow.pop %v1726
  %v1728 = vadd.f32 %v1727, 1.0
  %v1729 = vrcp.pop %v1728
  %v1730 = vmul.f32 %v1728, %v1729
  %v1731 = vsub.f32 1.0, %v1730
  %v1732 = vmul.f32 %v1729, %v1731
  %v1733 = vadd.f32 %v1729, %v1732
  %vm1734 = vweird.f32 %v1728
  %vm1735 = vweird.f32 %v1729
  %vm1736 = vmor %vm1734, %vm1735
  %v1737 = vsel %vm1736, %v1729, %v1733
  %v1738 = vand.u32 2147483647, %v1728
  %vm1739 = vcmp.eq.f32.partialorder %v1738, 8.507059e+37
  %v1740 = vand.u32 %v1728, 2147483648
  %v1741 = vor.u32 1.1754944e-38, %v1740
  %v1742 = vsel %vm1739, %v1741, %v1737
  %v1743 = vmul.f32 1.0, %v1742
  %v1744 = vadd.f32 %v1722, %v1664
  %v1745 = vxor.u32 %v1744, 2147483648
  %v1746 = vmul.f32 %v1745, 1.442695
  %v1747 = vpow.pop %v1746
  %v1748 = vadd.f32 %v1747, 1.0
  %v1749 = vrcp.pop %v1748
  %v1750 = vmul.f32 %v1748, %v1749
  %v1751 = vsub.f32 1.0, %v1750
  %v1752 = vmul.f32 %v1749, %v1751
  %v1753 = vadd.f32 %v1749, %v1752
  %vm1754 = vweird.f32 %v1748
  %vm1755 = vweird.f32 %v1749
  %vm1756 = vmor %vm1754, %vm1755
  %v1757 = vsel %vm1756, %v1749, %v1753
  %v1758 = vand.u32 2147483647, %v1748
  %vm1759 = vcmp.eq.f32.partialorder %v1758, 8.507059e+37
  %v1760 = vand.u32 %v1748, 2147483648
  %v1761 = vor.u32 1.1754944e-38, %v1760
  %v1762 = vsel %vm1759, %v1761, %v1757
  %v1763 = vmul.f32 1.0, %v1762
  %v1764 = vadd.f32 %v1677, %v1576
  %v1765 = vmul.f32 %v1743, %v1764
  %v1766 = vadd.f32 %v1723, %v1765
  %v1767 = vtanh.pop %v1766
  %v1768 = vsub.f32 1.0, %v1763
  %v1769 = vmul.f32 %v1768, %v1767
  %v1770 = vmul.f32 %v1763, %v1585
  %v1771 = vadd.f32 %v1769, %v1770
  %s1772 = scalar_lea.vmem [#allocation3], 24
  %v1773 = vld [vmem:[%s1772] sm:$0xff]
  %v1774 = vld [vmem:[%s1772 + $0x8] sm:$0xff]
  %v1775 = vld [vmem:[%s1772 + $0x10] sm:$0xff]
  %v1776 = vadd.f32 %v1773, %v1691
  %v1777 = vxor.u32 %v1776, 2147483648
  %v1778 = vmul.f32 %v1777, 1.442695
  %v1779 = vpow.pop %v1778
  %v1780 = vadd.f32 %v1779, 1.0
  %v1781 = vrcp.pop %v1780
  %v1782 = vmul.f32 %v1780, %v1781
  %v1783 = vsub.f32 1.0, %v1782
  %v1784 = vmul.f32 %v1781, %v1783
  %v1785 = vadd.f32 %v1781, %v1784
  %vm1786 = vweird.f32 %v1780
  %vm1787 = vweird.f32 %v1781
  %vm1788 = vmor %vm1786, %vm1787
  %v1789 = vsel %vm1788, %v1781, %v1785
  %v1790 = vand.u32 2147483647, %v1780
  %vm1791 = vcmp.eq.f32.partialorder %v1790, 8.507059e+37
  %v1792 = vand.u32 %v1780, 2147483648
  %v1793 = vor.u32 1.1754944e-38, %v1792
  %v1794 = vsel %vm1791, %v1793, %v1789
  %v1795 = vmul.f32 1.0, %v1794
  %v1796 = vadd.f32 %v1774, %v1704
  %v1797 = vxor.u32 %v1796, 2147483648
  %v1798 = vmul.f32 %v1797, 1.442695
  %v1799 = vpow.pop %v1798
  %v1800 = vadd.f32 %v1799, 1.0
  %v1801 = vrcp.pop %v1800
  %v1802 = vmul.f32 %v1800, %v1801
  %v1803 = vsub.f32 1.0, %v1802
  %v1804 = vmul.f32 %v1801, %v1803
  %v1805 = vadd.f32 %v1801, %v1804
  %vm1806 = vweird.f32 %v1800
  %vm1807 = vweird.f32 %v1801
  %vm1808 = vmor %vm1806, %vm1807
  %v1809 = vsel %vm1808, %v1801, %v1805
  %v1810 = vand.u32 2147483647, %v1800
  %vm1811 = vcmp.eq.f32.partialorder %v1810, 8.507059e+37
  %v1812 = vand.u32 %v1800, 2147483648
  %v1813 = vor.u32 1.1754944e-38, %v1812
  %v1814 = vsel %vm1811, %v1813, %v1809
  %v1815 = vmul.f32 1.0, %v1814
  %v1816 = vadd.f32 %v1717, %v1630
  %v1817 = vmul.f32 %v1795, %v1816
  %v1818 = vadd.f32 %v1775, %v1817
  %v1819 = vtanh.pop %v1818
  %v1820 = vsub.f32 1.0, %v1815
  %v1821 = vmul.f32 %v1820, %v1819
  %v1822 = vmul.f32 %v1815, %v1639
  %v1823 = vadd.f32 %v1821, %v1822
  %v1824 = vpack.c.bf16 %v1771, %v1771
  %1825 = vmatpush.bf16.msra.mxu0 %v1299
  %1826 = vmatpush.bf16.msra.mxu0 %v1296
  %1827 = vmatpush.bf16.msra.mxu0 %v1293
  %1828 = vmatpush.bf16.msra.mxu0 %v1290
  %1829 = vmatpush.bf16.msra.mxu0 %v1287
  %1830 = vmatpush.bf16.msra.mxu0 %v1284
  %1831 = vmatpush.bf16.msra.mxu0 %v1281
  %1832 = vmatpush.bf16.msra.mxu0 %v1278
  %1833 = vmatmul.bf16.gmra.mxu0 %v1824
  %v1834 = vpop.f32.mrf.mxu0
  %v1835 = vadd.f32 0.0, %v1834
  %v1836 = vpop.f32.mrf.mxu0
  %1837 = vdwg.mxu0
  %1838 = vmatpush.bf16.msra.mxu0 %v1300
  %1839 = vmatpush.bf16.msra.mxu0 %v1297
  %1840 = vmatpush.bf16.msra.mxu0 %v1294
  %1841 = vmatpush.bf16.msra.mxu0 %v1291
  %1842 = vmatpush.bf16.msra.mxu0 %v1288
  %1843 = vmatpush.bf16.msra.mxu0 %v1285
  %1844 = vmatpush.bf16.msra.mxu0 %v1282
  %1845 = vmatpush.bf16.msra.mxu0 %v1279
  %1846 = vmatmul.bf16.gmra.mxu0 %v1824
  %v1847 = vpop.f32.mrf.mxu0
  %v1848 = vadd.f32 0.0, %v1847
  %v1849 = vpop.f32.mrf.mxu0
  %1850 = vdwg.mxu0
  %1851 = vmatpush.bf16.msra.mxu0 %v1301
  %1852 = vmatpush.bf16.msra.mxu0 %v1298
  %1853 = vmatpush.bf16.msra.mxu0 %v1295
  %1854 = vmatpush.bf16.msra.mxu0 %v1292
  %1855 = vmatpush.bf16.msra.mxu0 %v1289
  %1856 = vmatpush.bf16.msra.mxu0 %v1286
  %1857 = vmatpush.bf16.msra.mxu0 %v1283
  %1858 = vmatpush.bf16.msra.mxu0 %v1280
  %1859 = vmatmul.bf16.gmra.mxu0 %v1824
  %v1860 = vpop.f32.mrf.mxu0
  %v1861 = vadd.f32 0.0, %v1860
  %v1862 = vpop.f32.mrf.mxu0
  %1863 = vdwg.mxu0
  %v1864 = vpack.c.bf16 %v1823, %v1823
  %1865 = vmatpush.bf16.msra.mxu0 %v1466
  %1866 = vmatpush.bf16.msra.mxu0 %v1463
  %1867 = vmatpush.bf16.msra.mxu0 %v1460
  %1868 = vmatpush.bf16.msra.mxu0 %v1457
  %1869 = vmatpush.bf16.msra.mxu0 %v1454
  %1870 = vmatpush.bf16.msra.mxu0 %v1451
  %1871 = vmatpush.bf16.msra.mxu0 %v1448
  %1872 = vmatpush.bf16.msra.mxu0 %v1445
  %1873 = vmatmul.bf16.gmra.mxu0 %v1864
  %v1874 = vpop.f32.mrf.mxu0
  %v1875 = vadd.f32 0.0, %v1874
  %v1876 = vpop.f32.mrf.mxu0
  %1877 = vdwg.mxu0
  %1878 = vmatpush.bf16.msra.mxu0 %v1467
  %1879 = vmatpush.bf16.msra.mxu0 %v1464
  %1880 = vmatpush.bf16.msra.mxu0 %v1461
  %1881 = vmatpush.bf16.msra.mxu0 %v1458
  %1882 = vmatpush.bf16.msra.mxu0 %v1455
  %1883 = vmatpush.bf16.msra.mxu0 %v1452
  %1884 = vmatpush.bf16.msra.mxu0 %v1449
  %1885 = vmatpush.bf16.msra.mxu0 %v1446
  %1886 = vmatmul.bf16.gmra.mxu0 %v1864
  %v1887 = vpop.f32.mrf.mxu0
  %v1888 = vadd.f32 0.0, %v1887
  %v1889 = vpop.f32.mrf.mxu0
  %1890 = vdwg.mxu0
  %1891 = vmatpush.bf16.msra.mxu0 %v1468
  %1892 = vmatpush.bf16.msra.mxu0 %v1465
  %1893 = vmatpush.bf16.msra.mxu0 %v1462
  %1894 = vmatpush.bf16.msra.mxu0 %v1459
  %1895 = vmatpush.bf16.msra.mxu0 %v1456
  %1896 = vmatpush.bf16.msra.mxu0 %v1453
  %1897 = vmatpush.bf16.msra.mxu0 %v1450
  %1898 = vmatpush.bf16.msra.mxu0 %v1447
  %1899 = vmatmul.bf16.gmra.mxu0 %v1864
  %v1900 = vpop.f32.mrf.mxu0
  %v1901 = vadd.f32 0.0, %v1900
  %v1902 = vpop.f32.mrf.mxu0
  %1903 = vdwg.mxu0
  %s1904 = scalar_lea.vmem [#allocation2], 48
  %v1905 = vld [vmem:[%s1904] sm:$0xff]
  %v1906 = vld [vmem:[%s1904 + $0x8] sm:$0xff]
  %v1907 = vld [vmem:[%s1904 + $0x10] sm:$0xff]
  %v1908 = vadd.f32 %v1905, %v1835
  %v1909 = vxor.u32 %v1908, 2147483648
  %v1910 = vmul.f32 %v1909, 1.442695
  %v1911 = vpow.pop %v1910
  %v1912 = vadd.f32 %v1911, 1.0
  %v1913 = vrcp.pop %v1912
  %v1914 = vmul.f32 %v1912, %v1913
  %v1915 = vsub.f32 1.0, %v1914
  %v1916 = vmul.f32 %v1913, %v1915
  %v1917 = vadd.f32 %v1913, %v1916
  %vm1918 = vweird.f32 %v1912
  %vm1919 = vweird.f32 %v1913
  %vm1920 = vmor %vm1918, %vm1919
  %v1921 = vsel %vm1920, %v1913, %v1917
  %v1922 = vand.u32 2147483647, %v1912
  %vm1923 = vcmp.eq.f32.partialorder %v1922, 8.507059e+37
  %v1924 = vand.u32 %v1912, 2147483648
  %v1925 = vor.u32 1.1754944e-38, %v1924
  %v1926 = vsel %vm1923, %v1925, %v1921
  %v1927 = vmul.f32 1.0, %v1926
  %v1928 = vadd.f32 %v1906, %v1848
  %v1929 = vxor.u32 %v1928, 2147483648
  %v1930 = vmul.f32 %v1929, 1.442695
  %v1931 = vpow.pop %v1930
  %v1932 = vadd.f32 %v1931, 1.0
  %v1933 = vrcp.pop %v1932
  %v1934 = vmul.f32 %v1932, %v1933
  %v1935 = vsub.f32 1.0, %v1934
  %v1936 = vmul.f32 %v1933, %v1935
  %v1937 = vadd.f32 %v1933, %v1936
  %vm1938 = vweird.f32 %v1932
  %vm1939 = vweird.f32 %v1933
  %vm1940 = vmor %vm1938, %vm1939
  %v1941 = vsel %vm1940, %v1933, %v1937
  %v1942 = vand.u32 2147483647, %v1932
  %vm1943 = vcmp.eq.f32.partialorder %v1942, 8.507059e+37
  %v1944 = vand.u32 %v1932, 2147483648
  %v1945 = vor.u32 1.1754944e-38, %v1944
  %v1946 = vsel %vm1943, %v1945, %v1941
  %v1947 = vmul.f32 1.0, %v1946
  %v1948 = vadd.f32 %v1861, %v1576
  %v1949 = vmul.f32 %v1927, %v1948
  %v1950 = vadd.f32 %v1907, %v1949
  %v1951 = vtanh.pop %v1950
  %v1952 = vsub.f32 1.0, %v1947
  %v1953 = vmul.f32 %v1952, %v1951
  %v1954 = vmul.f32 %v1947, %v1771
  %v1955 = vadd.f32 %v1953, %v1954
  %s1956 = scalar_lea.vmem [#allocation3], 48
  %v1957 = vld [vmem:[%s1956] sm:$0xff]
  %v1958 = vld [vmem:[%s1956 + $0x8] sm:$0xff]
  %v1959 = vld [vmem:[%s1956 + $0x10] sm:$0xff]
  %v1960 = vadd.f32 %v1957, %v1875
  %v1961 = vxor.u32 %v1960, 2147483648
  %v1962 = vmul.f32 %v1961, 1.442695
  %v1963 = vpow.pop %v1962
  %v1964 = vadd.f32 %v1963, 1.0
  %v1965 = vrcp.pop %v1964
  %v1966 = vmul.f32 %v1964, %v1965
  %v1967 = vsub.f32 1.0, %v1966
  %v1968 = vmul.f32 %v1965, %v1967
  %v1969 = vadd.f32 %v1965, %v1968
  %vm1970 = vweird.f32 %v1964
  %vm1971 = vweird.f32 %v1965
  %vm1972 = vmor %vm1970, %vm1971
  %v1973 = vsel %vm1972, %v1965, %v1969
  %v1974 = vand.u32 2147483647, %v1964
  %vm1975 = vcmp.eq.f32.partialorder %v1974, 8.507059e+37
  %v1976 = vand.u32 %v1964, 2147483648
  %v1977 = vor.u32 1.1754944e-38, %v1976
  %v1978 = vsel %vm1975, %v1977, %v1973
  %v1979 = vmul.f32 1.0, %v1978
  %v1980 = vadd.f32 %v1958, %v1888
  %v1981 = vxor.u32 %v1980, 2147483648
  %v1982 = vmul.f32 %v1981, 1.442695
  %v1983 = vpow.pop %v1982
  %v1984 = vadd.f32 %v1983, 1.0
  %v1985 = vrcp.pop %v1984
  %v1986 = vmul.f32 %v1984, %v1985
  %v1987 = vsub.f32 1.0, %v1986
  %v1988 = vmul.f32 %v1985, %v1987
  %v1989 = vadd.f32 %v1985, %v1988
  %vm1990 = vweird.f32 %v1984
  %vm1991 = vweird.f32 %v1985
  %vm1992 = vmor %vm1990, %vm1991
  %v1993 = vsel %vm1992, %v1985, %v1989
  %v1994 = vand.u32 2147483647, %v1984
  %vm1995 = vcmp.eq.f32.partialorder %v1994, 8.507059e+37
  %v1996 = vand.u32 %v1984, 2147483648
  %v1997 = vor.u32 1.1754944e-38, %v1996
  %v1998 = vsel %vm1995, %v1997, %v1993
  %v1999 = vmul.f32 1.0, %v1998
  %v2000 = vadd.f32 %v1901, %v1630
  %v2001 = vmul.f32 %v1979, %v2000
  %v2002 = vadd.f32 %v1959, %v2001
  %v2003 = vtanh.pop %v2002
  %v2004 = vsub.f32 1.0, %v1999
  %v2005 = vmul.f32 %v2004, %v2003
  %v2006 = vmul.f32 %v1999, %v1823
  %v2007 = vadd.f32 %v2005, %v2006
  %v2008 = vpack.c.bf16 %v1955, %v1955
  %2009 = vmatpush.bf16.msra.mxu0 %v1299
  %2010 = vmatpush.bf16.msra.mxu0 %v1296
  %2011 = vmatpush.bf16.msra.mxu0 %v1293
  %2012 = vmatpush.bf16.msra.mxu0 %v1290
  %2013 = vmatpush.bf16.msra.mxu0 %v1287
  %2014 = vmatpush.bf16.msra.mxu0 %v1284
  %2015 = vmatpush.bf16.msra.mxu0 %v1281
  %2016 = vmatpush.bf16.msra.mxu0 %v1278
  %2017 = vmatmul.bf16.gmra.mxu0 %v2008
  %v2018 = vpop.f32.mrf.mxu0
  %v2019 = vadd.f32 0.0, %v2018
  %v2020 = vpop.f32.mrf.mxu0
  %2021 = vdwg.mxu0
  %2022 = vmatpush.bf16.msra.mxu0 %v1300
  %2023 = vmatpush.bf16.msra.mxu0 %v1297
  %2024 = vmatpush.bf16.msra.mxu0 %v1294
  %2025 = vmatpush.bf16.msra.mxu0 %v1291
  %2026 = vmatpush.bf16.msra.mxu0 %v1288
  %2027 = vmatpush.bf16.msra.mxu0 %v1285
  %2028 = vmatpush.bf16.msra.mxu0 %v1282
  %2029 = vmatpush.bf16.msra.mxu0 %v1279
  %2030 = vmatmul.bf16.gmra.mxu0 %v2008
  %v2031 = vpop.f32.mrf.mxu0
  %v2032 = vadd.f32 0.0, %v2031
  %v2033 = vpop.f32.mrf.mxu0
  %2034 = vdwg.mxu0
  %2035 = vmatpush.bf16.msra.mxu0 %v1301
  %2036 = vmatpush.bf16.msra.mxu0 %v1298
  %2037 = vmatpush.bf16.msra.mxu0 %v1295
  %2038 = vmatpush.bf16.msra.mxu0 %v1292
  %2039 = vmatpush.bf16.msra.mxu0 %v1289
  %2040 = vmatpush.bf16.msra.mxu0 %v1286
  %2041 = vmatpush.bf16.msra.mxu0 %v1283
  %2042 = vmatpush.bf16.msra.mxu0 %v1280
  %2043 = vmatmul.bf16.gmra.mxu0 %v2008
  %v2044 = vpop.f32.mrf.mxu0
  %v2045 = vadd.f32 0.0, %v2044
  %v2046 = vpop.f32.mrf.mxu0
  %2047 = vdwg.mxu0
  %v2048 = vpack.c.bf16 %v2007, %v2007
  %2049 = vmatpush.bf16.msra.mxu0 %v1466
  %2050 = vmatpush.bf16.msra.mxu0 %v1463
  %2051 = vmatpush.bf16.msra.mxu0 %v1460
  %2052 = vmatpush.bf16.msra.mxu0 %v1457
  %2053 = vmatpush.bf16.msra.mxu0 %v1454
  %2054 = vmatpush.bf16.msra.mxu0 %v1451
  %2055 = vmatpush.bf16.msra.mxu0 %v1448
  %2056 = vmatpush.bf16.msra.mxu0 %v1445
  %2057 = vmatmul.bf16.gmra.mxu0 %v2048
  %v2058 = vpop.f32.mrf.mxu0
  %v2059 = vadd.f32 0.0, %v2058
  %v2060 = vpop.f32.mrf.mxu0
  %2061 = vdwg.mxu0
  %2062 = vmatpush.bf16.msra.mxu0 %v1467
  %2063 = vmatpush.bf16.msra.mxu0 %v1464
  %2064 = vmatpush.bf16.msra.mxu0 %v1461
  %2065 = vmatpush.bf16.msra.mxu0 %v1458
  %2066 = vmatpush.bf16.msra.mxu0 %v1455
  %2067 = vmatpush.bf16.msra.mxu0 %v1452
  %2068 = vmatpush.bf16.msra.mxu0 %v1449
  %2069 = vmatpush.bf16.msra.mxu0 %v1446
  %2070 = vmatmul.bf16.gmra.mxu0 %v2048
  %v2071 = vpop.f32.mrf.mxu0
  %v2072 = vadd.f32 0.0, %v2071
  %v2073 = vpop.f32.mrf.mxu0
  %2074 = vdwg.mxu0
  %2075 = vmatpush.bf16.msra.mxu0 %v1468
  %2076 = vmatpush.bf16.msra.mxu0 %v1465
  %2077 = vmatpush.bf16.msra.mxu0 %v1462
  %2078 = vmatpush.bf16.msra.mxu0 %v1459
  %2079 = vmatpush.bf16.msra.mxu0 %v1456
  %2080 = vmatpush.bf16.msra.mxu0 %v1453
  %2081 = vmatpush.bf16.msra.mxu0 %v1450
  %2082 = vmatpush.bf16.msra.mxu0 %v1447
  %2083 = vmatmul.bf16.gmra.mxu0 %v2048
  %v2084 = vpop.f32.mrf.mxu0
  %v2085 = vadd.f32 0.0, %v2084
  %v2086 = vpop.f32.mrf.mxu0
  %2087 = vdwg.mxu0
  %s2088 = scalar_lea.vmem [#allocation2], 72
  %v2089 = vld [vmem:[%s2088] sm:$0xff]
  %v2090 = vld [vmem:[%s2088 + $0x8] sm:$0xff]
  %v2091 = vld [vmem:[%s2088 + $0x10] sm:$0xff]
  %v2092 = vadd.f32 %v2089, %v2019
  %v2093 = vxor.u32 %v2092, 2147483648
  %v2094 = vmul.f32 %v2093, 1.442695
  %v2095 = vpow.pop %v2094
  %v2096 = vadd.f32 %v2095, 1.0
  %v2097 = vrcp.pop %v2096
  %v2098 = vmul.f32 %v2096, %v2097
  %v2099 = vsub.f32 1.0, %v2098
  %v2100 = vmul.f32 %v2097, %v2099
  %v2101 = vadd.f32 %v2097, %v2100
  %vm2102 = vweird.f32 %v2096
  %vm2103 = vweird.f32 %v2097
  %vm2104 = vmor %vm2102, %vm2103
  %v2105 = vsel %vm2104, %v2097, %v2101
  %v2106 = vand.u32 2147483647, %v2096
  %vm2107 = vcmp.eq.f32.partialorder %v2106, 8.507059e+37
  %v2108 = vand.u32 %v2096, 2147483648
  %v2109 = vor.u32 1.1754944e-38, %v2108
  %v2110 = vsel %vm2107, %v2109, %v2105
  %v2111 = vmul.f32 1.0, %v2110
  %v2112 = vadd.f32 %v2090, %v2032
  %v2113 = vxor.u32 %v2112, 2147483648
  %v2114 = vmul.f32 %v2113, 1.442695
  %v2115 = vpow.pop %v2114
  %v2116 = vadd.f32 %v2115, 1.0
  %v2117 = vrcp.pop %v2116
  %v2118 = vmul.f32 %v2116, %v2117
  %v2119 = vsub.f32 1.0, %v2118
  %v2120 = vmul.f32 %v2117, %v2119
  %v2121 = vadd.f32 %v2117, %v2120
  %vm2122 = vweird.f32 %v2116
  %vm2123 = vweird.f32 %v2117
  %vm2124 = vmor %vm2122, %vm2123
  %v2125 = vsel %vm2124, %v2117, %v2121
  %v2126 = vand.u32 2147483647, %v2116
  %vm2127 = vcmp.eq.f32.partialorder %v2126, 8.507059e+37
  %v2128 = vand.u32 %v2116, 2147483648
  %v2129 = vor.u32 1.1754944e-38, %v2128
  %v2130 = vsel %vm2127, %v2129, %v2125
  %v2131 = vmul.f32 1.0, %v2130
  %v2132 = vadd.f32 %v2045, %v1576
  %v2133 = vmul.f32 %v2111, %v2132
  %v2134 = vadd.f32 %v2091, %v2133
  %v2135 = vtanh.pop %v2134
  %v2136 = vsub.f32 1.0, %v2131
  %v2137 = vmul.f32 %v2136, %v2135
  %v2138 = vmul.f32 %v2131, %v1955
  %v2139 = vadd.f32 %v2137, %v2138
  %s2140 = scalar_lea.vmem [#allocation3], 72
  %v2141 = vld [vmem:[%s2140] sm:$0xff]
  %v2142 = vld [vmem:[%s2140 + $0x8] sm:$0xff]
  %v2143 = vld [vmem:[%s2140 + $0x10] sm:$0xff]
  %v2144 = vadd.f32 %v2141, %v2059
  %v2145 = vxor.u32 %v2144, 2147483648
  %v2146 = vmul.f32 %v2145, 1.442695
  %v2147 = vpow.pop %v2146
  %v2148 = vadd.f32 %v2147, 1.0
  %v2149 = vrcp.pop %v2148
  %v2150 = vmul.f32 %v2148, %v2149
  %v2151 = vsub.f32 1.0, %v2150
  %v2152 = vmul.f32 %v2149, %v2151
  %v2153 = vadd.f32 %v2149, %v2152
  %vm2154 = vweird.f32 %v2148
  %vm2155 = vweird.f32 %v2149
  %vm2156 = vmor %vm2154, %vm2155
  %v2157 = vsel %vm2156, %v2149, %v2153
  %v2158 = vand.u32 2147483647, %v2148
  %vm2159 = vcmp.eq.f32.partialorder %v2158, 8.507059e+37
  %v2160 = vand.u32 %v2148, 2147483648
  %v2161 = vor.u32 1.1754944e-38, %v2160
  %v2162 = vsel %vm2159, %v2161, %v2157
  %v2163 = vmul.f32 1.0, %v2162
  %v2164 = vadd.f32 %v2142, %v2072
  %v2165 = vxor.u32 %v2164, 2147483648
  %v2166 = vmul.f32 %v2165, 1.442695
  %v2167 = vpow.pop %v2166
  %v2168 = vadd.f32 %v2167, 1.0
  %v2169 = vrcp.pop %v2168
  %v2170 = vmul.f32 %v2168, %v2169
  %v2171 = vsub.f32 1.0, %v2170
  %v2172 = vmul.f32 %v2169, %v2171
  %v2173 = vadd.f32 %v2169, %v2172
  %vm2174 = vweird.f32 %v2168
  %vm2175 = vweird.f32 %v2169
  %vm2176 = vmor %vm2174, %vm2175
  %v2177 = vsel %vm2176, %v2169, %v2173
  %v2178 = vand.u32 2147483647, %v2168
  %vm2179 = vcmp.eq.f32.partialorder %v2178, 8.507059e+37
  %v2180 = vand.u32 %v2168, 2147483648
  %v2181 = vor.u32 1.1754944e-38, %v2180
  %v2182 = vsel %vm2179, %v2181, %v2177
  %v2183 = vmul.f32 1.0, %v2182
  %v2184 = vadd.f32 %v2085, %v1630
  %v2185 = vmul.f32 %v2163, %v2184
  %v2186 = vadd.f32 %v2143, %v2185
  %v2187 = vtanh.pop %v2186
  %v2188 = vsub.f32 1.0, %v2183
  %v2189 = vmul.f32 %v2188, %v2187
  %v2190 = vmul.f32 %v2183, %v2007
  %v2191 = vadd.f32 %v2189, %v2190
  %v2192 = vpack.c.bf16 %v2139, %v2139
  %2193 = vmatpush.bf16.msra.mxu0 %v1299
  %2194 = vmatpush.bf16.msra.mxu0 %v1296
  %2195 = vmatpush.bf16.msra.mxu0 %v1293
  %2196 = vmatpush.bf16.msra.mxu0 %v1290
  %2197 = vmatpush.bf16.msra.mxu0 %v1287
  %2198 = vmatpush.bf16.msra.mxu0 %v1284
  %2199 = vmatpush.bf16.msra.mxu0 %v1281
  %2200 = vmatpush.bf16.msra.mxu0 %v1278
  %2201 = vmatmul.bf16.gmra.mxu0 %v2192
  %v2202 = vpop.f32.mrf.mxu0
  %v2203 = vadd.f32 0.0, %v2202
  %v2204 = vpop.f32.mrf.mxu0
  %2205 = vdwg.mxu0
  %2206 = vmatpush.bf16.msra.mxu0 %v1300
  %2207 = vmatpush.bf16.msra.mxu0 %v1297
  %2208 = vmatpush.bf16.msra.mxu0 %v1294
  %2209 = vmatpush.bf16.msra.mxu0 %v1291
  %2210 = vmatpush.bf16.msra.mxu0 %v1288
  %2211 = vmatpush.bf16.msra.mxu0 %v1285
  %2212 = vmatpush.bf16.msra.mxu0 %v1282
  %2213 = vmatpush.bf16.msra.mxu0 %v1279
  %2214 = vmatmul.bf16.gmra.mxu0 %v2192
  %v2215 = vpop.f32.mrf.mxu0
  %v2216 = vadd.f32 0.0, %v2215
  %v2217 = vpop.f32.mrf.mxu0
  %2218 = vdwg.mxu0
  %2219 = vmatpush.bf16.msra.mxu0 %v1301
  %2220 = vmatpush.bf16.msra.mxu0 %v1298
  %2221 = vmatpush.bf16.msra.mxu0 %v1295
  %2222 = vmatpush.bf16.msra.mxu0 %v1292
  %2223 = vmatpush.bf16.msra.mxu0 %v1289
  %2224 = vmatpush.bf16.msra.mxu0 %v1286
  %2225 = vmatpush.bf16.msra.mxu0 %v1283
  %2226 = vmatpush.bf16.msra.mxu0 %v1280
  %2227 = vmatmul.bf16.gmra.mxu0 %v2192
  %v2228 = vpop.f32.mrf.mxu0
  %v2229 = vadd.f32 0.0, %v2228
  %v2230 = vpop.f32.mrf.mxu0
  %2231 = vdwg.mxu0
  %v2232 = vpack.c.bf16 %v2191, %v2191
  %2233 = vmatpush.bf16.msra.mxu0 %v1466
  %2234 = vmatpush.bf16.msra.mxu0 %v1463
  %2235 = vmatpush.bf16.msra.mxu0 %v1460
  %2236 = vmatpush.bf16.msra.mxu0 %v1457
  %2237 = vmatpush.bf16.msra.mxu0 %v1454
  %2238 = vmatpush.bf16.msra.mxu0 %v1451
  %2239 = vmatpush.bf16.msra.mxu0 %v1448
  %2240 = vmatpush.bf16.msra.mxu0 %v1445
  %2241 = vmatmul.bf16.gmra.mxu0 %v2232
  %v2242 = vpop.f32.mrf.mxu0
  %v2243 = vadd.f32 0.0, %v2242
  %v2244 = vpop.f32.mrf.mxu0
  %2245 = vdwg.mxu0
  %2246 = vmatpush.bf16.msra.mxu0 %v1467
  %2247 = vmatpush.bf16.msra.mxu0 %v1464
  %2248 = vmatpush.bf16.msra.mxu0 %v1461
  %2249 = vmatpush.bf16.msra.mxu0 %v1458
  %2250 = vmatpush.bf16.msra.mxu0 %v1455
  %2251 = vmatpush.bf16.msra.mxu0 %v1452
  %2252 = vmatpush.bf16.msra.mxu0 %v1449
  %2253 = vmatpush.bf16.msra.mxu0 %v1446
  %2254 = vmatmul.bf16.gmra.mxu0 %v2232
  %v2255 = vpop.f32.mrf.mxu0
  %v2256 = vadd.f32 0.0, %v2255
  %v2257 = vpop.f32.mrf.mxu0
  %2258 = vdwg.mxu0
  %2259 = vmatpush.bf16.msra.mxu0 %v1468
  %2260 = vmatpush.bf16.msra.mxu0 %v1465
  %2261 = vmatpush.bf16.msra.mxu0 %v1462
  %2262 = vmatpush.bf16.msra.mxu0 %v1459
  %2263 = vmatpush.bf16.msra.mxu0 %v1456
  %2264 = vmatpush.bf16.msra.mxu0 %v1453
  %2265 = vmatpush.bf16.msra.mxu0 %v1450
  %2266 = vmatpush.bf16.msra.mxu0 %v1447
  %2267 = vmatmul.bf16.gmra.mxu0 %v2232
  %v2268 = vpop.f32.mrf.mxu0
  %v2269 = vadd.f32 0.0, %v2268
  %v2270 = vpop.f32.mrf.mxu0
  %2271 = vdwg.mxu0
  %s2272 = scalar_lea.vmem [#allocation2], 96
  %v2273 = vld [vmem:[%s2272] sm:$0xff]
  %v2274 = vld [vmem:[%s2272 + $0x8] sm:$0xff]
  %v2275 = vld [vmem:[%s2272 + $0x10] sm:$0xff]
  %v2276 = vadd.f32 %v2273, %v2203
  %v2277 = vxor.u32 %v2276, 2147483648
  %v2278 = vmul.f32 %v2277, 1.442695
  %v2279 = vpow.pop %v2278
  %v2280 = vadd.f32 %v2279, 1.0
  %v2281 = vrcp.pop %v2280
  %v2282 = vmul.f32 %v2280, %v2281
  %v2283 = vsub.f32 1.0, %v2282
  %v2284 = vmul.f32 %v2281, %v2283
  %v2285 = vadd.f32 %v2281, %v2284
  %vm2286 = vweird.f32 %v2280
  %vm2287 = vweird.f32 %v2281
  %vm2288 = vmor %vm2286, %vm2287
  %v2289 = vsel %vm2288, %v2281, %v2285
  %v2290 = vand.u32 2147483647, %v2280
  %vm2291 = vcmp.eq.f32.partialorder %v2290, 8.507059e+37
  %v2292 = vand.u32 %v2280, 2147483648
  %v2293 = vor.u32 1.1754944e-38, %v2292
  %v2294 = vsel %vm2291, %v2293, %v2289
  %v2295 = vmul.f32 1.0, %v2294
  %v2296 = vadd.f32 %v2274, %v2216
  %v2297 = vxor.u32 %v2296, 2147483648
  %v2298 = vmul.f32 %v2297, 1.442695
  %v2299 = vpow.pop %v2298
  %v2300 = vadd.f32 %v2299, 1.0
  %v2301 = vrcp.pop %v2300
  %v2302 = vmul.f32 %v2300, %v2301
  %v2303 = vsub.f32 1.0, %v2302
  %v2304 = vmul.f32 %v2301, %v2303
  %v2305 = vadd.f32 %v2301, %v2304
  %vm2306 = vweird.f32 %v2300
  %vm2307 = vweird.f32 %v2301
  %vm2308 = vmor %vm2306, %vm2307
  %v2309 = vsel %vm2308, %v2301, %v2305
  %v2310 = vand.u32 2147483647, %v2300
  %vm2311 = vcmp.eq.f32.partialorder %v2310, 8.507059e+37
  %v2312 = vand.u32 %v2300, 2147483648
  %v2313 = vor.u32 1.1754944e-38, %v2312
  %v2314 = vsel %vm2311, %v2313, %v2309
  %v2315 = vmul.f32 1.0, %v2314
  %v2316 = vadd.f32 %v2229, %v1576
  %v2317 = vmul.f32 %v2295, %v2316
  %v2318 = vadd.f32 %v2275, %v2317
  %v2319 = vtanh.pop %v2318
  %v2320 = vsub.f32 1.0, %v2315
  %v2321 = vmul.f32 %v2320, %v2319
  %v2322 = vmul.f32 %v2315, %v2139
  %v2323 = vadd.f32 %v2321, %v2322
  %s2324 = scalar_lea.vmem [#allocation3], 96
  %v2325 = vld [vmem:[%s2324] sm:$0xff]
  %v2326 = vld [vmem:[%s2324 + $0x8] sm:$0xff]
  %v2327 = vld [vmem:[%s2324 + $0x10] sm:$0xff]
  %v2328 = vadd.f32 %v2325, %v2243
  %v2329 = vxor.u32 %v2328, 2147483648
  %v2330 = vmul.f32 %v2329, 1.442695
  %v2331 = vpow.pop %v2330
  %v2332 = vadd.f32 %v2331, 1.0
  %v2333 = vrcp.pop %v2332
  %v2334 = vmul.f32 %v2332, %v2333
  %v2335 = vsub.f32 1.0, %v2334
  %v2336 = vmul.f32 %v2333, %v2335
  %v2337 = vadd.f32 %v2333, %v2336
  %vm2338 = vweird.f32 %v2332
  %vm2339 = vweird.f32 %v2333
  %vm2340 = vmor %vm2338, %vm2339
  %v2341 = vsel %vm2340, %v2333, %v2337
  %v2342 = vand.u32 2147483647, %v2332
  %vm2343 = vcmp.eq.f32.partialorder %v2342, 8.507059e+37
  %v2344 = vand.u32 %v2332, 2147483648
  %v2345 = vor.u32 1.1754944e-38, %v2344
  %v2346 = vsel %vm2343, %v2345, %v2341
  %v2347 = vmul.f32 1.0, %v2346
  %v2348 = vadd.f32 %v2326, %v2256
  %v2349 = vxor.u32 %v2348, 2147483648
  %v2350 = vmul.f32 %v2349, 1.442695
  %v2351 = vpow.pop %v2350
  %v2352 = vadd.f32 %v2351, 1.0
  %v2353 = vrcp.pop %v2352
  %v2354 = vmul.f32 %v2352, %v2353
  %v2355 = vsub.f32 1.0, %v2354
  %v2356 = vmul.f32 %v2353, %v2355
  %v2357 = vadd.f32 %v2353, %v2356
  %vm2358 = vweird.f32 %v2352
  %vm2359 = vweird.f32 %v2353
  %vm2360 = vmor %vm2358, %vm2359
  %v2361 = vsel %vm2360, %v2353, %v2357
  %v2362 = vand.u32 2147483647, %v2352
  %vm2363 = vcmp.eq.f32.partialorder %v2362, 8.507059e+37
  %v2364 = vand.u32 %v2352, 2147483648
  %v2365 = vor.u32 1.1754944e-38, %v2364
  %v2366 = vsel %vm2363, %v2365, %v2361
  %v2367 = vmul.f32 1.0, %v2366
  %v2368 = vadd.f32 %v2269, %v1630
  %v2369 = vmul.f32 %v2347, %v2368
  %v2370 = vadd.f32 %v2327, %v2369
  %v2371 = vtanh.pop %v2370
  %v2372 = vsub.f32 1.0, %v2367
  %v2373 = vmul.f32 %v2372, %v2371
  %v2374 = vmul.f32 %v2367, %v2191
  %v2375 = vadd.f32 %v2373, %v2374
  %v2376 = vpack.c.bf16 %v2323, %v2323
  %2377 = vmatpush.bf16.msra.mxu0 %v1299
  %2378 = vmatpush.bf16.msra.mxu0 %v1296
  %2379 = vmatpush.bf16.msra.mxu0 %v1293
  %2380 = vmatpush.bf16.msra.mxu0 %v1290
  %2381 = vmatpush.bf16.msra.mxu0 %v1287
  %2382 = vmatpush.bf16.msra.mxu0 %v1284
  %2383 = vmatpush.bf16.msra.mxu0 %v1281
  %2384 = vmatpush.bf16.msra.mxu0 %v1278
  %2385 = vmatmul.bf16.gmra.mxu0 %v2376
  %v2386 = vpop.f32.mrf.mxu0
  %v2387 = vadd.f32 0.0, %v2386
  %v2388 = vpop.f32.mrf.mxu0
  %2389 = vdwg.mxu0
  %2390 = vmatpush.bf16.msra.mxu0 %v1300
  %2391 = vmatpush.bf16.msra.mxu0 %v1297
  %2392 = vmatpush.bf16.msra.mxu0 %v1294
  %2393 = vmatpush.bf16.msra.mxu0 %v1291
  %2394 = vmatpush.bf16.msra.mxu0 %v1288
  %2395 = vmatpush.bf16.msra.mxu0 %v1285
  %2396 = vmatpush.bf16.msra.mxu0 %v1282
  %2397 = vmatpush.bf16.msra.mxu0 %v1279
  %2398 = vmatmul.bf16.gmra.mxu0 %v2376
  %v2399 = vpop.f32.mrf.mxu0
  %v2400 = vadd.f32 0.0, %v2399
  %v2401 = vpop.f32.mrf.mxu0
  %2402 = vdwg.mxu0
  %2403 = vmatpush.bf16.msra.mxu0 %v1301
  %2404 = vmatpush.bf16.msra.mxu0 %v1298
  %2405 = vmatpush.bf16.msra.mxu0 %v1295
  %2406 = vmatpush.bf16.msra.mxu0 %v1292
  %2407 = vmatpush.bf16.msra.mxu0 %v1289
  %2408 = vmatpush.bf16.msra.mxu0 %v1286
  %2409 = vmatpush.bf16.msra.mxu0 %v1283
  %2410 = vmatpush.bf16.msra.mxu0 %v1280
  %2411 = vmatmul.bf16.gmra.mxu0 %v2376
  %v2412 = vpop.f32.mrf.mxu0
  %v2413 = vadd.f32 0.0, %v2412
  %v2414 = vpop.f32.mrf.mxu0
  %2415 = vdwg.mxu0
  %v2416 = vpack.c.bf16 %v2375, %v2375
  %2417 = vmatpush.bf16.msra.mxu0 %v1466
  %2418 = vmatpush.bf16.msra.mxu0 %v1463
  %2419 = vmatpush.bf16.msra.mxu0 %v1460
  %2420 = vmatpush.bf16.msra.mxu0 %v1457
  %2421 = vmatpush.bf16.msra.mxu0 %v1454
  %2422 = vmatpush.bf16.msra.mxu0 %v1451
  %2423 = vmatpush.bf16.msra.mxu0 %v1448
  %2424 = vmatpush.bf16.msra.mxu0 %v1445
  %2425 = vmatmul.bf16.gmra.mxu0 %v2416
  %v2426 = vpop.f32.mrf.mxu0
  %v2427 = vadd.f32 0.0, %v2426
  %v2428 = vpop.f32.mrf.mxu0
  %2429 = vdwg.mxu0
  %2430 = vmatpush.bf16.msra.mxu0 %v1467
  %2431 = vmatpush.bf16.msra.mxu0 %v1464
  %2432 = vmatpush.bf16.msra.mxu0 %v1461
  %2433 = vmatpush.bf16.msra.mxu0 %v1458
  %2434 = vmatpush.bf16.msra.mxu0 %v1455
  %2435 = vmatpush.bf16.msra.mxu0 %v1452
  %2436 = vmatpush.bf16.msra.mxu0 %v1449
  %2437 = vmatpush.bf16.msra.mxu0 %v1446
  %2438 = vmatmul.bf16.gmra.mxu0 %v2416
  %v2439 = vpop.f32.mrf.mxu0
  %v2440 = vadd.f32 0.0, %v2439
  %v2441 = vpop.f32.mrf.mxu0
  %2442 = vdwg.mxu0
  %2443 = vmatpush.bf16.msra.mxu0 %v1468
  %2444 = vmatpush.bf16.msra.mxu0 %v1465
  %2445 = vmatpush.bf16.msra.mxu0 %v1462
  %2446 = vmatpush.bf16.msra.mxu0 %v1459
  %2447 = vmatpush.bf16.msra.mxu0 %v1456
  %2448 = vmatpush.bf16.msra.mxu0 %v1453
  %2449 = vmatpush.bf16.msra.mxu0 %v1450
  %2450 = vmatpush.bf16.msra.mxu0 %v1447
  %2451 = vmatmul.bf16.gmra.mxu0 %v2416
  %v2452 = vpop.f32.mrf.mxu0
  %v2453 = vadd.f32 0.0, %v2452
  %v2454 = vpop.f32.mrf.mxu0
  %2455 = vdwg.mxu0
  %s2456 = scalar_lea.vmem [#allocation2], 120
  %v2457 = vld [vmem:[%s2456] sm:$0xff]
  %v2458 = vld [vmem:[%s2456 + $0x8] sm:$0xff]
  %v2459 = vld [vmem:[%s2456 + $0x10] sm:$0xff]
  %v2460 = vadd.f32 %v2457, %v2387
  %v2461 = vxor.u32 %v2460, 2147483648
  %v2462 = vmul.f32 %v2461, 1.442695
  %v2463 = vpow.pop %v2462
  %v2464 = vadd.f32 %v2463, 1.0
  %v2465 = vrcp.pop %v2464
  %v2466 = vmul.f32 %v2464, %v2465
  %v2467 = vsub.f32 1.0, %v2466
  %v2468 = vmul.f32 %v2465, %v2467
  %v2469 = vadd.f32 %v2465, %v2468
  %vm2470 = vweird.f32 %v2464
  %vm2471 = vweird.f32 %v2465
  %vm2472 = vmor %vm2470, %vm2471
  %v2473 = vsel %vm2472, %v2465, %v2469
  %v2474 = vand.u32 2147483647, %v2464
  %vm2475 = vcmp.eq.f32.partialorder %v2474, 8.507059e+37
  %v2476 = vand.u32 %v2464, 2147483648
  %v2477 = vor.u32 1.1754944e-38, %v2476
  %v2478 = vsel %vm2475, %v2477, %v2473
  %v2479 = vmul.f32 1.0, %v2478
  %v2480 = vadd.f32 %v2458, %v2400
  %v2481 = vxor.u32 %v2480, 2147483648
  %v2482 = vmul.f32 %v2481, 1.442695
  %v2483 = vpow.pop %v2482
  %v2484 = vadd.f32 %v2483, 1.0
  %v2485 = vrcp.pop %v2484
  %v2486 = vmul.f32 %v2484, %v2485
  %v2487 = vsub.f32 1.0, %v2486
  %v2488 = vmul.f32 %v2485, %v2487
  %v2489 = vadd.f32 %v2485, %v2488
  %vm2490 = vweird.f32 %v2484
  %vm2491 = vweird.f32 %v2485
  %vm2492 = vmor %vm2490, %vm2491
  %v2493 = vsel %vm2492, %v2485, %v2489
  %v2494 = vand.u32 2147483647, %v2484
  %vm2495 = vcmp.eq.f32.partialorder %v2494, 8.507059e+37
  %v2496 = vand.u32 %v2484, 2147483648
  %v2497 = vor.u32 1.1754944e-38, %v2496
  %v2498 = vsel %vm2495, %v2497, %v2493
  %v2499 = vmul.f32 1.0, %v2498
  %v2500 = vadd.f32 %v2413, %v1576
  %v2501 = vmul.f32 %v2479, %v2500
  %v2502 = vadd.f32 %v2459, %v2501
  %v2503 = vtanh.pop %v2502
  %v2504 = vsub.f32 1.0, %v2499
  %v2505 = vmul.f32 %v2504, %v2503
  %v2506 = vmul.f32 %v2499, %v2323
  %v2507 = vadd.f32 %v2505, %v2506
  %s2508 = scalar_lea.vmem [#allocation3], 120
  %v2509 = vld [vmem:[%s2508] sm:$0xff]
  %v2510 = vld [vmem:[%s2508 + $0x8] sm:$0xff]
  %v2511 = vld [vmem:[%s2508 + $0x10] sm:$0xff]
  %v2512 = vadd.f32 %v2509, %v2427
  %v2513 = vxor.u32 %v2512, 2147483648
  %v2514 = vmul.f32 %v2513, 1.442695
  %v2515 = vpow.pop %v2514
  %v2516 = vadd.f32 %v2515, 1.0
  %v2517 = vrcp.pop %v2516
  %v2518 = vmul.f32 %v2516, %v2517
  %v2519 = vsub.f32 1.0, %v2518
  %v2520 = vmul.f32 %v2517, %v2519
  %v2521 = vadd.f32 %v2517, %v2520
  %vm2522 = vweird.f32 %v2516
  %vm2523 = vweird.f32 %v2517
  %vm2524 = vmor %vm2522, %vm2523
  %v2525 = vsel %vm2524, %v2517, %v2521
  %v2526 = vand.u32 2147483647, %v2516
  %vm2527 = vcmp.eq.f32.partialorder %v2526, 8.507059e+37
  %v2528 = vand.u32 %v2516, 2147483648
  %v2529 = vor.u32 1.1754944e-38, %v2528
  %v2530 = vsel %vm2527, %v2529, %v2525
  %v2531 = vmul.f32 1.0, %v2530
  %v2532 = vadd.f32 %v2510, %v2440
  %v2533 = vxor.u32 %v2532, 2147483648
  %v2534 = vmul.f32 %v2533, 1.442695
  %v2535 = vpow.pop %v2534
  %v2536 = vadd.f32 %v2535, 1.0
  %v2537 = vrcp.pop %v2536
  %v2538 = vmul.f32 %v2536, %v2537
  %v2539 = vsub.f32 1.0, %v2538
  %v2540 = vmul.f32 %v2537, %v2539
  %v2541 = vadd.f32 %v2537, %v2540
  %vm2542 = vweird.f32 %v2536
  %vm2543 = vweird.f32 %v2537
  %vm2544 = vmor %vm2542, %vm2543
  %v2545 = vsel %vm2544, %v2537, %v2541
  %v2546 = vand.u32 2147483647, %v2536
  %vm2547 = vcmp.eq.f32.partialorder %v2546, 8.507059e+37
  %v2548 = vand.u32 %v2536, 2147483648
  %v2549 = vor.u32 1.1754944e-38, %v2548
  %v2550 = vsel %vm2547, %v2549, %v2545
  %v2551 = vmul.f32 1.0, %v2550
  %v2552 = vadd.f32 %v2453, %v1630
  %v2553 = vmul.f32 %v2531, %v2552
  %v2554 = vadd.f32 %v2511, %v2553
  %v2555 = vtanh.pop %v2554
  %v2556 = vsub.f32 1.0, %v2551
  %v2557 = vmul.f32 %v2556, %v2555
  %v2558 = vmul.f32 %v2551, %v2375
  %v2559 = vadd.f32 %v2557, %v2558
  %v2560 = vpack.c.bf16 %v2507, %v2507
  %2561 = vmatpush.bf16.msra.mxu0 %v1299
  %2562 = vmatpush.bf16.msra.mxu0 %v1296
  %2563 = vmatpush.bf16.msra.mxu0 %v1293
  %2564 = vmatpush.bf16.msra.mxu0 %v1290
  %2565 = vmatpush.bf16.msra.mxu0 %v1287
  %2566 = vmatpush.bf16.msra.mxu0 %v1284
  %2567 = vmatpush.bf16.msra.mxu0 %v1281
  %2568 = vmatpush.bf16.msra.mxu0 %v1278
  %2569 = vmatmul.bf16.gmra.mxu0 %v2560
  %v2570 = vpop.f32.mrf.mxu0
  %v2571 = vadd.f32 0.0, %v2570
  %v2572 = vpop.f32.mrf.mxu0
  %2573 = vdwg.mxu0
  %2574 = vmatpush.bf16.msra.mxu0 %v1300
  %2575 = vmatpush.bf16.msra.mxu0 %v1297
  %2576 = vmatpush.bf16.msra.mxu0 %v1294
  %2577 = vmatpush.bf16.msra.mxu0 %v1291
  %2578 = vmatpush.bf16.msra.mxu0 %v1288
  %2579 = vmatpush.bf16.msra.mxu0 %v1285
  %2580 = vmatpush.bf16.msra.mxu0 %v1282
  %2581 = vmatpush.bf16.msra.mxu0 %v1279
  %2582 = vmatmul.bf16.gmra.mxu0 %v2560
  %v2583 = vpop.f32.mrf.mxu0
  %v2584 = vadd.f32 0.0, %v2583
  %v2585 = vpop.f32.mrf.mxu0
  %2586 = vdwg.mxu0
  %2587 = vmatpush.bf16.msra.mxu0 %v1301
  %2588 = vmatpush.bf16.msra.mxu0 %v1298
  %2589 = vmatpush.bf16.msra.mxu0 %v1295
  %2590 = vmatpush.bf16.msra.mxu0 %v1292
  %2591 = vmatpush.bf16.msra.mxu0 %v1289
  %2592 = vmatpush.bf16.msra.mxu0 %v1286
  %2593 = vmatpush.bf16.msra.mxu0 %v1283
  %2594 = vmatpush.bf16.msra.mxu0 %v1280
  %2595 = vmatmul.bf16.gmra.mxu0 %v2560
  %v2596 = vpop.f32.mrf.mxu0
  %v2597 = vadd.f32 0.0, %v2596
  %v2598 = vpop.f32.mrf.mxu0
  %2599 = vdwg.mxu0
  %v2600 = vpack.c.bf16 %v2559, %v2559
  %2601 = vmatpush.bf16.msra.mxu0 %v1466
  %2602 = vmatpush.bf16.msra.mxu0 %v1463
  %2603 = vmatpush.bf16.msra.mxu0 %v1460
  %2604 = vmatpush.bf16.msra.mxu0 %v1457
  %2605 = vmatpush.bf16.msra.mxu0 %v1454
  %2606 = vmatpush.bf16.msra.mxu0 %v1451
  %2607 = vmatpush.bf16.msra.mxu0 %v1448
  %2608 = vmatpush.bf16.msra.mxu0 %v1445
  %2609 = vmatmul.bf16.gmra.mxu0 %v2600
  %v2610 = vpop.f32.mrf.mxu0
  %v2611 = vadd.f32 0.0, %v2610
  %v2612 = vpop.f32.mrf.mxu0
  %2613 = vdwg.mxu0
  %2614 = vmatpush.bf16.msra.mxu0 %v1467
  %2615 = vmatpush.bf16.msra.mxu0 %v1464
  %2616 = vmatpush.bf16.msra.mxu0 %v1461
  %2617 = vmatpush.bf16.msra.mxu0 %v1458
  %2618 = vmatpush.bf16.msra.mxu0 %v1455
  %2619 = vmatpush.bf16.msra.mxu0 %v1452
  %2620 = vmatpush.bf16.msra.mxu0 %v1449
  %2621 = vmatpush.bf16.msra.mxu0 %v1446
  %2622 = vmatmul.bf16.gmra.mxu0 %v2600
  %v2623 = vpop.f32.mrf.mxu0
  %v2624 = vadd.f32 0.0, %v2623
  %v2625 = vpop.f32.mrf.mxu0
  %2626 = vdwg.mxu0
  %2627 = vmatpush.bf16.msra.mxu0 %v1468
  %2628 = vmatpush.bf16.msra.mxu0 %v1465
  %2629 = vmatpush.bf16.msra.mxu0 %v1462
  %2630 = vmatpush.bf16.msra.mxu0 %v1459
  %2631 = vmatpush.bf16.msra.mxu0 %v1456
  %2632 = vmatpush.bf16.msra.mxu0 %v1453
  %2633 = vmatpush.bf16.msra.mxu0 %v1450
  %2634 = vmatpush.bf16.msra.mxu0 %v1447
  %2635 = vmatmul.bf16.gmra.mxu0 %v2600
  %v2636 = vpop.f32.mrf.mxu0
  %v2637 = vadd.f32 0.0, %v2636
  %v2638 = vpop.f32.mrf.mxu0
  %2639 = vdwg.mxu0
  %s2640 = scalar_lea.vmem [#allocation2], 144
  %v2641 = vld [vmem:[%s2640] sm:$0xff]
  %v2642 = vld [vmem:[%s2640 + $0x8] sm:$0xff]
  %v2643 = vld [vmem:[%s2640 + $0x10] sm:$0xff]
  %v2644 = vadd.f32 %v2641, %v2571
  %v2645 = vxor.u32 %v2644, 2147483648
  %v2646 = vmul.f32 %v2645, 1.442695
  %v2647 = vpow.pop %v2646
  %v2648 = vadd.f32 %v2647, 1.0
  %v2649 = vrcp.pop %v2648
  %v2650 = vmul.f32 %v2648, %v2649
  %v2651 = vsub.f32 1.0, %v2650
  %v2652 = vmul.f32 %v2649, %v2651
  %v2653 = vadd.f32 %v2649, %v2652
  %vm2654 = vweird.f32 %v2648
  %vm2655 = vweird.f32 %v2649
  %vm2656 = vmor %vm2654, %vm2655
  %v2657 = vsel %vm2656, %v2649, %v2653
  %v2658 = vand.u32 2147483647, %v2648
  %vm2659 = vcmp.eq.f32.partialorder %v2658, 8.507059e+37
  %v2660 = vand.u32 %v2648, 2147483648
  %v2661 = vor.u32 1.1754944e-38, %v2660
  %v2662 = vsel %vm2659, %v2661, %v2657
  %v2663 = vmul.f32 1.0, %v2662
  %v2664 = vadd.f32 %v2642, %v2584
  %v2665 = vxor.u32 %v2664, 2147483648
  %v2666 = vmul.f32 %v2665, 1.442695
  %v2667 = vpow.pop %v2666
  %v2668 = vadd.f32 %v2667, 1.0
  %v2669 = vrcp.pop %v2668
  %v2670 = vmul.f32 %v2668, %v2669
  %v2671 = vsub.f32 1.0, %v2670
  %v2672 = vmul.f32 %v2669, %v2671
  %v2673 = vadd.f32 %v2669, %v2672
  %vm2674 = vweird.f32 %v2668
  %vm2675 = vweird.f32 %v2669
  %vm2676 = vmor %vm2674, %vm2675
  %v2677 = vsel %vm2676, %v2669, %v2673
  %v2678 = vand.u32 2147483647, %v2668
  %vm2679 = vcmp.eq.f32.partialorder %v2678, 8.507059e+37
  %v2680 = vand.u32 %v2668, 2147483648
  %v2681 = vor.u32 1.1754944e-38, %v2680
  %v2682 = vsel %vm2679, %v2681, %v2677
  %v2683 = vmul.f32 1.0, %v2682
  %v2684 = vadd.f32 %v2597, %v1576
  %v2685 = vmul.f32 %v2663, %v2684
  %v2686 = vadd.f32 %v2643, %v2685
  %v2687 = vtanh.pop %v2686
  %v2688 = vsub.f32 1.0, %v2683
  %v2689 = vmul.f32 %v2688, %v2687
  %v2690 = vmul.f32 %v2683, %v2507
  %v2691 = vadd.f32 %v2689, %v2690
  %s2692 = scalar_lea.vmem [#allocation3], 144
  %v2693 = vld [vmem:[%s2692] sm:$0xff]
  %v2694 = vld [vmem:[%s2692 + $0x8] sm:$0xff]
  %v2695 = vld [vmem:[%s2692 + $0x10] sm:$0xff]
  %v2696 = vadd.f32 %v2693, %v2611
  %v2697 = vxor.u32 %v2696, 2147483648
  %v2698 = vmul.f32 %v2697, 1.442695
  %v2699 = vpow.pop %v2698
  %v2700 = vadd.f32 %v2699, 1.0
  %v2701 = vrcp.pop %v2700
  %v2702 = vmul.f32 %v2700, %v2701
  %v2703 = vsub.f32 1.0, %v2702
  %v2704 = vmul.f32 %v2701, %v2703
  %v2705 = vadd.f32 %v2701, %v2704
  %vm2706 = vweird.f32 %v2700
  %vm2707 = vweird.f32 %v2701
  %vm2708 = vmor %vm2706, %vm2707
  %v2709 = vsel %vm2708, %v2701, %v2705
  %v2710 = vand.u32 2147483647, %v2700
  %vm2711 = vcmp.eq.f32.partialorder %v2710, 8.507059e+37
  %v2712 = vand.u32 %v2700, 2147483648
  %v2713 = vor.u32 1.1754944e-38, %v2712
  %v2714 = vsel %vm2711, %v2713, %v2709
  %v2715 = vmul.f32 1.0, %v2714
  %v2716 = vadd.f32 %v2694, %v2624
  %v2717 = vxor.u32 %v2716, 2147483648
  %v2718 = vmul.f32 %v2717, 1.442695
  %v2719 = vpow.pop %v2718
  %v2720 = vadd.f32 %v2719, 1.0
  %v2721 = vrcp.pop %v2720
  %v2722 = vmul.f32 %v2720, %v2721
  %v2723 = vsub.f32 1.0, %v2722
  %v2724 = vmul.f32 %v2721, %v2723
  %v2725 = vadd.f32 %v2721, %v2724
  %vm2726 = vweird.f32 %v2720
  %vm2727 = vweird.f32 %v2721
  %vm2728 = vmor %vm2726, %vm2727
  %v2729 = vsel %vm2728, %v2721, %v2725
  %v2730 = vand.u32 2147483647, %v2720
  %vm2731 = vcmp.eq.f32.partialorder %v2730, 8.507059e+37
  %v2732 = vand.u32 %v2720, 2147483648
  %v2733 = vor.u32 1.1754944e-38, %v2732
  %v2734 = vsel %vm2731, %v2733, %v2729
  %v2735 = vmul.f32 1.0, %v2734
  %v2736 = vadd.f32 %v2637, %v1630
  %v2737 = vmul.f32 %v2715, %v2736
  %v2738 = vadd.f32 %v2695, %v2737
  %v2739 = vtanh.pop %v2738
  %v2740 = vsub.f32 1.0, %v2735
  %v2741 = vmul.f32 %v2740, %v2739
  %v2742 = vmul.f32 %v2735, %v2559
  %v2743 = vadd.f32 %v2741, %v2742
  %v2744 = vpack.c.bf16 %v2691, %v2691
  %2745 = vmatpush.bf16.msra.mxu0 %v1299
  %2746 = vmatpush.bf16.msra.mxu0 %v1296
  %2747 = vmatpush.bf16.msra.mxu0 %v1293
  %2748 = vmatpush.bf16.msra.mxu0 %v1290
  %2749 = vmatpush.bf16.msra.mxu0 %v1287
  %2750 = vmatpush.bf16.msra.mxu0 %v1284
  %2751 = vmatpush.bf16.msra.mxu0 %v1281
  %2752 = vmatpush.bf16.msra.mxu0 %v1278
  %2753 = vmatmul.bf16.gmra.mxu0 %v2744
  %v2754 = vpop.f32.mrf.mxu0
  %v2755 = vadd.f32 0.0, %v2754
  %v2756 = vpop.f32.mrf.mxu0
  %2757 = vdwg.mxu0
  %2758 = vmatpush.bf16.msra.mxu0 %v1300
  %2759 = vmatpush.bf16.msra.mxu0 %v1297
  %2760 = vmatpush.bf16.msra.mxu0 %v1294
  %2761 = vmatpush.bf16.msra.mxu0 %v1291
  %2762 = vmatpush.bf16.msra.mxu0 %v1288
  %2763 = vmatpush.bf16.msra.mxu0 %v1285
  %2764 = vmatpush.bf16.msra.mxu0 %v1282
  %2765 = vmatpush.bf16.msra.mxu0 %v1279
  %2766 = vmatmul.bf16.gmra.mxu0 %v2744
  %v2767 = vpop.f32.mrf.mxu0
  %v2768 = vadd.f32 0.0, %v2767
  %v2769 = vpop.f32.mrf.mxu0
  %2770 = vdwg.mxu0
  %2771 = vmatpush.bf16.msra.mxu0 %v1301
  %2772 = vmatpush.bf16.msra.mxu0 %v1298
  %2773 = vmatpush.bf16.msra.mxu0 %v1295
  %2774 = vmatpush.bf16.msra.mxu0 %v1292
  %2775 = vmatpush.bf16.msra.mxu0 %v1289
  %2776 = vmatpush.bf16.msra.mxu0 %v1286
  %2777 = vmatpush.bf16.msra.mxu0 %v1283
  %2778 = vmatpush.bf16.msra.mxu0 %v1280
  %2779 = vmatmul.bf16.gmra.mxu0 %v2744
  %v2780 = vpop.f32.mrf.mxu0
  %v2781 = vadd.f32 0.0, %v2780
  %v2782 = vpop.f32.mrf.mxu0
  %2783 = vdwg.mxu0
  %v2784 = vpack.c.bf16 %v2743, %v2743
  %2785 = vmatpush.bf16.msra.mxu0 %v1466
  %2786 = vmatpush.bf16.msra.mxu0 %v1463
  %2787 = vmatpush.bf16.msra.mxu0 %v1460
  %2788 = vmatpush.bf16.msra.mxu0 %v1457
  %2789 = vmatpush.bf16.msra.mxu0 %v1454
  %2790 = vmatpush.bf16.msra.mxu0 %v1451
  %2791 = vmatpush.bf16.msra.mxu0 %v1448
  %2792 = vmatpush.bf16.msra.mxu0 %v1445
  %2793 = vmatmul.bf16.gmra.mxu0 %v2784
  %v2794 = vpop.f32.mrf.mxu0
  %v2795 = vadd.f32 0.0, %v2794
  %v2796 = vpop.f32.mrf.mxu0
  %2797 = vdwg.mxu0
  %2798 = vmatpush.bf16.msra.mxu0 %v1467
  %2799 = vmatpush.bf16.msra.mxu0 %v1464
  %2800 = vmatpush.bf16.msra.mxu0 %v1461
  %2801 = vmatpush.bf16.msra.mxu0 %v1458
  %2802 = vmatpush.bf16.msra.mxu0 %v1455
  %2803 = vmatpush.bf16.msra.mxu0 %v1452
  %2804 = vmatpush.bf16.msra.mxu0 %v1449
  %2805 = vmatpush.bf16.msra.mxu0 %v1446
  %2806 = vmatmul.bf16.gmra.mxu0 %v2784
  %v2807 = vpop.f32.mrf.mxu0
  %v2808 = vadd.f32 0.0, %v2807
  %v2809 = vpop.f32.mrf.mxu0
  %2810 = vdwg.mxu0
  %2811 = vmatpush.bf16.msra.mxu0 %v1468
  %2812 = vmatpush.bf16.msra.mxu0 %v1465
  %2813 = vmatpush.bf16.msra.mxu0 %v1462
  %2814 = vmatpush.bf16.msra.mxu0 %v1459
  %2815 = vmatpush.bf16.msra.mxu0 %v1456
  %2816 = vmatpush.bf16.msra.mxu0 %v1453
  %2817 = vmatpush.bf16.msra.mxu0 %v1450
  %2818 = vmatpush.bf16.msra.mxu0 %v1447
  %2819 = vmatmul.bf16.gmra.mxu0 %v2784
  %v2820 = vpop.f32.mrf.mxu0
  %v2821 = vadd.f32 0.0, %v2820
  %v2822 = vpop.f32.mrf.mxu0
  %2823 = vdwg.mxu0
  %s2824 = scalar_lea.vmem [#allocation2], 168
  %v2825 = vld [vmem:[%s2824] sm:$0xff]
  %v2826 = vld [vmem:[%s2824 + $0x8] sm:$0xff]
  %v2827 = vld [vmem:[%s2824 + $0x10] sm:$0xff]
  %v2828 = vadd.f32 %v2825, %v2755
  %v2829 = vxor.u32 %v2828, 2147483648
  %v2830 = vmul.f32 %v2829, 1.442695
  %v2831 = vpow.pop %v2830
  %v2832 = vadd.f32 %v2831, 1.0
  %v2833 = vrcp.pop %v2832
  %v2834 = vmul.f32 %v2832, %v2833
  %v2835 = vsub.f32 1.0, %v2834
  %v2836 = vmul.f32 %v2833, %v2835
  %v2837 = vadd.f32 %v2833, %v2836
  %vm2838 = vweird.f32 %v2832
  %vm2839 = vweird.f32 %v2833
  %vm2840 = vmor %vm2838, %vm2839
  %v2841 = vsel %vm2840, %v2833, %v2837
  %v2842 = vand.u32 2147483647, %v2832
  %vm2843 = vcmp.eq.f32.partialorder %v2842, 8.507059e+37
  %v2844 = vand.u32 %v2832, 2147483648
  %v2845 = vor.u32 1.1754944e-38, %v2844
  %v2846 = vsel %vm2843, %v2845, %v2841
  %v2847 = vmul.f32 1.0, %v2846
  %v2848 = vadd.f32 %v2826, %v2768
  %v2849 = vxor.u32 %v2848, 2147483648
  %v2850 = vmul.f32 %v2849, 1.442695
  %v2851 = vpow.pop %v2850
  %v2852 = vadd.f32 %v2851, 1.0
  %v2853 = vrcp.pop %v2852
  %v2854 = vmul.f32 %v2852, %v2853
  %v2855 = vsub.f32 1.0, %v2854
  %v2856 = vmul.f32 %v2853, %v2855
  %v2857 = vadd.f32 %v2853, %v2856
  %vm2858 = vweird.f32 %v2852
  %vm2859 = vweird.f32 %v2853
  %vm2860 = vmor %vm2858, %vm2859
  %v2861 = vsel %vm2860, %v2853, %v2857
  %v2862 = vand.u32 2147483647, %v2852
  %vm2863 = vcmp.eq.f32.partialorder %v2862, 8.507059e+37
  %v2864 = vand.u32 %v2852, 2147483648
  %v2865 = vor.u32 1.1754944e-38, %v2864
  %v2866 = vsel %vm2863, %v2865, %v2861
  %v2867 = vmul.f32 1.0, %v2866
  %v2868 = vadd.f32 %v2781, %v1576
  %v2869 = vmul.f32 %v2847, %v2868
  %v2870 = vadd.f32 %v2827, %v2869
  %v2871 = vtanh.pop %v2870
  %v2872 = vsub.f32 1.0, %v2867
  %v2873 = vmul.f32 %v2872, %v2871
  %v2874 = vmul.f32 %v2867, %v2691
  %v2875 = vadd.f32 %v2873, %v2874
  %s2876 = scalar_lea.vmem [#allocation3], 168
  %v2877 = vld [vmem:[%s2876] sm:$0xff]
  %v2878 = vld [vmem:[%s2876 + $0x8] sm:$0xff]
  %v2879 = vld [vmem:[%s2876 + $0x10] sm:$0xff]
  %v2880 = vadd.f32 %v2877, %v2795
  %v2881 = vxor.u32 %v2880, 2147483648
  %v2882 = vmul.f32 %v2881, 1.442695
  %v2883 = vpow.pop %v2882
  %v2884 = vadd.f32 %v2883, 1.0
  %v2885 = vrcp.pop %v2884
  %v2886 = vmul.f32 %v2884, %v2885
  %v2887 = vsub.f32 1.0, %v2886
  %v2888 = vmul.f32 %v2885, %v2887
  %v2889 = vadd.f32 %v2885, %v2888
  %vm2890 = vweird.f32 %v2884
  %vm2891 = vweird.f32 %v2885
  %vm2892 = vmor %vm2890, %vm2891
  %v2893 = vsel %vm2892, %v2885, %v2889
  %v2894 = vand.u32 2147483647, %v2884
  %vm2895 = vcmp.eq.f32.partialorder %v2894, 8.507059e+37
  %v2896 = vand.u32 %v2884, 2147483648
  %v2897 = vor.u32 1.1754944e-38, %v2896
  %v2898 = vsel %vm2895, %v2897, %v2893
  %v2899 = vmul.f32 1.0, %v2898
  %v2900 = vadd.f32 %v2878, %v2808
  %v2901 = vxor.u32 %v2900, 2147483648
  %v2902 = vmul.f32 %v2901, 1.442695
  %v2903 = vpow.pop %v2902
  %v2904 = vadd.f32 %v2903, 1.0
  %v2905 = vrcp.pop %v2904
  %v2906 = vmul.f32 %v2904, %v2905
  %v2907 = vsub.f32 1.0, %v2906
  %v2908 = vmul.f32 %v2905, %v2907
  %v2909 = vadd.f32 %v2905, %v2908
  %vm2910 = vweird.f32 %v2904
  %vm2911 = vweird.f32 %v2905
  %vm2912 = vmor %vm2910, %vm2911
  %v2913 = vsel %vm2912, %v2905, %v2909
  %v2914 = vand.u32 2147483647, %v2904
  %vm2915 = vcmp.eq.f32.partialorder %v2914, 8.507059e+37
  %v2916 = vand.u32 %v2904, 2147483648
  %v2917 = vor.u32 1.1754944e-38, %v2916
  %v2918 = vsel %vm2915, %v2917, %v2913
  %v2919 = vmul.f32 1.0, %v2918
  %v2920 = vadd.f32 %v2821, %v1630
  %v2921 = vmul.f32 %v2899, %v2920
  %v2922 = vadd.f32 %v2879, %v2921
  %v2923 = vtanh.pop %v2922
  %v2924 = vsub.f32 1.0, %v2919
  %v2925 = vmul.f32 %v2924, %v2923
  %v2926 = vmul.f32 %v2919, %v2743
  %v2927 = vadd.f32 %v2925, %v2926
  %v2928 = vpack.c.bf16 %v1771, %v1585
  %v2929 = vpack.c.bf16 %v2139, %v1955
  %v2930 = vpack.c.bf16 %v2507, %v2323
  %v2931 = vpack.c.bf16 %v2875, %v2691
  %v2932 = vpack.c.bf16 %v1823, %v1639
  %v2933 = vpack.c.bf16 %v2191, %v2007
  %v2934 = vpack.c.bf16 %v2559, %v2375
  %v2935 = vpack.c.bf16 %v2927, %v2743
  %v2936 = vld [vmem:[%s5] sm:$0xf]
  %v2937 = vld [vmem:[%s5 + $0x4] sm:$0xf]
  %v2938 = vld [vmem:[%s5 + $0x8] sm:$0xf]
  %v2939 = vld [vmem:[%s5 + $0xc] sm:$0xf]
  %v2940 = vld [vmem:[%s5 + $0x10] sm:$0xf]
  %v2941 = vld [vmem:[%s5 + $0x14] sm:$0xf]
  %v2942 = vld [vmem:[%s5 + $0x18] sm:$0xf]
  %v2943 = vld [vmem:[%s5 + $0x1c] sm:$0xf]
  %v2944 = vld [vmem:[%s5 + $0x20] sm:$0xf]
  %v2945 = vld [vmem:[%s5 + $0x24] sm:$0xf]
  %v2946 = vld [vmem:[%s5 + $0x28] sm:$0xf]
  %v2947 = vld [vmem:[%s5 + $0x2c] sm:$0xf]
  %v2948 = vld [vmem:[%s5 + $0x30] sm:$0xf]
  %v2949 = vld [vmem:[%s5 + $0x34] sm:$0xf]
  %v2950 = vld [vmem:[%s5 + $0x38] sm:$0xf]
  %v2951 = vld [vmem:[%s5 + $0x3c] sm:$0xf]
  %v2952 = vld [vmem:[%s6] sm:$0x1]
  %v2954 = vperm.slane %v2952, 0
  %v2972 = vunpack.c.l.b16 %v2936
  %v2973 = vunpack.c.l.b16 %v2937
  %v2974 = vunpack.c.l.b16 %v2938
  %v2975 = vunpack.c.l.b16 %v2939
  %v2976 = vunpack.c.l.b16 %v2940
  %v2977 = vunpack.c.l.b16 %v2941
  %v2978 = vunpack.c.l.b16 %v2942
  %v2979 = vunpack.c.l.b16 %v2943
  %v2980 = vunpack.c.l.b16 %v2944
  %v2981 = vunpack.c.l.b16 %v2945
  %v2982 = vunpack.c.l.b16 %v2946
  %v2983 = vunpack.c.l.b16 %v2947
  %v2984 = vunpack.c.l.b16 %v2948
  %v2985 = vunpack.c.l.b16 %v2949
  %v2986 = vunpack.c.l.b16 %v2950
  %v2987 = vunpack.c.l.b16 %v2951
  %v2988 = vpack.c.b16 %v2973, %v2972
  %v2989 = vpack.c.b16 %v2975, %v2974
  %v2990 = vpack.c.b16 %v2977, %v2976
  %v2991 = vpack.c.b16 %v2979, %v2978
  %v2992 = vpack.c.b16 %v2981, %v2980
  %v2993 = vpack.c.b16 %v2983, %v2982
  %v2994 = vpack.c.b16 %v2985, %v2984
  %v2995 = vpack.c.b16 %v2987, %v2986
  %3004 = vmatpush.bf16.msra.mxu0 %v2995
  %3005 = vmatpush.bf16.msra.mxu0 %v2994
  %3006 = vmatpush.bf16.msra.mxu0 %v2993
  %3007 = vmatpush.bf16.msra.mxu0 %v2992
  %3008 = vmatpush.bf16.msra.mxu0 %v2991
  %3009 = vmatpush.bf16.msra.mxu0 %v2990
  %3010 = vmatpush.bf16.msra.mxu0 %v2989
  %3011 = vmatpush.bf16.msra.mxu0 %v2988
  %3012 = vmatmul.bf16.gmra.mxu0 %v2928
  %v3013 = vpop.f32.mrf.mxu0
  %v3014 = vadd.f32 %v2954, %v3013
  %v3015 = vpop.f32.mrf.mxu0
  %v3016 = vadd.f32 %v2954, %v3015
  %3017 = vmatmul.bf16.gmra.mxu0 %v2929
  %v3018 = vpop.f32.mrf.mxu0
  %v3019 = vadd.f32 %v2954, %v3018
  %v3020 = vpop.f32.mrf.mxu0
  %v3021 = vadd.f32 %v2954, %v3020
  %3022 = vmatmul.bf16.gmra.mxu0 %v2930
  %v3023 = vpop.f32.mrf.mxu0
  %v3024 = vadd.f32 %v2954, %v3023
  %v3025 = vpop.f32.mrf.mxu0
  %v3026 = vadd.f32 %v2954, %v3025
  %3027 = vmatmul.bf16.gmra.mxu0 %v2931
  %v3028 = vpop.f32.mrf.mxu0
  %v3029 = vadd.f32 %v2954, %v3028
  %v3030 = vpop.f32.mrf.mxu0
  %v3031 = vadd.f32 %v2954, %v3030
  %3032 = vmatmul.bf16.gmra.mxu0 %v2932
  %v3033 = vpop.f32.mrf.mxu0
  %v3034 = vadd.f32 %v2954, %v3033
  %v3035 = vpop.f32.mrf.mxu0
  %v3036 = vadd.f32 %v2954, %v3035
  %3037 = vmatmul.bf16.gmra.mxu0 %v2933
  %v3038 = vpop.f32.mrf.mxu0
  %v3039 = vadd.f32 %v2954, %v3038
  %v3040 = vpop.f32.mrf.mxu0
  %v3041 = vadd.f32 %v2954, %v3040
  %3042 = vmatmul.bf16.gmra.mxu0 %v2934
  %v3043 = vpop.f32.mrf.mxu0
  %v3044 = vadd.f32 %v2954, %v3043
  %v3045 = vpop.f32.mrf.mxu0
  %v3046 = vadd.f32 %v2954, %v3045
  %3047 = vmatmul.bf16.gmra.mxu0 %v2935
  %v3048 = vpop.f32.mrf.mxu0
  %v3049 = vadd.f32 %v2954, %v3048
  %v3050 = vpop.f32.mrf.mxu0
  %v3051 = vadd.f32 %v2954, %v3050
  %3052 = vdwg.mxu0
  %3053 = vst [vmem:[%s7] sm:$0xff] %v3014
  %3054 = vst [vmem:[%s7 + $0x8] sm:$0xff] %v3016
  %3055 = vst [vmem:[%s7 + $0x10] sm:$0xff] %v3019
  %3056 = vst [vmem:[%s7 + $0x18] sm:$0xff] %v3021
  %3057 = vst [vmem:[%s7 + $0x20] sm:$0xff] %v3024
  %3058 = vst [vmem:[%s7 + $0x28] sm:$0xff] %v3026
  %3059 = vst [vmem:[%s7 + $0x30] sm:$0xff] %v3029
  %3060 = vst [vmem:[%s7 + $0x38] sm:$0xff] %v3031
  %3061 = vst [vmem:[%s7 + $0x40] sm:$0xff] %v3034
  %3062 = vst [vmem:[%s7 + $0x48] sm:$0xff] %v3036
  %3063 = vst [vmem:[%s7 + $0x50] sm:$0xff] %v3039
  %3064 = vst [vmem:[%s7 + $0x58] sm:$0xff] %v3041
  %3065 = vst [vmem:[%s7 + $0x60] sm:$0xff] %v3044
  %3066 = vst [vmem:[%s7 + $0x68] sm:$0xff] %v3046
  %3067 = vst [vmem:[%s7 + $0x70] sm:$0xff] %v3049
  %3068 = vst [vmem:[%s7 + $0x78] sm:$0xff] %v3051
  // Predicated region
  $region30: #{duodecoder_forward.1} parent=0 // pred_check
    _
  $region31: #{duodecoder_forward.1} parent=0 // pred_check_branch
    %3070 = sbr.rel (0) target = $region33
  $region32: #{duodecoder_forward.1} parent=0 // pred_region
    _
  $region33: #{duodecoder_forward.1} parent=0 // pred_fallthru
    _
  // Predicated region
  $region34: #{duodecoder_forward.1} parent=0 // pred_check
    _
  $region35: #{duodecoder_forward.1} parent=0 // pred_check_branch
    %3072 = sbr.rel (0) target = $region37
  $region36: #{duodecoder_forward.1} parent=0 // pred_region
    _
  $region37: #{duodecoder_forward.1} parent=0 // pred_fallthru
    _

</llo_original>
